<compile_context>
chip_gen: v7x
topology: tpu7x:2x2x1
jax: 0.10.0
libtpu: 0.0.40
codegen_flags: <defaults>
</compile_context>

<pallas_src>
import functools
import math

import jax
import jax.numpy as jnp
from jax import lax
from jax.experimental import pallas as pl
from jax.experimental.pallas import tpu as pltpu

_EPS = 1e-5
_INV_SQRT2 = 0.7071067811865476
_LANE = 128
_SUBLANE = 8


def _gelu_exact(x):
    # PyTorch nn.GELU() default = exact erf formulation.
    return 0.5 * x * (1.0 + lax.erf(x * _INV_SQRT2))


def _round_up(n, m):
    return ((n + m - 1) // m) * m


# --------------------------------------------------------------- kernel ----

def _branch_kernel(xp_ref, bn_ref, we_ref, be_ref,
                   m1_wt1, m1_bt1, m1_wt2, m1_bt2,
                   m1_we1, m1_be1, m1_we2, m1_be2,
                   m2_wt1, m2_bt1, m2_wt2, m2_bt2,
                   m2_we1, m2_be1, m2_we2, m2_be2,
                   hw_ref, hb_ref, o_ref):
    """R (batch, channel) rows of the ResolutionBranch, fully fused.

    Activation layout: [patch_num (major), R (sublane), d_model (lane)].
    """
    P, R, _ = xp_ref.shape
    bn = bn_ref[...]                                     # [R, 16] folded BN table

    def sc(k):                                           # [1, R, 1] per-row scalar
        return bn[None, :, k:k + 1]

    def dense(x3, w_ref, b_ref):
        # Contract the lane axis; (P*R) rides the MXU M axis.  The leading-dim
        # collapse reshape is layout-free because R is a multiple of 8.
        p, r, kin = x3.shape
        w = w_ref[...]
        y = jnp.dot(x3.reshape(p * r, kin), w,
                    preferred_element_type=jnp.float32) + b_ref[...]
        return y.reshape(p, r, w.shape[1])

    def token_mix(xn, wt1_ref, bt1_ref, wt2_ref, bt2_ref):
        # TokenMixer: Linear(P -> P*tf), GELU, Linear(P*tf -> P) along the patch
        # axis.  d_model stays on lanes; the small patch contraction is an
        # unrolled scalar-broadcast accumulation (VPU), no transposes.
        w1 = wt1_ref[...]                                # [T, P]
        w2 = wt2_ref[...]                                # [P, T]
        T = w1.shape[0]
        h = w1[:, 0:1, None] * xn[0][None]               # [T,1,1]*[1,R,D] -> [T,R,D]
        for p in range(1, P):
            h = h + w1[:, p:p + 1, None] * xn[p][None]
        h = _gelu_exact(h + bt1_ref[...])
        y = w2[:, 0:1, None] * h[0][None]                # [P,1,1]*[1,R,D] -> [P,R,D]
        for t in range(1, T):
            y = y + w2[:, t:t + 1, None] * h[t][None]
        return y + bt2_ref[...]

    def mixer(x, wt1, bt1, wt2, bt2, we1, be1, we2, be2, s1, t1, s2, t2):
        # Matches PyTorch Mixer.forward exactly:
        #   yn = norm2(tMixer(norm1(x)));  return yn + embeddingMixer(yn)
        xn = x * s1 + t1                                 # norm1 (folded affine)
        y = token_mix(xn, wt1, bt1, wt2, bt2)            # tMixer (dropout = id)
        yn = y * s2 + t2                                 # norm2 (folded affine)
        z = dense(yn, we1, be1)                          # Linear(D -> D*df)
        z = _gelu_exact(z)
        z = dense(z, we2, be2)                           # Linear(D*df -> D)
        return yn + z

    # patch_norm (folded) + patch embedding Linear(patch_len -> d_model)
    x = xp_ref[...] * sc(0) + sc(1)                      # [P, R, patch_len]
    x = dense(x, we_ref, be_ref)                         # [P, R, D]

    # mixer1; then out = out + mixer2(out)   (ResolutionBranch wiring)
    x = mixer(x, m1_wt1, m1_bt1, m1_wt2, m1_bt2,
              m1_we1, m1_be1, m1_we2, m1_be2, sc(2), sc(3), sc(4), sc(5))
    x = x + mixer(x, m2_wt1, m2_bt1, m2_wt2, m2_bt2,
                  m2_we1, m2_be1, m2_we2, m2_be2, sc(6), sc(7), sc(8), sc(9))
    x = x * sc(10) + sc(11)                              # final BN (folded affine)

    # head: Flatten(P, D) @ W_head, as per-patch [R,D]@[D,Q_pad] matmuls that
    # are tree-summed (no chained M=1 matmuls; lane-dense padded output).
    hw = hw_ref[...]                                     # [P, D, Q_pad]
    parts = [jnp.dot(x[p], hw[p], preferred_element_type=jnp.float32)
             for p in range(P)]
    while len(parts) > 1:
        nxt = [a + b for a, b in zip(parts[0::2], parts[1::2])]
        if len(parts) % 2:
            nxt.append(parts[-1])
        parts = nxt
    o_ref[...] = parts[0] + hb_ref[...]


# ------------------------------------------------------------- wrappers ----

def _inv_spec(w):
    # Grid-invariant full-array block: fetched once, resident across all steps.
    return pl.BlockSpec(w.shape, lambda i, nd=w.ndim: (0,) * nd)


def resolution_branch(x, kp, *, patch_len, patch_stride, pred_seq,
                      block_rows=128):
    """ResolutionBranch.forward: x [B, C, L] -> [B, C, pred_seq]."""
    B, C, L = x.shape
    rows = B * C

    # do_patching: replication pad + unfold (tiny gather, left to XLA).
    x_pad = jnp.repeat(x[:, :, -1:], patch_stride, axis=-1)
    x_new = jnp.concatenate([x, x_pad], axis=-1)
    pn = (L + patch_stride - patch_len) // patch_stride + 1
    idx = jnp.arange(pn)[:, None] * patch_stride + jnp.arange(patch_len)[None, :]
    xp = x_new[:, :, idx].reshape(rows, pn, patch_len)
    # Patch-major layout [pn, rows, patch_len] so the kernel never transposes.
    xp = jnp.swapaxes(xp, 0, 1)

    # Per-row folded BN table (row = b*C + c  ->  channel table row c).
    bn_rows = jnp.tile(kp["bn_tab"], (B, 1))             # [rows, 16]

    # Row batching: R rows per grid step (multiple of 8 for free reshapes).
    R = min(block_rows, _round_up(rows, _SUBLANE))
    rows_pad = _round_up(rows, R)
    if rows_pad != rows:
        xp = jnp.pad(xp, ((0, 0), (0, rows_pad - rows), (0, 0)))
        bn_rows = jnp.pad(bn_rows, ((0, rows_pad - rows), (0, 0)))

    pred_pad = kp["head_w3"].shape[-1]
    d_model = kp["emb_w"].shape[1]
    names = ("wt1", "bt1", "wt2", "bt2", "we1", "be1", "we2", "be2")
    weights = [kp["emb_w"], kp["emb_b"],
               *(kp["m1"][n] for n in names),
               *(kp["m2"][n] for n in names),
               kp["head_w3"], kp["head_b"]]

    # Advisory cost estimate (helps XLA schedule the surrounding gather).
    tdim = kp["m1"]["wt1"].shape[0]
    dff = kp["m1"]["we1"].shape[1]
    flops_row = (2 * pn * patch_len * d_model
                 + 2 * (4 * pn * tdim * d_model + 4 * pn * d_model * dff)
                 + 2 * pn * d_model * pred_pad)
    cost = pl.CostEstimate(
        flops=int(rows_pad * flops_row),
        transcendentals=int(rows_pad * 2 * (tdim * d_model + pn * dff)),
        bytes_accessed=int(4 * (xp.size + bn_rows.size
                                + sum(int(w.size) for w in weights)
                                + rows_pad * pred_pad)),
    )

    out = pl.pallas_call(
        _branch_kernel,
        out_shape=jax.ShapeDtypeStruct((rows_pad, pred_pad), jnp.float32),
        grid=(rows_pad // R,),
        in_specs=[pl.BlockSpec((pn, R, patch_len), lambda i: (0, i, 0)),
                  pl.BlockSpec((R, 16), lambda i: (i, 0))]
                 + [_inv_spec(w) for w in weights],
        out_specs=pl.BlockSpec((R, pred_pad), lambda i: (i, 0)),
        compiler_params=pltpu.CompilerParams(
            dimension_semantics=("parallel",),
            vmem_limit_bytes=32 * 1024 * 1024),
        cost_estimate=cost,
    )(xp, bn_rows, *weights)

    # Drop the zero-padded rows / head columns (layout plumbing only).
    return out[:rows, :pred_seq].reshape(B, C, pred_seq)


def wpmixer_core_forward(xL, kparams, *, pred_length, patch_len, patch_stride):
    """WPMixerCore.forward: xL [B, look_back, C] -> [B, pred_length, C]."""
    x = jnp.swapaxes(xL, 1, 2)                           # [B, C, L]
    # no_decomposition=True: transform/inv_transform are identities, xD = [].
    # TODO(synk): wavelet DWT/IDWT path (pytorch_wavelets, no_decomposition=False)
    # not implemented.
    yA = resolution_branch(x, kparams["branch0"],
                           patch_len=patch_len, patch_stride=patch_stride,
                           pred_seq=pred_length)
    y = jnp.swapaxes(yA, 1, 2)                           # [B, pred_w_dim, C]
    return y[:, -pred_length:, :]


# ----------------------------- parameter init (PyTorch-layout analogue) ----

def _init_linear(key, din, dout, scale=0.05):
    kw, kb = jax.random.split(key)
    w = scale * jax.random.normal(kw, (din, dout), jnp.float32)   # [in, out]
    b = scale * jax.random.normal(kb, (1, dout), jnp.float32)
    return w, b


def _init_bn(key, c):
    k1, k2, k3, k4 = jax.random.split(key, 4)
    return dict(
        gamma=1.0 + 0.1 * jax.random.normal(k1, (c,), jnp.float32),
        beta=0.1 * jax.random.normal(k2, (c,), jnp.float32),
        mean=0.1 * jax.random.normal(k3, (c,), jnp.float32),
        var=1.0 + 0.1 * jax.random.uniform(k4, (c,), jnp.float32),
    )


def _init_mixer(key, c, patch_num, d_model, tfactor, dfactor):
    ks = jax.random.split(key, 6)
    tw1, tb1 = _init_linear(ks[0], patch_num, patch_num * tfactor)
    tw2, tb2 = _init_linear(ks[1], patch_num * tfactor, patch_num)
    ew1, eb1 = _init_linear(ks[2], d_model, d_model * dfactor)
    ew2, eb2 = _init_linear(ks[3], d_model * dfactor, d_model)
    return dict(
        norm1=_init_bn(ks[4], c), norm2=_init_bn(ks[5], c),
        tmix_w1=tw1, tmix_b1=tb1, tmix_w2=tw2, tmix_b2=tb2,
        emb_w1=ew1, emb_b1=eb1, emb_w2=ew2, emb_b2=eb2,
    )


def init_wpmixer_params(key, *, channel, input_length, pred_length, d_model,
                        patch_len, patch_stride, tfactor, dfactor):
    patch_num = (input_length - patch_len) // patch_stride + 2
    ks = jax.random.split(key, 6)
    emb_w, emb_b = _init_linear(ks[0], patch_len, d_model)
    head_w, head_b = _init_linear(ks[1], patch_num * d_model, pred_length)
    branch0 = dict(
        patch_norm=_init_bn(ks[2], channel),
        emb_w=emb_w, emb_b=emb_b,
        mixer1=_init_mixer(ks[3], channel, patch_num, d_model, tfactor, dfactor),
        mixer2=_init_mixer(ks[4], channel, patch_num, d_model, tfactor, dfactor),
        norm=_init_bn(ks[5], channel),
        head_w=head_w, head_b=head_b,
    )
    return dict(branch0=branch0)


# ------------------------------- fold params into kernel-ready layout ------

def fold_params(params, *, channel, patch_num, d_model, pred_length):
    """Fold eval-mode BatchNorms to per-channel (scale, shift), transpose the
    token-mixer weights to torch [out, in] layout, and pad / reshape the head
    weights to a lane-dense [patch_num, d_model, pred_pad] slab.  Done once."""
    b0 = params["branch0"]

    def bn_st(bn):
        s = bn["gamma"] / jnp.sqrt(bn["var"] + _EPS)
        t = bn["beta"] - bn["mean"] * s
        return s, t

    m1, m2 = b0["mixer1"], b0["mixer2"]
    cols = []
    for bn in (b0["patch_norm"], m1["norm1"], m1["norm2"],
               m2["norm1"], m2["norm2"], b0["norm"]):
        s, t = bn_st(bn)
        cols += [s, t]
    cols += [jnp.zeros_like(cols[0])] * (16 - len(cols))
    bn_tab = jnp.stack(cols, axis=-1).astype(jnp.float32)          # [C, 16]

    pred_pad = _round_up(pred_length, _LANE)
    head_w3 = jnp.pad(b0["head_w"], ((0, 0), (0, pred_pad - pred_length)))
    head_w3 = head_w3.reshape(patch_num, d_model, pred_pad)
    head_bp = jnp.pad(b0["head_b"], ((0, 0), (0, pred_pad - pred_length)))

    def fold_mixer(m):
        return dict(
            wt1=m["tmix_w1"].T,                      # [P*tf, P]
            bt1=m["tmix_b1"].reshape(-1, 1, 1),      # [P*tf, 1, 1]
            wt2=m["tmix_w2"].T,                      # [P, P*tf]
            bt2=m["tmix_b2"].reshape(-1, 1, 1),      # [P, 1, 1]
            we1=m["emb_w1"], be1=m["emb_b1"],
            we2=m["emb_w2"], be2=m["emb_b2"],
        )

    return dict(branch0=dict(
        bn_tab=bn_tab,
        emb_w=b0["emb_w"], emb_b=b0["emb_b"],
        m1=fold_mixer(m1), m2=fold_mixer(m2),
        head_w3=head_w3, head_b=head_bp,
    ))


# ------------------------------------------------------------------ demo ----

if __name__ == "__main__":
    B, C = 2, 4
    input_length, pred_length = 16, 8
    d_model = 32
    patch_len, patch_stride = 4, 2
    tfactor, dfactor = 2, 2
    patch_num = (input_length - patch_len) // patch_stride + 2

    key = jax.random.PRNGKey(0)
    kx, kp = jax.random.split(key)
    xL = jax.random.normal(kx, (B, input_length, C), jnp.float32)
    raw_params = init_wpmixer_params(
        kp, channel=C, input_length=input_length, pred_length=pred_length,
        d_model=d_model, patch_len=patch_len, patch_stride=patch_stride,
        tfactor=tfactor, dfactor=dfactor,
    )
    kparams = fold_params(raw_params, channel=C, patch_num=patch_num,
                          d_model=d_model, pred_length=pred_length)

    fwd = jax.jit(functools.partial(
        wpmixer_core_forward,
        pred_length=pred_length, patch_len=patch_len, patch_stride=patch_stride,
    ))
    out = fwd(xL, kparams)
    jax.block_until_ready(out)
    assert out.shape == (B, pred_length, C), out.shape
    assert bool(jnp.all(jnp.isfinite(out)))
    print("KERNEL_OK")
</pallas_src>

<mosaic_0001>
module attributes {stable_mosaic.version = 11 : i64} {
  func.func @_branch_kernel(%arg0: i32, %arg1: memref<8x8x4xf32, #tpu.memory_space<vmem>>, %arg2: memref<8x16xf32, #tpu.memory_space<vmem>>, %arg3: memref<4x32xf32, #tpu.memory_space<vmem>>, %arg4: memref<1x32xf32, #tpu.memory_space<vmem>>, %arg5: memref<16x8xf32, #tpu.memory_space<vmem>>, %arg6: memref<16x1x1xf32, #tpu.memory_space<vmem>>, %arg7: memref<8x16xf32, #tpu.memory_space<vmem>>, %arg8: memref<8x1x1xf32, #tpu.memory_space<vmem>>, %arg9: memref<32x64xf32, #tpu.memory_space<vmem>>, %arg10: memref<1x64xf32, #tpu.memory_space<vmem>>, %arg11: memref<64x32xf32, #tpu.memory_space<vmem>>, %arg12: memref<1x32xf32, #tpu.memory_space<vmem>>, %arg13: memref<16x8xf32, #tpu.memory_space<vmem>>, %arg14: memref<16x1x1xf32, #tpu.memory_space<vmem>>, %arg15: memref<8x16xf32, #tpu.memory_space<vmem>>, %arg16: memref<8x1x1xf32, #tpu.memory_space<vmem>>, %arg17: memref<32x64xf32, #tpu.memory_space<vmem>>, %arg18: memref<1x64xf32, #tpu.memory_space<vmem>>, %arg19: memref<64x32xf32, #tpu.memory_space<vmem>>, %arg20: memref<1x32xf32, #tpu.memory_space<vmem>>, %arg21: memref<8x32x128xf32, #tpu.memory_space<vmem>>, %arg22: memref<1x128xf32, #tpu.memory_space<vmem>>, %arg23: memref<8x128xf32, #tpu.memory_space<vmem>>) attributes {dimension_semantics = [#tpu.dimension_semantics<parallel>], iteration_bounds = array<i64: 1>, scalar_prefetch = 0 : i64, scratch_operands = 0 : i64, tpu.core_type = #tpu.core_type<tc>, window_params = [{transform_indices = @transform_0, window_bounds = array<i64: 8, 8, 4>}, {transform_indices = @transform_1, window_bounds = array<i64: 8, 16>}, {pipeline_mode = #tpu.pipeline_mode<synchronous>, transform_indices = @transform_2, window_bounds = array<i64: 4, 32>}, {pipeline_mode = #tpu.pipeline_mode<synchronous>, transform_indices = @transform_3, window_bounds = array<i64: 1, 32>}, {pipeline_mode = #tpu.pipeline_mode<synchronous>, transform_indices = @transform_4, window_bounds = array<i64: 16, 8>}, {pipeline_mode = #tpu.pipeline_mode<synchronous>, transform_indices = @transform_5, window_bounds = array<i64: 16, 1, 1>}, {pipeline_mode = #tpu.pipeline_mode<synchronous>, transform_indices = @transform_6, window_bounds = array<i64: 8, 16>}, {pipeline_mode = #tpu.pipeline_mode<synchronous>, transform_indices = @transform_7, window_bounds = array<i64: 8, 1, 1>}, {pipeline_mode = #tpu.pipeline_mode<synchronous>, transform_indices = @transform_8, window_bounds = array<i64: 32, 64>}, {pipeline_mode = #tpu.pipeline_mode<synchronous>, transform_indices = @transform_9, window_bounds = array<i64: 1, 64>}, {pipeline_mode = #tpu.pipeline_mode<synchronous>, transform_indices = @transform_10, window_bounds = array<i64: 64, 32>}, {pipeline_mode = #tpu.pipeline_mode<synchronous>, transform_indices = @transform_11, window_bounds = array<i64: 1, 32>}, {pipeline_mode = #tpu.pipeline_mode<synchronous>, transform_indices = @transform_12, window_bounds = array<i64: 16, 8>}, {pipeline_mode = #tpu.pipeline_mode<synchronous>, transform_indices = @transform_13, window_bounds = array<i64: 16, 1, 1>}, {pipeline_mode = #tpu.pipeline_mode<synchronous>, transform_indices = @transform_14, window_bounds = array<i64: 8, 16>}, {pipeline_mode = #tpu.pipeline_mode<synchronous>, transform_indices = @transform_15, window_bounds = array<i64: 8, 1, 1>}, {pipeline_mode = #tpu.pipeline_mode<synchronous>, transform_indices = @transform_16, window_bounds = array<i64: 32, 64>}, {pipeline_mode = #tpu.pipeline_mode<synchronous>, transform_indices = @transform_17, window_bounds = array<i64: 1, 64>}, {pipeline_mode = #tpu.pipeline_mode<synchronous>, transform_indices = @transform_18, window_bounds = array<i64: 64, 32>}, {pipeline_mode = #tpu.pipeline_mode<synchronous>, transform_indices = @transform_19, window_bounds = array<i64: 1, 32>}, {pipeline_mode = #tpu.pipeline_mode<synchronous>, transform_indices = @transform_20, window_bounds = array<i64: 8, 32, 128>}, {pipeline_mode = #tpu.pipeline_mode<synchronous>, transform_indices = @transform_21, window_bounds = array<i64: 1, 128>}, {transform_indices = @transform_22, window_bounds = array<i64: 8, 128>}]} {
    %c0 = arith.constant 0 : index
    %c0_0 = arith.constant 0 : index
    %0 = vector.load %arg2[%c0, %c0_0] : memref<8x16xf32, #tpu.memory_space<vmem>>, vector<8x16xf32>
    %c0_1 = arith.constant 0 : index
    %c0_2 = arith.constant 0 : index
    %c0_3 = arith.constant 0 : index
    %1 = vector.load %arg1[%c0_1, %c0_2, %c0_3] : memref<8x8x4xf32, #tpu.memory_space<vmem>>, vector<8x8x4xf32>
    %2 = vector.extract_strided_slice %0 {offsets = [0, 0], sizes = [8, 1], strides = [1, 1]} : vector<8x16xf32> to vector<8x1xf32>
    %3 = vector.shape_cast %2 : vector<8x1xf32> to vector<1x8x1xf32>
    %4 = vector.broadcast %3 : vector<1x8x1xf32> to vector<8x8x4xf32>
    %5 = arith.mulf %1, %4 : vector<8x8x4xf32>
    %6 = vector.extract_strided_slice %0 {offsets = [0, 1], sizes = [8, 1], strides = [1, 1]} : vector<8x16xf32> to vector<8x1xf32>
    %7 = vector.shape_cast %6 : vector<8x1xf32> to vector<1x8x1xf32>
    %8 = vector.broadcast %7 : vector<1x8x1xf32> to vector<8x8x4xf32>
    %9 = arith.addf %5, %8 : vector<8x8x4xf32>
    %c0_4 = arith.constant 0 : index
    %c0_5 = arith.constant 0 : index
    %10 = vector.load %arg3[%c0_4, %c0_5] : memref<4x32xf32, #tpu.memory_space<vmem>>, vector<4x32xf32>
    %11 = vector.shape_cast %9 : vector<8x8x4xf32> to vector<64x4xf32>
    %cst = arith.constant dense<0.000000e+00> : vector<64x32xf32>
    %12 = tpu.matmul %11, %10, %cst {dimension_numbers = #tpu.dot_dimension_numbers<[1], [0], [0], [1], [0, 0, 1, 1], [], []>} : vector<64x4xf32>, vector<4x32xf32>, vector<64x32xf32> -> vector<64x32xf32>
    %c0_6 = arith.constant 0 : index
    %c0_7 = arith.constant 0 : index
    %13 = vector.load %arg4[%c0_6, %c0_7] : memref<1x32xf32, #tpu.memory_space<vmem>>, vector<1x32xf32>
    %14 = vector.broadcast %13 : vector<1x32xf32> to vector<64x32xf32>
    %15 = arith.addf %12, %14 : vector<64x32xf32>
    %16 = vector.shape_cast %15 : vector<64x32xf32> to vector<8x8x32xf32>
    %17 = vector.extract_strided_slice %0 {offsets = [0, 2], sizes = [8, 1], strides = [1, 1]} : vector<8x16xf32> to vector<8x1xf32>
    %18 = vector.shape_cast %17 : vector<8x1xf32> to vector<1x8x1xf32>
    %19 = vector.extract_strided_slice %0 {offsets = [0, 3], sizes = [8, 1], strides = [1, 1]} : vector<8x16xf32> to vector<8x1xf32>
    %20 = vector.shape_cast %19 : vector<8x1xf32> to vector<1x8x1xf32>
    %21 = vector.extract_strided_slice %0 {offsets = [0, 4], sizes = [8, 1], strides = [1, 1]} : vector<8x16xf32> to vector<8x1xf32>
    %22 = vector.shape_cast %21 : vector<8x1xf32> to vector<1x8x1xf32>
    %23 = vector.extract_strided_slice %0 {offsets = [0, 5], sizes = [8, 1], strides = [1, 1]} : vector<8x16xf32> to vector<8x1xf32>
    %24 = vector.shape_cast %23 : vector<8x1xf32> to vector<1x8x1xf32>
    %25 = vector.broadcast %18 : vector<1x8x1xf32> to vector<8x8x32xf32>
    %26 = arith.mulf %16, %25 : vector<8x8x32xf32>
    %27 = vector.broadcast %20 : vector<1x8x1xf32> to vector<8x8x32xf32>
    %28 = arith.addf %26, %27 : vector<8x8x32xf32>
    %c0_8 = arith.constant 0 : index
    %c0_9 = arith.constant 0 : index
    %29 = vector.load %arg5[%c0_8, %c0_9] : memref<16x8xf32, #tpu.memory_space<vmem>>, vector<16x8xf32>
    %c0_10 = arith.constant 0 : index
    %c0_11 = arith.constant 0 : index
    %30 = vector.load %arg7[%c0_10, %c0_11] : memref<8x16xf32, #tpu.memory_space<vmem>>, vector<8x16xf32>
    %31 = vector.extract_strided_slice %29 {offsets = [0, 0], sizes = [16, 1], strides = [1, 1]} : vector<16x8xf32> to vector<16x1xf32>
    %32 = vector.shape_cast %31 : vector<16x1xf32> to vector<16x1x1xf32>
    %33 = vector.extract_strided_slice %28 {offsets = [0, 0, 0], sizes = [1, 8, 32], strides = [1, 1, 1]} : vector<8x8x32xf32> to vector<1x8x32xf32>
    %34 = vector.shape_cast %33 : vector<1x8x32xf32> to vector<8x32xf32>
    %35 = vector.shape_cast %34 : vector<8x32xf32> to vector<1x8x32xf32>
    %36 = vector.broadcast %32 : vector<16x1x1xf32> to vector<16x8x32xf32>
    %37 = vector.broadcast %35 : vector<1x8x32xf32> to vector<16x8x32xf32>
    %38 = arith.mulf %36, %37 : vector<16x8x32xf32>
    %39 = vector.extract_strided_slice %29 {offsets = [0, 1], sizes = [16, 1], strides = [1, 1]} : vector<16x8xf32> to vector<16x1xf32>
    %40 = vector.shape_cast %39 : vector<16x1xf32> to vector<16x1x1xf32>
    %41 = vector.extract_strided_slice %28 {offsets = [1, 0, 0], sizes = [1, 8, 32], strides = [1, 1, 1]} : vector<8x8x32xf32> to vector<1x8x32xf32>
    %42 = vector.shape_cast %41 : vector<1x8x32xf32> to vector<8x32xf32>
    %43 = vector.shape_cast %42 : vector<8x32xf32> to vector<1x8x32xf32>
    %44 = vector.broadcast %40 : vector<16x1x1xf32> to vector<16x8x32xf32>
    %45 = vector.broadcast %43 : vector<1x8x32xf32> to vector<16x8x32xf32>
    %46 = arith.mulf %44, %45 : vector<16x8x32xf32>
    %47 = arith.addf %38, %46 : vector<16x8x32xf32>
    %48 = vector.extract_strided_slice %29 {offsets = [0, 2], sizes = [16, 1], strides = [1, 1]} : vector<16x8xf32> to vector<16x1xf32>
    %49 = vector.shape_cast %48 : vector<16x1xf32> to vector<16x1x1xf32>
    %50 = vector.extract_strided_slice %28 {offsets = [2, 0, 0], sizes = [1, 8, 32], strides = [1, 1, 1]} : vector<8x8x32xf32> to vector<1x8x32xf32>
    %51 = vector.shape_cast %50 : vector<1x8x32xf32> to vector<8x32xf32>
    %52 = vector.shape_cast %51 : vector<8x32xf32> to vector<1x8x32xf32>
    %53 = vector.broadcast %49 : vector<16x1x1xf32> to vector<16x8x32xf32>
    %54 = vector.broadcast %52 : vector<1x8x32xf32> to vector<16x8x32xf32>
    %55 = arith.mulf %53, %54 : vector<16x8x32xf32>
    %56 = arith.addf %47, %55 : vector<16x8x32xf32>
    %57 = vector.extract_strided_slice %29 {offsets = [0, 3], sizes = [16, 1], strides = [1, 1]} : vector<16x8xf32> to vector<16x1xf32>
    %58 = vector.shape_cast %57 : vector<16x1xf32> to vector<16x1x1xf32>
    %59 = vector.extract_strided_slice %28 {offsets = [3, 0, 0], sizes = [1, 8, 32], strides = [1, 1, 1]} : vector<8x8x32xf32> to vector<1x8x32xf32>
    %60 = vector.shape_cast %59 : vector<1x8x32xf32> to vector<8x32xf32>
    %61 = vector.shape_cast %60 : vector<8x32xf32> to vector<1x8x32xf32>
    %62 = vector.broadcast %58 : vector<16x1x1xf32> to vector<16x8x32xf32>
    %63 = vector.broadcast %61 : vector<1x8x32xf32> to vector<16x8x32xf32>
    %64 = arith.mulf %62, %63 : vector<16x8x32xf32>
    %65 = arith.addf %56, %64 : vector<16x8x32xf32>
    %66 = vector.extract_strided_slice %29 {offsets = [0, 4], sizes = [16, 1], strides = [1, 1]} : vector<16x8xf32> to vector<16x1xf32>
    %67 = vector.shape_cast %66 : vector<16x1xf32> to vector<16x1x1xf32>
    %68 = vector.extract_strided_slice %28 {offsets = [4, 0, 0], sizes = [1, 8, 32], strides = [1, 1, 1]} : vector<8x8x32xf32> to vector<1x8x32xf32>
    %69 = vector.shape_cast %68 : vector<1x8x32xf32> to vector<8x32xf32>
    %70 = vector.shape_cast %69 : vector<8x32xf32> to vector<1x8x32xf32>
    %71 = vector.broadcast %67 : vector<16x1x1xf32> to vector<16x8x32xf32>
    %72 = vector.broadcast %70 : vector<1x8x32xf32> to vector<16x8x32xf32>
    %73 = arith.mulf %71, %72 : vector<16x8x32xf32>
    %74 = arith.addf %65, %73 : vector<16x8x32xf32>
    %75 = vector.extract_strided_slice %29 {offsets = [0, 5], sizes = [16, 1], strides = [1, 1]} : vector<16x8xf32> to vector<16x1xf32>
    %76 = vector.shape_cast %75 : vector<16x1xf32> to vector<16x1x1xf32>
    %77 = vector.extract_strided_slice %28 {offsets = [5, 0, 0], sizes = [1, 8, 32], strides = [1, 1, 1]} : vector<8x8x32xf32> to vector<1x8x32xf32>
    %78 = vector.shape_cast %77 : vector<1x8x32xf32> to vector<8x32xf32>
    %79 = vector.shape_cast %78 : vector<8x32xf32> to vector<1x8x32xf32>
    %80 = vector.broadcast %76 : vector<16x1x1xf32> to vector<16x8x32xf32>
    %81 = vector.broadcast %79 : vector<1x8x32xf32> to vector<16x8x32xf32>
    %82 = arith.mulf %80, %81 : vector<16x8x32xf32>
    %83 = arith.addf %74, %82 : vector<16x8x32xf32>
    %84 = vector.extract_strided_slice %29 {offsets = [0, 6], sizes = [16, 1], strides = [1, 1]} : vector<16x8xf32> to vector<16x1xf32>
    %85 = vector.shape_cast %84 : vector<16x1xf32> to vector<16x1x1xf32>
    %86 = vector.extract_strided_slice %28 {offsets = [6, 0, 0], sizes = [1, 8, 32], strides = [1, 1, 1]} : vector<8x8x32xf32> to vector<1x8x32xf32>
    %87 = vector.shape_cast %86 : vector<1x8x32xf32> to vector<8x32xf32>
    %88 = vector.shape_cast %87 : vector<8x32xf32> to vector<1x8x32xf32>
    %89 = vector.broadcast %85 : vector<16x1x1xf32> to vector<16x8x32xf32>
    %90 = vector.broadcast %88 : vector<1x8x32xf32> to vector<16x8x32xf32>
    %91 = arith.mulf %89, %90 : vector<16x8x32xf32>
    %92 = arith.addf %83, %91 : vector<16x8x32xf32>
    %93 = vector.extract_strided_slice %29 {offsets = [0, 7], sizes = [16, 1], strides = [1, 1]} : vector<16x8xf32> to vector<16x1xf32>
    %94 = vector.shape_cast %93 : vector<16x1xf32> to vector<16x1x1xf32>
    %95 = vector.extract_strided_slice %28 {offsets = [7, 0, 0], sizes = [1, 8, 32], strides = [1, 1, 1]} : vector<8x8x32xf32> to vector<1x8x32xf32>
    %96 = vector.shape_cast %95 : vector<1x8x32xf32> to vector<8x32xf32>
    %97 = vector.shape_cast %96 : vector<8x32xf32> to vector<1x8x32xf32>
    %98 = vector.broadcast %94 : vector<16x1x1xf32> to vector<16x8x32xf32>
    %99 = vector.broadcast %97 : vector<1x8x32xf32> to vector<16x8x32xf32>
    %100 = arith.mulf %98, %99 : vector<16x8x32xf32>
    %101 = arith.addf %92, %100 : vector<16x8x32xf32>
    %c0_12 = arith.constant 0 : index
    %c0_13 = arith.constant 0 : index
    %c0_14 = arith.constant 0 : index
    %102 = vector.load %arg6[%c0_12, %c0_13, %c0_14] : memref<16x1x1xf32, #tpu.memory_space<vmem>>, vector<16x1x1xf32>
    %103 = vector.broadcast %102 : vector<16x1x1xf32> to vector<16x8x32xf32>
    %104 = arith.addf %101, %103 : vector<16x8x32xf32>
    %cst_15 = arith.constant 5.000000e-01 : f32
    %105 = vector.broadcast %cst_15 : f32 to vector<16x8x32xf32>
    %106 = arith.mulf %105, %104 : vector<16x8x32xf32>
    %cst_16 = arith.constant 0.707106769 : f32
    %107 = vector.broadcast %cst_16 : f32 to vector<16x8x32xf32>
    %108 = arith.mulf %104, %107 : vector<16x8x32xf32>
    %109 = math.erf %108 : vector<16x8x32xf32>
    %cst_17 = arith.constant 1.000000e+00 : f32
    %110 = vector.broadcast %cst_17 : f32 to vector<16x8x32xf32>
    %111 = arith.addf %110, %109 : vector<16x8x32xf32>
    %112 = arith.mulf %106, %111 : vector<16x8x32xf32>
    %113 = vector.extract_strided_slice %30 {offsets = [0, 0], sizes = [8, 1], strides = [1, 1]} : vector<8x16xf32> to vector<8x1xf32>
    %114 = vector.shape_cast %113 : vector<8x1xf32> to vector<8x1x1xf32>
    %115 = vector.extract_strided_slice %112 {offsets = [0, 0, 0], sizes = [1, 8, 32], strides = [1, 1, 1]} : vector<16x8x32xf32> to vector<1x8x32xf32>
    %116 = vector.shape_cast %115 : vector<1x8x32xf32> to vector<8x32xf32>
    %117 = vector.shape_cast %116 : vector<8x32xf32> to vector<1x8x32xf32>
    %118 = vector.broadcast %114 : vector<8x1x1xf32> to vector<8x8x32xf32>
    %119 = vector.broadcast %117 : vector<1x8x32xf32> to vector<8x8x32xf32>
    %120 = arith.mulf %118, %119 : vector<8x8x32xf32>
    %121 = vector.extract_strided_slice %30 {offsets = [0, 1], sizes = [8, 1], strides = [1, 1]} : vector<8x16xf32> to vector<8x1xf32>
    %122 = vector.shape_cast %121 : vector<8x1xf32> to vector<8x1x1xf32>
    %123 = vector.extract_strided_slice %112 {offsets = [1, 0, 0], sizes = [1, 8, 32], strides = [1, 1, 1]} : vector<16x8x32xf32> to vector<1x8x32xf32>
    %124 = vector.shape_cast %123 : vector<1x8x32xf32> to vector<8x32xf32>
    %125 = vector.shape_cast %124 : vector<8x32xf32> to vector<1x8x32xf32>
    %126 = vector.broadcast %122 : vector<8x1x1xf32> to vector<8x8x32xf32>
    %127 = vector.broadcast %125 : vector<1x8x32xf32> to vector<8x8x32xf32>
    %128 = arith.mulf %126, %127 : vector<8x8x32xf32>
    %129 = arith.addf %120, %128 : vector<8x8x32xf32>
    %130 = vector.extract_strided_slice %30 {offsets = [0, 2], sizes = [8, 1], strides = [1, 1]} : vector<8x16xf32> to vector<8x1xf32>
    %131 = vector.shape_cast %130 : vector<8x1xf32> to vector<8x1x1xf32>
    %132 = vector.extract_strided_slice %112 {offsets = [2, 0, 0], sizes = [1, 8, 32], strides = [1, 1, 1]} : vector<16x8x32xf32> to vector<1x8x32xf32>
    %133 = vector.shape_cast %132 : vector<1x8x32xf32> to vector<8x32xf32>
    %134 = vector.shape_cast %133 : vector<8x32xf32> to vector<1x8x32xf32>
    %135 = vector.broadcast %131 : vector<8x1x1xf32> to vector<8x8x32xf32>
    %136 = vector.broadcast %134 : vector<1x8x32xf32> to vector<8x8x32xf32>
    %137 = arith.mulf %135, %136 : vector<8x8x32xf32>
    %138 = arith.addf %129, %137 : vector<8x8x32xf32>
    %139 = vector.extract_strided_slice %30 {offsets = [0, 3], sizes = [8, 1], strides = [1, 1]} : vector<8x16xf32> to vector<8x1xf32>
    %140 = vector.shape_cast %139 : vector<8x1xf32> to vector<8x1x1xf32>
    %141 = vector.extract_strided_slice %112 {offsets = [3, 0, 0], sizes = [1, 8, 32], strides = [1, 1, 1]} : vector<16x8x32xf32> to vector<1x8x32xf32>
    %142 = vector.shape_cast %141 : vector<1x8x32xf32> to vector<8x32xf32>
    %143 = vector.shape_cast %142 : vector<8x32xf32> to vector<1x8x32xf32>
    %144 = vector.broadcast %140 : vector<8x1x1xf32> to vector<8x8x32xf32>
    %145 = vector.broadcast %143 : vector<1x8x32xf32> to vector<8x8x32xf32>
    %146 = arith.mulf %144, %145 : vector<8x8x32xf32>
    %147 = arith.addf %138, %146 : vector<8x8x32xf32>
    %148 = vector.extract_strided_slice %30 {offsets = [0, 4], sizes = [8, 1], strides = [1, 1]} : vector<8x16xf32> to vector<8x1xf32>
    %149 = vector.shape_cast %148 : vector<8x1xf32> to vector<8x1x1xf32>
    %150 = vector.extract_strided_slice %112 {offsets = [4, 0, 0], sizes = [1, 8, 32], strides = [1, 1, 1]} : vector<16x8x32xf32> to vector<1x8x32xf32>
    %151 = vector.shape_cast %150 : vector<1x8x32xf32> to vector<8x32xf32>
    %152 = vector.shape_cast %151 : vector<8x32xf32> to vector<1x8x32xf32>
    %153 = vector.broadcast %149 : vector<8x1x1xf32> to vector<8x8x32xf32>
    %154 = vector.broadcast %152 : vector<1x8x32xf32> to vector<8x8x32xf32>
    %155 = arith.mulf %153, %154 : vector<8x8x32xf32>
    %156 = arith.addf %147, %155 : vector<8x8x32xf32>
    %157 = vector.extract_strided_slice %30 {offsets = [0, 5], sizes = [8, 1], strides = [1, 1]} : vector<8x16xf32> to vector<8x1xf32>
    %158 = vector.shape_cast %157 : vector<8x1xf32> to vector<8x1x1xf32>
    %159 = vector.extract_strided_slice %112 {offsets = [5, 0, 0], sizes = [1, 8, 32], strides = [1, 1, 1]} : vector<16x8x32xf32> to vector<1x8x32xf32>
    %160 = vector.shape_cast %159 : vector<1x8x32xf32> to vector<8x32xf32>
    %161 = vector.shape_cast %160 : vector<8x32xf32> to vector<1x8x32xf32>
    %162 = vector.broadcast %158 : vector<8x1x1xf32> to vector<8x8x32xf32>
    %163 = vector.broadcast %161 : vector<1x8x32xf32> to vector<8x8x32xf32>
    %164 = arith.mulf %162, %163 : vector<8x8x32xf32>
    %165 = arith.addf %156, %164 : vector<8x8x32xf32>
    %166 = vector.extract_strided_slice %30 {offsets = [0, 6], sizes = [8, 1], strides = [1, 1]} : vector<8x16xf32> to vector<8x1xf32>
    %167 = vector.shape_cast %166 : vector<8x1xf32> to vector<8x1x1xf32>
    %168 = vector.extract_strided_slice %112 {offsets = [6, 0, 0], sizes = [1, 8, 32], strides = [1, 1, 1]} : vector<16x8x32xf32> to vector<1x8x32xf32>
    %169 = vector.shape_cast %168 : vector<1x8x32xf32> to vector<8x32xf32>
    %170 = vector.shape_cast %169 : vector<8x32xf32> to vector<1x8x32xf32>
    %171 = vector.broadcast %167 : vector<8x1x1xf32> to vector<8x8x32xf32>
    %172 = vector.broadcast %170 : vector<1x8x32xf32> to vector<8x8x32xf32>
    %173 = arith.mulf %171, %172 : vector<8x8x32xf32>
    %174 = arith.addf %165, %173 : vector<8x8x32xf32>
    %175 = vector.extract_strided_slice %30 {offsets = [0, 7], sizes = [8, 1], strides = [1, 1]} : vector<8x16xf32> to vector<8x1xf32>
    %176 = vector.shape_cast %175 : vector<8x1xf32> to vector<8x1x1xf32>
    %177 = vector.extract_strided_slice %112 {offsets = [7, 0, 0], sizes = [1, 8, 32], strides = [1, 1, 1]} : vector<16x8x32xf32> to vector<1x8x32xf32>
    %178 = vector.shape_cast %177 : vector<1x8x32xf32> to vector<8x32xf32>
    %179 = vector.shape_cast %178 : vector<8x32xf32> to vector<1x8x32xf32>
    %180 = vector.broadcast %176 : vector<8x1x1xf32> to vector<8x8x32xf32>
    %181 = vector.broadcast %179 : vector<1x8x32xf32> to vector<8x8x32xf32>
    %182 = arith.mulf %180, %181 : vector<8x8x32xf32>
    %183 = arith.addf %174, %182 : vector<8x8x32xf32>
    %184 = vector.extract_strided_slice %30 {offsets = [0, 8], sizes = [8, 1], strides = [1, 1]} : vector<8x16xf32> to vector<8x1xf32>
    %185 = vector.shape_cast %184 : vector<8x1xf32> to vector<8x1x1xf32>
    %186 = vector.extract_strided_slice %112 {offsets = [8, 0, 0], sizes = [1, 8, 32], strides = [1, 1, 1]} : vector<16x8x32xf32> to vector<1x8x32xf32>
    %187 = vector.shape_cast %186 : vector<1x8x32xf32> to vector<8x32xf32>
    %188 = vector.shape_cast %187 : vector<8x32xf32> to vector<1x8x32xf32>
    %189 = vector.broadcast %185 : vector<8x1x1xf32> to vector<8x8x32xf32>
    %190 = vector.broadcast %188 : vector<1x8x32xf32> to vector<8x8x32xf32>
    %191 = arith.mulf %189, %190 : vector<8x8x32xf32>
    %192 = arith.addf %183, %191 : vector<8x8x32xf32>
    %193 = vector.extract_strided_slice %30 {offsets = [0, 9], sizes = [8, 1], strides = [1, 1]} : vector<8x16xf32> to vector<8x1xf32>
    %194 = vector.shape_cast %193 : vector<8x1xf32> to vector<8x1x1xf32>
    %195 = vector.extract_strided_slice %112 {offsets = [9, 0, 0], sizes = [1, 8, 32], strides = [1, 1, 1]} : vector<16x8x32xf32> to vector<1x8x32xf32>
    %196 = vector.shape_cast %195 : vector<1x8x32xf32> to vector<8x32xf32>
    %197 = vector.shape_cast %196 : vector<8x32xf32> to vector<1x8x32xf32>
    %198 = vector.broadcast %194 : vector<8x1x1xf32> to vector<8x8x32xf32>
    %199 = vector.broadcast %197 : vector<1x8x32xf32> to vector<8x8x32xf32>
    %200 = arith.mulf %198, %199 : vector<8x8x32xf32>
    %201 = arith.addf %192, %200 : vector<8x8x32xf32>
    %202 = vector.extract_strided_slice %30 {offsets = [0, 10], sizes = [8, 1], strides = [1, 1]} : vector<8x16xf32> to vector<8x1xf32>
    %203 = vector.shape_cast %202 : vector<8x1xf32> to vector<8x1x1xf32>
    %204 = vector.extract_strided_slice %112 {offsets = [10, 0, 0], sizes = [1, 8, 32], strides = [1, 1, 1]} : vector<16x8x32xf32> to vector<1x8x32xf32>
    %205 = vector.shape_cast %204 : vector<1x8x32xf32> to vector<8x32xf32>
    %206 = vector.shape_cast %205 : vector<8x32xf32> to vector<1x8x32xf32>
    %207 = vector.broadcast %203 : vector<8x1x1xf32> to vector<8x8x32xf32>
    %208 = vector.broadcast %206 : vector<1x8x32xf32> to vector<8x8x32xf32>
    %209 = arith.mulf %207, %208 : vector<8x8x32xf32>
    %210 = arith.addf %201, %209 : vector<8x8x32xf32>
    %211 = vector.extract_strided_slice %30 {offsets = [0, 11], sizes = [8, 1], strides = [1, 1]} : vector<8x16xf32> to vector<8x1xf32>
    %212 = vector.shape_cast %211 : vector<8x1xf32> to vector<8x1x1xf32>
    %213 = vector.extract_strided_slice %112 {offsets = [11, 0, 0], sizes = [1, 8, 32], strides = [1, 1, 1]} : vector<16x8x32xf32> to vector<1x8x32xf32>
    %214 = vector.shape_cast %213 : vector<1x8x32xf32> to vector<8x32xf32>
    %215 = vector.shape_cast %214 : vector<8x32xf32> to vector<1x8x32xf32>
    %216 = vector.broadcast %212 : vector<8x1x1xf32> to vector<8x8x32xf32>
    %217 = vector.broadcast %215 : vector<1x8x32xf32> to vector<8x8x32xf32>
    %218 = arith.mulf %216, %217 : vector<8x8x32xf32>
    %219 = arith.addf %210, %218 : vector<8x8x32xf32>
    %220 = vector.extract_strided_slice %30 {offsets = [0, 12], sizes = [8, 1], strides = [1, 1]} : vector<8x16xf32> to vector<8x1xf32>
    %221 = vector.shape_cast %220 : vector<8x1xf32> to vector<8x1x1xf32>
    %222 = vector.extract_strided_slice %112 {offsets = [12, 0, 0], sizes = [1, 8, 32], strides = [1, 1, 1]} : vector<16x8x32xf32> to vector<1x8x32xf32>
    %223 = vector.shape_cast %222 : vector<1x8x32xf32> to vector<8x32xf32>
    %224 = vector.shape_cast %223 : vector<8x32xf32> to vector<1x8x32xf32>
    %225 = vector.broadcast %221 : vector<8x1x1xf32> to vector<8x8x32xf32>
    %226 = vector.broadcast %224 : vector<1x8x32xf32> to vector<8x8x32xf32>
    %227 = arith.mulf %225, %226 : vector<8x8x32xf32>
    %228 = arith.addf %219, %227 : vector<8x8x32xf32>
    %229 = vector.extract_strided_slice %30 {offsets = [0, 13], sizes = [8, 1], strides = [1, 1]} : vector<8x16xf32> to vector<8x1xf32>
    %230 = vector.shape_cast %229 : vector<8x1xf32> to vector<8x1x1xf32>
    %231 = vector.extract_strided_slice %112 {offsets = [13, 0, 0], sizes = [1, 8, 32], strides = [1, 1, 1]} : vector<16x8x32xf32> to vector<1x8x32xf32>
    %232 = vector.shape_cast %231 : vector<1x8x32xf32> to vector<8x32xf32>
    %233 = vector.shape_cast %232 : vector<8x32xf32> to vector<1x8x32xf32>
    %234 = vector.broadcast %230 : vector<8x1x1xf32> to vector<8x8x32xf32>
    %235 = vector.broadcast %233 : vector<1x8x32xf32> to vector<8x8x32xf32>
    %236 = arith.mulf %234, %235 : vector<8x8x32xf32>
    %237 = arith.addf %228, %236 : vector<8x8x32xf32>
    %238 = vector.extract_strided_slice %30 {offsets = [0, 14], sizes = [8, 1], strides = [1, 1]} : vector<8x16xf32> to vector<8x1xf32>
    %239 = vector.shape_cast %238 : vector<8x1xf32> to vector<8x1x1xf32>
    %240 = vector.extract_strided_slice %112 {offsets = [14, 0, 0], sizes = [1, 8, 32], strides = [1, 1, 1]} : vector<16x8x32xf32> to vector<1x8x32xf32>
    %241 = vector.shape_cast %240 : vector<1x8x32xf32> to vector<8x32xf32>
    %242 = vector.shape_cast %241 : vector<8x32xf32> to vector<1x8x32xf32>
    %243 = vector.broadcast %239 : vector<8x1x1xf32> to vector<8x8x32xf32>
    %244 = vector.broadcast %242 : vector<1x8x32xf32> to vector<8x8x32xf32>
    %245 = arith.mulf %243, %244 : vector<8x8x32xf32>
    %246 = arith.addf %237, %245 : vector<8x8x32xf32>
    %247 = vector.extract_strided_slice %30 {offsets = [0, 15], sizes = [8, 1], strides = [1, 1]} : vector<8x16xf32> to vector<8x1xf32>
    %248 = vector.shape_cast %247 : vector<8x1xf32> to vector<8x1x1xf32>
    %249 = vector.extract_strided_slice %112 {offsets = [15, 0, 0], sizes = [1, 8, 32], strides = [1, 1, 1]} : vector<16x8x32xf32> to vector<1x8x32xf32>
    %250 = vector.shape_cast %249 : vector<1x8x32xf32> to vector<8x32xf32>
    %251 = vector.shape_cast %250 : vector<8x32xf32> to vector<1x8x32xf32>
    %252 = vector.broadcast %248 : vector<8x1x1xf32> to vector<8x8x32xf32>
    %253 = vector.broadcast %251 : vector<1x8x32xf32> to vector<8x8x32xf32>
    %254 = arith.mulf %252, %253 : vector<8x8x32xf32>
    %255 = arith.addf %246, %254 : vector<8x8x32xf32>
    %c0_18 = arith.constant 0 : index
    %c0_19 = arith.constant 0 : index
    %c0_20 = arith.constant 0 : index
    %256 = vector.load %arg8[%c0_18, %c0_19, %c0_20] : memref<8x1x1xf32, #tpu.memory_space<vmem>>, vector<8x1x1xf32>
    %257 = vector.broadcast %256 : vector<8x1x1xf32> to vector<8x8x32xf32>
    %258 = arith.addf %255, %257 : vector<8x8x32xf32>
    %259 = vector.broadcast %22 : vector<1x8x1xf32> to vector<8x8x32xf32>
    %260 = arith.mulf %258, %259 : vector<8x8x32xf32>
    %261 = vector.broadcast %24 : vector<1x8x1xf32> to vector<8x8x32xf32>
    %262 = arith.addf %260, %261 : vector<8x8x32xf32>
    %c0_21 = arith.constant 0 : index
    %c0_22 = arith.constant 0 : index
    %263 = vector.load %arg9[%c0_21, %c0_22] : memref<32x64xf32, #tpu.memory_space<vmem>>, vector<32x64xf32>
    %264 = vector.shape_cast %262 : vector<8x8x32xf32> to vector<64x32xf32>
    %cst_23 = arith.constant dense<0.000000e+00> : vector<64x64xf32>
    %265 = tpu.matmul %264, %263, %cst_23 {dimension_numbers = #tpu.dot_dimension_numbers<[1], [0], [0], [1], [0, 0, 1, 1], [], []>} : vector<64x32xf32>, vector<32x64xf32>, vector<64x64xf32> -> vector<64x64xf32>
    %c0_24 = arith.constant 0 : index
    %c0_25 = arith.constant 0 : index
    %266 = vector.load %arg10[%c0_24, %c0_25] : memref<1x64xf32, #tpu.memory_space<vmem>>, vector<1x64xf32>
    %267 = vector.broadcast %266 : vector<1x64xf32> to vector<64x64xf32>
    %268 = arith.addf %265, %267 : vector<64x64xf32>
    %269 = vector.shape_cast %268 : vector<64x64xf32> to vector<8x8x64xf32>
    %cst_26 = arith.constant 5.000000e-01 : f32
    %270 = vector.broadcast %cst_26 : f32 to vector<8x8x64xf32>
    %271 = arith.mulf %270, %269 : vector<8x8x64xf32>
    %cst_27 = arith.constant 0.707106769 : f32
    %272 = vector.broadcast %cst_27 : f32 to vector<8x8x64xf32>
    %273 = arith.mulf %269, %272 : vector<8x8x64xf32>
    %274 = math.erf %273 : vector<8x8x64xf32>
    %cst_28 = arith.constant 1.000000e+00 : f32
    %275 = vector.broadcast %cst_28 : f32 to vector<8x8x64xf32>
    %276 = arith.addf %275, %274 : vector<8x8x64xf32>
    %277 = arith.mulf %271, %276 : vector<8x8x64xf32>
    %c0_29 = arith.constant 0 : index
    %c0_30 = arith.constant 0 : index
    %278 = vector.load %arg11[%c0_29, %c0_30] : memref<64x32xf32, #tpu.memory_space<vmem>>, vector<64x32xf32>
    %279 = vector.shape_cast %277 : vector<8x8x64xf32> to vector<64x64xf32>
    %cst_31 = arith.constant dense<0.000000e+00> : vector<64x32xf32>
    %280 = tpu.matmul %279, %278, %cst_31 {dimension_numbers = #tpu.dot_dimension_numbers<[1], [0], [0], [1], [0, 0, 1, 1], [], []>} : vector<64x64xf32>, vector<64x32xf32>, vector<64x32xf32> -> vector<64x32xf32>
    %c0_32 = arith.constant 0 : index
    %c0_33 = arith.constant 0 : index
    %281 = vector.load %arg12[%c0_32, %c0_33] : memref<1x32xf32, #tpu.memory_space<vmem>>, vector<1x32xf32>
    %282 = vector.broadcast %281 : vector<1x32xf32> to vector<64x32xf32>
    %283 = arith.addf %280, %282 : vector<64x32xf32>
    %284 = vector.shape_cast %283 : vector<64x32xf32> to vector<8x8x32xf32>
    %285 = arith.addf %262, %284 : vector<8x8x32xf32>
    %286 = vector.extract_strided_slice %0 {offsets = [0, 6], sizes = [8, 1], strides = [1, 1]} : vector<8x16xf32> to vector<8x1xf32>
    %287 = vector.shape_cast %286 : vector<8x1xf32> to vector<1x8x1xf32>
    %288 = vector.extract_strided_slice %0 {offsets = [0, 7], sizes = [8, 1], strides = [1, 1]} : vector<8x16xf32> to vector<8x1xf32>
    %289 = vector.shape_cast %288 : vector<8x1xf32> to vector<1x8x1xf32>
    %290 = vector.extract_strided_slice %0 {offsets = [0, 8], sizes = [8, 1], strides = [1, 1]} : vector<8x16xf32> to vector<8x1xf32>
    %291 = vector.shape_cast %290 : vector<8x1xf32> to vector<1x8x1xf32>
    %292 = vector.extract_strided_slice %0 {offsets = [0, 9], sizes = [8, 1], strides = [1, 1]} : vector<8x16xf32> to vector<8x1xf32>
    %293 = vector.shape_cast %292 : vector<8x1xf32> to vector<1x8x1xf32>
    %294 = vector.broadcast %287 : vector<1x8x1xf32> to vector<8x8x32xf32>
    %295 = arith.mulf %285, %294 : vector<8x8x32xf32>
    %296 = vector.broadcast %289 : vector<1x8x1xf32> to vector<8x8x32xf32>
    %297 = arith.addf %295, %296 : vector<8x8x32xf32>
    %c0_34 = arith.constant 0 : index
    %c0_35 = arith.constant 0 : index
    %298 = vector.load %arg13[%c0_34, %c0_35] : memref<16x8xf32, #tpu.memory_space<vmem>>, vector<16x8xf32>
    %c0_36 = arith.constant 0 : index
    %c0_37 = arith.constant 0 : index
    %299 = vector.load %arg15[%c0_36, %c0_37] : memref<8x16xf32, #tpu.memory_space<vmem>>, vector<8x16xf32>
    %300 = vector.extract_strided_slice %298 {offsets = [0, 0], sizes = [16, 1], strides = [1, 1]} : vector<16x8xf32> to vector<16x1xf32>
    %301 = vector.shape_cast %300 : vector<16x1xf32> to vector<16x1x1xf32>
    %302 = vector.extract_strided_slice %297 {offsets = [0, 0, 0], sizes = [1, 8, 32], strides = [1, 1, 1]} : vector<8x8x32xf32> to vector<1x8x32xf32>
    %303 = vector.shape_cast %302 : vector<1x8x32xf32> to vector<8x32xf32>
    %304 = vector.shape_cast %303 : vector<8x32xf32> to vector<1x8x32xf32>
    %305 = vector.broadcast %301 : vector<16x1x1xf32> to vector<16x8x32xf32>
    %306 = vector.broadcast %304 : vector<1x8x32xf32> to vector<16x8x32xf32>
    %307 = arith.mulf %305, %306 : vector<16x8x32xf32>
    %308 = vector.extract_strided_slice %298 {offsets = [0, 1], sizes = [16, 1], strides = [1, 1]} : vector<16x8xf32> to vector<16x1xf32>
    %309 = vector.shape_cast %308 : vector<16x1xf32> to vector<16x1x1xf32>
    %310 = vector.extract_strided_slice %297 {offsets = [1, 0, 0], sizes = [1, 8, 32], strides = [1, 1, 1]} : vector<8x8x32xf32> to vector<1x8x32xf32>
    %311 = vector.shape_cast %310 : vector<1x8x32xf32> to vector<8x32xf32>
    %312 = vector.shape_cast %311 : vector<8x32xf32> to vector<1x8x32xf32>
    %313 = vector.broadcast %309 : vector<16x1x1xf32> to vector<16x8x32xf32>
    %314 = vector.broadcast %312 : vector<1x8x32xf32> to vector<16x8x32xf32>
    %315 = arith.mulf %313, %314 : vector<16x8x32xf32>
    %316 = arith.addf %307, %315 : vector<16x8x32xf32>
    %317 = vector.extract_strided_slice %298 {offsets = [0, 2], sizes = [16, 1], strides = [1, 1]} : vector<16x8xf32> to vector<16x1xf32>
    %318 = vector.shape_cast %317 : vector<16x1xf32> to vector<16x1x1xf32>
    %319 = vector.extract_strided_slice %297 {offsets = [2, 0, 0], sizes = [1, 8, 32], strides = [1, 1, 1]} : vector<8x8x32xf32> to vector<1x8x32xf32>
    %320 = vector.shape_cast %319 : vector<1x8x32xf32> to vector<8x32xf32>
    %321 = vector.shape_cast %320 : vector<8x32xf32> to vector<1x8x32xf32>
    %322 = vector.broadcast %318 : vector<16x1x1xf32> to vector<16x8x32xf32>
    %323 = vector.broadcast %321 : vector<1x8x32xf32> to vector<16x8x32xf32>
    %324 = arith.mulf %322, %323 : vector<16x8x32xf32>
    %325 = arith.addf %316, %324 : vector<16x8x32xf32>
    %326 = vector.extract_strided_slice %298 {offsets = [0, 3], sizes = [16, 1], strides = [1, 1]} : vector<16x8xf32> to vector<16x1xf32>
    %327 = vector.shape_cast %326 : vector<16x1xf32> to vector<16x1x1xf32>
    %328 = vector.extract_strided_slice %297 {offsets = [3, 0, 0], sizes = [1, 8, 32], strides = [1, 1, 1]} : vector<8x8x32xf32> to vector<1x8x32xf32>
    %329 = vector.shape_cast %328 : vector<1x8x32xf32> to vector<8x32xf32>
    %330 = vector.shape_cast %329 : vector<8x32xf32> to vector<1x8x32xf32>
    %331 = vector.broadcast %327 : vector<16x1x1xf32> to vector<16x8x32xf32>
    %332 = vector.broadcast %330 : vector<1x8x32xf32> to vector<16x8x32xf32>
    %333 = arith.mulf %331, %332 : vector<16x8x32xf32>
    %334 = arith.addf %325, %333 : vector<16x8x32xf32>
    %335 = vector.extract_strided_slice %298 {offsets = [0, 4], sizes = [16, 1], strides = [1, 1]} : vector<16x8xf32> to vector<16x1xf32>
    %336 = vector.shape_cast %335 : vector<16x1xf32> to vector<16x1x1xf32>
    %337 = vector.extract_strided_slice %297 {offsets = [4, 0, 0], sizes = [1, 8, 32], strides = [1, 1, 1]} : vector<8x8x32xf32> to vector<1x8x32xf32>
    %338 = vector.shape_cast %337 : vector<1x8x32xf32> to vector<8x32xf32>
    %339 = vector.shape_cast %338 : vector<8x32xf32> to vector<1x8x32xf32>
    %340 = vector.broadcast %336 : vector<16x1x1xf32> to vector<16x8x32xf32>
    %341 = vector.broadcast %339 : vector<1x8x32xf32> to vector<16x8x32xf32>
    %342 = arith.mulf %340, %341 : vector<16x8x32xf32>
    %343 = arith.addf %334, %342 : vector<16x8x32xf32>
    %344 = vector.extract_strided_slice %298 {offsets = [0, 5], sizes = [16, 1], strides = [1, 1]} : vector<16x8xf32> to vector<16x1xf32>
    %345 = vector.shape_cast %344 : vector<16x1xf32> to vector<16x1x1xf32>
    %346 = vector.extract_strided_slice %297 {offsets = [5, 0, 0], sizes = [1, 8, 32], strides = [1, 1, 1]} : vector<8x8x32xf32> to vector<1x8x32xf32>
    %347 = vector.shape_cast %346 : vector<1x8x32xf32> to vector<8x32xf32>
    %348 = vector.shape_cast %347 : vector<8x32xf32> to vector<1x8x32xf32>
    %349 = vector.broadcast %345 : vector<16x1x1xf32> to vector<16x8x32xf32>
    %350 = vector.broadcast %348 : vector<1x8x32xf32> to vector<16x8x32xf32>
    %351 = arith.mulf %349, %350 : vector<16x8x32xf32>
    %352 = arith.addf %343, %351 : vector<16x8x32xf32>
    %353 = vector.extract_strided_slice %298 {offsets = [0, 6], sizes = [16, 1], strides = [1, 1]} : vector<16x8xf32> to vector<16x1xf32>
    %354 = vector.shape_cast %353 : vector<16x1xf32> to vector<16x1x1xf32>
    %355 = vector.extract_strided_slice %297 {offsets = [6, 0, 0], sizes = [1, 8, 32], strides = [1, 1, 1]} : vector<8x8x32xf32> to vector<1x8x32xf32>
    %356 = vector.shape_cast %355 : vector<1x8x32xf32> to vector<8x32xf32>
    %357 = vector.shape_cast %356 : vector<8x32xf32> to vector<1x8x32xf32>
    %358 = vector.broadcast %354 : vector<16x1x1xf32> to vector<16x8x32xf32>
    %359 = vector.broadcast %357 : vector<1x8x32xf32> to vector<16x8x32xf32>
    %360 = arith.mulf %358, %359 : vector<16x8x32xf32>
    %361 = arith.addf %352, %360 : vector<16x8x32xf32>
    %362 = vector.extract_strided_slice %298 {offsets = [0, 7], sizes = [16, 1], strides = [1, 1]} : vector<16x8xf32> to vector<16x1xf32>
    %363 = vector.shape_cast %362 : vector<16x1xf32> to vector<16x1x1xf32>
    %364 = vector.extract_strided_slice %297 {offsets = [7, 0, 0], sizes = [1, 8, 32], strides = [1, 1, 1]} : vector<8x8x32xf32> to vector<1x8x32xf32>
    %365 = vector.shape_cast %364 : vector<1x8x32xf32> to vector<8x32xf32>
    %366 = vector.shape_cast %365 : vector<8x32xf32> to vector<1x8x32xf32>
    %367 = vector.broadcast %363 : vector<16x1x1xf32> to vector<16x8x32xf32>
    %368 = vector.broadcast %366 : vector<1x8x32xf32> to vector<16x8x32xf32>
    %369 = arith.mulf %367, %368 : vector<16x8x32xf32>
    %370 = arith.addf %361, %369 : vector<16x8x32xf32>
    %c0_38 = arith.constant 0 : index
    %c0_39 = arith.constant 0 : index
    %c0_40 = arith.constant 0 : index
    %371 = vector.load %arg14[%c0_38, %c0_39, %c0_40] : memref<16x1x1xf32, #tpu.memory_space<vmem>>, vector<16x1x1xf32>
    %372 = vector.broadcast %371 : vector<16x1x1xf32> to vector<16x8x32xf32>
    %373 = arith.addf %370, %372 : vector<16x8x32xf32>
    %cst_41 = arith.constant 5.000000e-01 : f32
    %374 = vector.broadcast %cst_41 : f32 to vector<16x8x32xf32>
    %375 = arith.mulf %374, %373 : vector<16x8x32xf32>
    %cst_42 = arith.constant 0.707106769 : f32
    %376 = vector.broadcast %cst_42 : f32 to vector<16x8x32xf32>
    %377 = arith.mulf %373, %376 : vector<16x8x32xf32>
    %378 = math.erf %377 : vector<16x8x32xf32>
    %cst_43 = arith.constant 1.000000e+00 : f32
    %379 = vector.broadcast %cst_43 : f32 to vector<16x8x32xf32>
    %380 = arith.addf %379, %378 : vector<16x8x32xf32>
    %381 = arith.mulf %375, %380 : vector<16x8x32xf32>
    %382 = vector.extract_strided_slice %299 {offsets = [0, 0], sizes = [8, 1], strides = [1, 1]} : vector<8x16xf32> to vector<8x1xf32>
    %383 = vector.shape_cast %382 : vector<8x1xf32> to vector<8x1x1xf32>
    %384 = vector.extract_strided_slice %381 {offsets = [0, 0, 0], sizes = [1, 8, 32], strides = [1, 1, 1]} : vector<16x8x32xf32> to vector<1x8x32xf32>
    %385 = vector.shape_cast %384 : vector<1x8x32xf32> to vector<8x32xf32>
    %386 = vector.shape_cast %385 : vector<8x32xf32> to vector<1x8x32xf32>
    %387 = vector.broadcast %383 : vector<8x1x1xf32> to vector<8x8x32xf32>
    %388 = vector.broadcast %386 : vector<1x8x32xf32> to vector<8x8x32xf32>
    %389 = arith.mulf %387, %388 : vector<8x8x32xf32>
    %390 = vector.extract_strided_slice %299 {offsets = [0, 1], sizes = [8, 1], strides = [1, 1]} : vector<8x16xf32> to vector<8x1xf32>
    %391 = vector.shape_cast %390 : vector<8x1xf32> to vector<8x1x1xf32>
    %392 = vector.extract_strided_slice %381 {offsets = [1, 0, 0], sizes = [1, 8, 32], strides = [1, 1, 1]} : vector<16x8x32xf32> to vector<1x8x32xf32>
    %393 = vector.shape_cast %392 : vector<1x8x32xf32> to vector<8x32xf32>
    %394 = vector.shape_cast %393 : vector<8x32xf32> to vector<1x8x32xf32>
    %395 = vector.broadcast %391 : vector<8x1x1xf32> to vector<8x8x32xf32>
    %396 = vector.broadcast %394 : vector<1x8x32xf32> to vector<8x8x32xf32>
    %397 = arith.mulf %395, %396 : vector<8x8x32xf32>
    %398 = arith.addf %389, %397 : vector<8x8x32xf32>
    %399 = vector.extract_strided_slice %299 {offsets = [0, 2], sizes = [8, 1], strides = [1, 1]} : vector<8x16xf32> to vector<8x1xf32>
    %400 = vector.shape_cast %399 : vector<8x1xf32> to vector<8x1x1xf32>
    %401 = vector.extract_strided_slice %381 {offsets = [2, 0, 0], sizes = [1, 8, 32], strides = [1, 1, 1]} : vector<16x8x32xf32> to vector<1x8x32xf32>
    %402 = vector.shape_cast %401 : vector<1x8x32xf32> to vector<8x32xf32>
    %403 = vector.shape_cast %402 : vector<8x32xf32> to vector<1x8x32xf32>
    %404 = vector.broadcast %400 : vector<8x1x1xf32> to vector<8x8x32xf32>
    %405 = vector.broadcast %403 : vector<1x8x32xf32> to vector<8x8x32xf32>
    %406 = arith.mulf %404, %405 : vector<8x8x32xf32>
    %407 = arith.addf %398, %406 : vector<8x8x32xf32>
    %408 = vector.extract_strided_slice %299 {offsets = [0, 3], sizes = [8, 1], strides = [1, 1]} : vector<8x16xf32> to vector<8x1xf32>
    %409 = vector.shape_cast %408 : vector<8x1xf32> to vector<8x1x1xf32>
    %410 = vector.extract_strided_slice %381 {offsets = [3, 0, 0], sizes = [1, 8, 32], strides = [1, 1, 1]} : vector<16x8x32xf32> to vector<1x8x32xf32>
    %411 = vector.shape_cast %410 : vector<1x8x32xf32> to vector<8x32xf32>
    %412 = vector.shape_cast %411 : vector<8x32xf32> to vector<1x8x32xf32>
    %413 = vector.broadcast %409 : vector<8x1x1xf32> to vector<8x8x32xf32>
    %414 = vector.broadcast %412 : vector<1x8x32xf32> to vector<8x8x32xf32>
    %415 = arith.mulf %413, %414 : vector<8x8x32xf32>
    %416 = arith.addf %407, %415 : vector<8x8x32xf32>
    %417 = vector.extract_strided_slice %299 {offsets = [0, 4], sizes = [8, 1], strides = [1, 1]} : vector<8x16xf32> to vector<8x1xf32>
    %418 = vector.shape_cast %417 : vector<8x1xf32> to vector<8x1x1xf32>
    %419 = vector.extract_strided_slice %381 {offsets = [4, 0, 0], sizes = [1, 8, 32], strides = [1, 1, 1]} : vector<16x8x32xf32> to vector<1x8x32xf32>
    %420 = vector.shape_cast %419 : vector<1x8x32xf32> to vector<8x32xf32>
    %421 = vector.shape_cast %420 : vector<8x32xf32> to vector<1x8x32xf32>
    %422 = vector.broadcast %418 : vector<8x1x1xf32> to vector<8x8x32xf32>
    %423 = vector.broadcast %421 : vector<1x8x32xf32> to vector<8x8x32xf32>
    %424 = arith.mulf %422, %423 : vector<8x8x32xf32>
    %425 = arith.addf %416, %424 : vector<8x8x32xf32>
    %426 = vector.extract_strided_slice %299 {offsets = [0, 5], sizes = [8, 1], strides = [1, 1]} : vector<8x16xf32> to vector<8x1xf32>
    %427 = vector.shape_cast %426 : vector<8x1xf32> to vector<8x1x1xf32>
    %428 = vector.extract_strided_slice %381 {offsets = [5, 0, 0], sizes = [1, 8, 32], strides = [1, 1, 1]} : vector<16x8x32xf32> to vector<1x8x32xf32>
    %429 = vector.shape_cast %428 : vector<1x8x32xf32> to vector<8x32xf32>
    %430 = vector.shape_cast %429 : vector<8x32xf32> to vector<1x8x32xf32>
    %431 = vector.broadcast %427 : vector<8x1x1xf32> to vector<8x8x32xf32>
    %432 = vector.broadcast %430 : vector<1x8x32xf32> to vector<8x8x32xf32>
    %433 = arith.mulf %431, %432 : vector<8x8x32xf32>
    %434 = arith.addf %425, %433 : vector<8x8x32xf32>
    %435 = vector.extract_strided_slice %299 {offsets = [0, 6], sizes = [8, 1], strides = [1, 1]} : vector<8x16xf32> to vector<8x1xf32>
    %436 = vector.shape_cast %435 : vector<8x1xf32> to vector<8x1x1xf32>
    %437 = vector.extract_strided_slice %381 {offsets = [6, 0, 0], sizes = [1, 8, 32], strides = [1, 1, 1]} : vector<16x8x32xf32> to vector<1x8x32xf32>
    %438 = vector.shape_cast %437 : vector<1x8x32xf32> to vector<8x32xf32>
    %439 = vector.shape_cast %438 : vector<8x32xf32> to vector<1x8x32xf32>
    %440 = vector.broadcast %436 : vector<8x1x1xf32> to vector<8x8x32xf32>
    %441 = vector.broadcast %439 : vector<1x8x32xf32> to vector<8x8x32xf32>
    %442 = arith.mulf %440, %441 : vector<8x8x32xf32>
    %443 = arith.addf %434, %442 : vector<8x8x32xf32>
    %444 = vector.extract_strided_slice %299 {offsets = [0, 7], sizes = [8, 1], strides = [1, 1]} : vector<8x16xf32> to vector<8x1xf32>
    %445 = vector.shape_cast %444 : vector<8x1xf32> to vector<8x1x1xf32>
    %446 = vector.extract_strided_slice %381 {offsets = [7, 0, 0], sizes = [1, 8, 32], strides = [1, 1, 1]} : vector<16x8x32xf32> to vector<1x8x32xf32>
    %447 = vector.shape_cast %446 : vector<1x8x32xf32> to vector<8x32xf32>
    %448 = vector.shape_cast %447 : vector<8x32xf32> to vector<1x8x32xf32>
    %449 = vector.broadcast %445 : vector<8x1x1xf32> to vector<8x8x32xf32>
    %450 = vector.broadcast %448 : vector<1x8x32xf32> to vector<8x8x32xf32>
    %451 = arith.mulf %449, %450 : vector<8x8x32xf32>
    %452 = arith.addf %443, %451 : vector<8x8x32xf32>
    %453 = vector.extract_strided_slice %299 {offsets = [0, 8], sizes = [8, 1], strides = [1, 1]} : vector<8x16xf32> to vector<8x1xf32>
    %454 = vector.shape_cast %453 : vector<8x1xf32> to vector<8x1x1xf32>
    %455 = vector.extract_strided_slice %381 {offsets = [8, 0, 0], sizes = [1, 8, 32], strides = [1, 1, 1]} : vector<16x8x32xf32> to vector<1x8x32xf32>
    %456 = vector.shape_cast %455 : vector<1x8x32xf32> to vector<8x32xf32>
    %457 = vector.shape_cast %456 : vector<8x32xf32> to vector<1x8x32xf32>
    %458 = vector.broadcast %454 : vector<8x1x1xf32> to vector<8x8x32xf32>
    %459 = vector.broadcast %457 : vector<1x8x32xf32> to vector<8x8x32xf32>
    %460 = arith.mulf %458, %459 : vector<8x8x32xf32>
    %461 = arith.addf %452, %460 : vector<8x8x32xf32>
    %462 = vector.extract_strided_slice %299 {offsets = [0, 9], sizes = [8, 1], strides = [1, 1]} : vector<8x16xf32> to vector<8x1xf32>
    %463 = vector.shape_cast %462 : vector<8x1xf32> to vector<8x1x1xf32>
    %464 = vector.extract_strided_slice %381 {offsets = [9, 0, 0], sizes = [1, 8, 32], strides = [1, 1, 1]} : vector<16x8x32xf32> to vector<1x8x32xf32>
    %465 = vector.shape_cast %464 : vector<1x8x32xf32> to vector<8x32xf32>
    %466 = vector.shape_cast %465 : vector<8x32xf32> to vector<1x8x32xf32>
    %467 = vector.broadcast %463 : vector<8x1x1xf32> to vector<8x8x32xf32>
    %468 = vector.broadcast %466 : vector<1x8x32xf32> to vector<8x8x32xf32>
    %469 = arith.mulf %467, %468 : vector<8x8x32xf32>
    %470 = arith.addf %461, %469 : vector<8x8x32xf32>
    %471 = vector.extract_strided_slice %299 {offsets = [0, 10], sizes = [8, 1], strides = [1, 1]} : vector<8x16xf32> to vector<8x1xf32>
    %472 = vector.shape_cast %471 : vector<8x1xf32> to vector<8x1x1xf32>
    %473 = vector.extract_strided_slice %381 {offsets = [10, 0, 0], sizes = [1, 8, 32], strides = [1, 1, 1]} : vector<16x8x32xf32> to vector<1x8x32xf32>
    %474 = vector.shape_cast %473 : vector<1x8x32xf32> to vector<8x32xf32>
    %475 = vector.shape_cast %474 : vector<8x32xf32> to vector<1x8x32xf32>
    %476 = vector.broadcast %472 : vector<8x1x1xf32> to vector<8x8x32xf32>
    %477 = vector.broadcast %475 : vector<1x8x32xf32> to vector<8x8x32xf32>
    %478 = arith.mulf %476, %477 : vector<8x8x32xf32>
    %479 = arith.addf %470, %478 : vector<8x8x32xf32>
    %480 = vector.extract_strided_slice %299 {offsets = [0, 11], sizes = [8, 1], strides = [1, 1]} : vector<8x16xf32> to vector<8x1xf32>
    %481 = vector.shape_cast %480 : vector<8x1xf32> to vector<8x1x1xf32>
    %482 = vector.extract_strided_slice %381 {offsets = [11, 0, 0], sizes = [1, 8, 32], strides = [1, 1, 1]} : vector<16x8x32xf32> to vector<1x8x32xf32>
    %483 = vector.shape_cast %482 : vector<1x8x32xf32> to vector<8x32xf32>
    %484 = vector.shape_cast %483 : vector<8x32xf32> to vector<1x8x32xf32>
    %485 = vector.broadcast %481 : vector<8x1x1xf32> to vector<8x8x32xf32>
    %486 = vector.broadcast %484 : vector<1x8x32xf32> to vector<8x8x32xf32>
    %487 = arith.mulf %485, %486 : vector<8x8x32xf32>
    %488 = arith.addf %479, %487 : vector<8x8x32xf32>
    %489 = vector.extract_strided_slice %299 {offsets = [0, 12], sizes = [8, 1], strides = [1, 1]} : vector<8x16xf32> to vector<8x1xf32>
    %490 = vector.shape_cast %489 : vector<8x1xf32> to vector<8x1x1xf32>
    %491 = vector.extract_strided_slice %381 {offsets = [12, 0, 0], sizes = [1, 8, 32], strides = [1, 1, 1]} : vector<16x8x32xf32> to vector<1x8x32xf32>
    %492 = vector.shape_cast %491 : vector<1x8x32xf32> to vector<8x32xf32>
    %493 = vector.shape_cast %492 : vector<8x32xf32> to vector<1x8x32xf32>
    %494 = vector.broadcast %490 : vector<8x1x1xf32> to vector<8x8x32xf32>
    %495 = vector.broadcast %493 : vector<1x8x32xf32> to vector<8x8x32xf32>
    %496 = arith.mulf %494, %495 : vector<8x8x32xf32>
    %497 = arith.addf %488, %496 : vector<8x8x32xf32>
    %498 = vector.extract_strided_slice %299 {offsets = [0, 13], sizes = [8, 1], strides = [1, 1]} : vector<8x16xf32> to vector<8x1xf32>
    %499 = vector.shape_cast %498 : vector<8x1xf32> to vector<8x1x1xf32>
    %500 = vector.extract_strided_slice %381 {offsets = [13, 0, 0], sizes = [1, 8, 32], strides = [1, 1, 1]} : vector<16x8x32xf32> to vector<1x8x32xf32>
    %501 = vector.shape_cast %500 : vector<1x8x32xf32> to vector<8x32xf32>
    %502 = vector.shape_cast %501 : vector<8x32xf32> to vector<1x8x32xf32>
    %503 = vector.broadcast %499 : vector<8x1x1xf32> to vector<8x8x32xf32>
    %504 = vector.broadcast %502 : vector<1x8x32xf32> to vector<8x8x32xf32>
    %505 = arith.mulf %503, %504 : vector<8x8x32xf32>
    %506 = arith.addf %497, %505 : vector<8x8x32xf32>
    %507 = vector.extract_strided_slice %299 {offsets = [0, 14], sizes = [8, 1], strides = [1, 1]} : vector<8x16xf32> to vector<8x1xf32>
    %508 = vector.shape_cast %507 : vector<8x1xf32> to vector<8x1x1xf32>
    %509 = vector.extract_strided_slice %381 {offsets = [14, 0, 0], sizes = [1, 8, 32], strides = [1, 1, 1]} : vector<16x8x32xf32> to vector<1x8x32xf32>
    %510 = vector.shape_cast %509 : vector<1x8x32xf32> to vector<8x32xf32>
    %511 = vector.shape_cast %510 : vector<8x32xf32> to vector<1x8x32xf32>
    %512 = vector.broadcast %508 : vector<8x1x1xf32> to vector<8x8x32xf32>
    %513 = vector.broadcast %511 : vector<1x8x32xf32> to vector<8x8x32xf32>
    %514 = arith.mulf %512, %513 : vector<8x8x32xf32>
    %515 = arith.addf %506, %514 : vector<8x8x32xf32>
    %516 = vector.extract_strided_slice %299 {offsets = [0, 15], sizes = [8, 1], strides = [1, 1]} : vector<8x16xf32> to vector<8x1xf32>
    %517 = vector.shape_cast %516 : vector<8x1xf32> to vector<8x1x1xf32>
    %518 = vector.extract_strided_slice %381 {offsets = [15, 0, 0], sizes = [1, 8, 32], strides = [1, 1, 1]} : vector<16x8x32xf32> to vector<1x8x32xf32>
    %519 = vector.shape_cast %518 : vector<1x8x32xf32> to vector<8x32xf32>
    %520 = vector.shape_cast %519 : vector<8x32xf32> to vector<1x8x32xf32>
    %521 = vector.broadcast %517 : vector<8x1x1xf32> to vector<8x8x32xf32>
    %522 = vector.broadcast %520 : vector<1x8x32xf32> to vector<8x8x32xf32>
    %523 = arith.mulf %521, %522 : vector<8x8x32xf32>
    %524 = arith.addf %515, %523 : vector<8x8x32xf32>
    %c0_44 = arith.constant 0 : index
    %c0_45 = arith.constant 0 : index
    %c0_46 = arith.constant 0 : index
    %525 = vector.load %arg16[%c0_44, %c0_45, %c0_46] : memref<8x1x1xf32, #tpu.memory_space<vmem>>, vector<8x1x1xf32>
    %526 = vector.broadcast %525 : vector<8x1x1xf32> to vector<8x8x32xf32>
    %527 = arith.addf %524, %526 : vector<8x8x32xf32>
    %528 = vector.broadcast %291 : vector<1x8x1xf32> to vector<8x8x32xf32>
    %529 = arith.mulf %527, %528 : vector<8x8x32xf32>
    %530 = vector.broadcast %293 : vector<1x8x1xf32> to vector<8x8x32xf32>
    %531 = arith.addf %529, %530 : vector<8x8x32xf32>
    %c0_47 = arith.constant 0 : index
    %c0_48 = arith.constant 0 : index
    %532 = vector.load %arg17[%c0_47, %c0_48] : memref<32x64xf32, #tpu.memory_space<vmem>>, vector<32x64xf32>
    %533 = vector.shape_cast %531 : vector<8x8x32xf32> to vector<64x32xf32>
    %cst_49 = arith.constant dense<0.000000e+00> : vector<64x64xf32>
    %534 = tpu.matmul %533, %532, %cst_49 {dimension_numbers = #tpu.dot_dimension_numbers<[1], [0], [0], [1], [0, 0, 1, 1], [], []>} : vector<64x32xf32>, vector<32x64xf32>, vector<64x64xf32> -> vector<64x64xf32>
    %c0_50 = arith.constant 0 : index
    %c0_51 = arith.constant 0 : index
    %535 = vector.load %arg18[%c0_50, %c0_51] : memref<1x64xf32, #tpu.memory_space<vmem>>, vector<1x64xf32>
    %536 = vector.broadcast %535 : vector<1x64xf32> to vector<64x64xf32>
    %537 = arith.addf %534, %536 : vector<64x64xf32>
    %538 = vector.shape_cast %537 : vector<64x64xf32> to vector<8x8x64xf32>
    %cst_52 = arith.constant 5.000000e-01 : f32
    %539 = vector.broadcast %cst_52 : f32 to vector<8x8x64xf32>
    %540 = arith.mulf %539, %538 : vector<8x8x64xf32>
    %cst_53 = arith.constant 0.707106769 : f32
    %541 = vector.broadcast %cst_53 : f32 to vector<8x8x64xf32>
    %542 = arith.mulf %538, %541 : vector<8x8x64xf32>
    %543 = math.erf %542 : vector<8x8x64xf32>
    %cst_54 = arith.constant 1.000000e+00 : f32
    %544 = vector.broadcast %cst_54 : f32 to vector<8x8x64xf32>
    %545 = arith.addf %544, %543 : vector<8x8x64xf32>
    %546 = arith.mulf %540, %545 : vector<8x8x64xf32>
    %c0_55 = arith.constant 0 : index
    %c0_56 = arith.constant 0 : index
    %547 = vector.load %arg19[%c0_55, %c0_56] : memref<64x32xf32, #tpu.memory_space<vmem>>, vector<64x32xf32>
    %548 = vector.shape_cast %546 : vector<8x8x64xf32> to vector<64x64xf32>
    %cst_57 = arith.constant dense<0.000000e+00> : vector<64x32xf32>
    %549 = tpu.matmul %548, %547, %cst_57 {dimension_numbers = #tpu.dot_dimension_numbers<[1], [0], [0], [1], [0, 0, 1, 1], [], []>} : vector<64x64xf32>, vector<64x32xf32>, vector<64x32xf32> -> vector<64x32xf32>
    %c0_58 = arith.constant 0 : index
    %c0_59 = arith.constant 0 : index
    %550 = vector.load %arg20[%c0_58, %c0_59] : memref<1x32xf32, #tpu.memory_space<vmem>>, vector<1x32xf32>
    %551 = vector.broadcast %550 : vector<1x32xf32> to vector<64x32xf32>
    %552 = arith.addf %549, %551 : vector<64x32xf32>
    %553 = vector.shape_cast %552 : vector<64x32xf32> to vector<8x8x32xf32>
    %554 = arith.addf %531, %553 : vector<8x8x32xf32>
    %555 = arith.addf %285, %554 : vector<8x8x32xf32>
    %556 = vector.extract_strided_slice %0 {offsets = [0, 10], sizes = [8, 1], strides = [1, 1]} : vector<8x16xf32> to vector<8x1xf32>
    %557 = vector.shape_cast %556 : vector<8x1xf32> to vector<1x8x1xf32>
    %558 = vector.broadcast %557 : vector<1x8x1xf32> to vector<8x8x32xf32>
    %559 = arith.mulf %555, %558 : vector<8x8x32xf32>
    %560 = vector.extract_strided_slice %0 {offsets = [0, 11], sizes = [8, 1], strides = [1, 1]} : vector<8x16xf32> to vector<8x1xf32>
    %561 = vector.shape_cast %560 : vector<8x1xf32> to vector<1x8x1xf32>
    %562 = vector.broadcast %561 : vector<1x8x1xf32> to vector<8x8x32xf32>
    %563 = arith.addf %559, %562 : vector<8x8x32xf32>
    %c0_60 = arith.constant 0 : index
    %c0_61 = arith.constant 0 : index
    %c0_62 = arith.constant 0 : index
    %564 = vector.load %arg21[%c0_60, %c0_61, %c0_62] : memref<8x32x128xf32, #tpu.memory_space<vmem>>, vector<8x32x128xf32>
    %565 = vector.extract_strided_slice %563 {offsets = [0, 0, 0], sizes = [1, 8, 32], strides = [1, 1, 1]} : vector<8x8x32xf32> to vector<1x8x32xf32>
    %566 = vector.shape_cast %565 : vector<1x8x32xf32> to vector<8x32xf32>
    %567 = vector.extract_strided_slice %564 {offsets = [0, 0, 0], sizes = [1, 32, 128], strides = [1, 1, 1]} : vector<8x32x128xf32> to vector<1x32x128xf32>
    %568 = vector.shape_cast %567 : vector<1x32x128xf32> to vector<32x128xf32>
    %cst_63 = arith.constant dense<0.000000e+00> : vector<8x128xf32>
    %569 = tpu.matmul %566, %568, %cst_63 {dimension_numbers = #tpu.dot_dimension_numbers<[1], [0], [0], [1], [0, 0, 1, 1], [], []>} : vector<8x32xf32>, vector<32x128xf32>, vector<8x128xf32> -> vector<8x128xf32>
    %570 = vector.extract_strided_slice %563 {offsets = [1, 0, 0], sizes = [1, 8, 32], strides = [1, 1, 1]} : vector<8x8x32xf32> to vector<1x8x32xf32>
    %571 = vector.shape_cast %570 : vector<1x8x32xf32> to vector<8x32xf32>
    %572 = vector.extract_strided_slice %564 {offsets = [1, 0, 0], sizes = [1, 32, 128], strides = [1, 1, 1]} : vector<8x32x128xf32> to vector<1x32x128xf32>
    %573 = vector.shape_cast %572 : vector<1x32x128xf32> to vector<32x128xf32>
    %cst_64 = arith.constant dense<0.000000e+00> : vector<8x128xf32>
    %574 = tpu.matmul %571, %573, %cst_64 {dimension_numbers = #tpu.dot_dimension_numbers<[1], [0], [0], [1], [0, 0, 1, 1], [], []>} : vector<8x32xf32>, vector<32x128xf32>, vector<8x128xf32> -> vector<8x128xf32>
    %575 = vector.extract_strided_slice %563 {offsets = [2, 0, 0], sizes = [1, 8, 32], strides = [1, 1, 1]} : vector<8x8x32xf32> to vector<1x8x32xf32>
    %576 = vector.shape_cast %575 : vector<1x8x32xf32> to vector<8x32xf32>
    %577 = vector.extract_strided_slice %564 {offsets = [2, 0, 0], sizes = [1, 32, 128], strides = [1, 1, 1]} : vector<8x32x128xf32> to vector<1x32x128xf32>
    %578 = vector.shape_cast %577 : vector<1x32x128xf32> to vector<32x128xf32>
    %cst_65 = arith.constant dense<0.000000e+00> : vector<8x128xf32>
    %579 = tpu.matmul %576, %578, %cst_65 {dimension_numbers = #tpu.dot_dimension_numbers<[1], [0], [0], [1], [0, 0, 1, 1], [], []>} : vector<8x32xf32>, vector<32x128xf32>, vector<8x128xf32> -> vector<8x128xf32>
    %580 = vector.extract_strided_slice %563 {offsets = [3, 0, 0], sizes = [1, 8, 32], strides = [1, 1, 1]} : vector<8x8x32xf32> to vector<1x8x32xf32>
    %581 = vector.shape_cast %580 : vector<1x8x32xf32> to vector<8x32xf32>
    %582 = vector.extract_strided_slice %564 {offsets = [3, 0, 0], sizes = [1, 32, 128], strides = [1, 1, 1]} : vector<8x32x128xf32> to vector<1x32x128xf32>
    %583 = vector.shape_cast %582 : vector<1x32x128xf32> to vector<32x128xf32>
    %cst_66 = arith.constant dense<0.000000e+00> : vector<8x128xf32>
    %584 = tpu.matmul %581, %583, %cst_66 {dimension_numbers = #tpu.dot_dimension_numbers<[1], [0], [0], [1], [0, 0, 1, 1], [], []>} : vector<8x32xf32>, vector<32x128xf32>, vector<8x128xf32> -> vector<8x128xf32>
    %585 = vector.extract_strided_slice %563 {offsets = [4, 0, 0], sizes = [1, 8, 32], strides = [1, 1, 1]} : vector<8x8x32xf32> to vector<1x8x32xf32>
    %586 = vector.shape_cast %585 : vector<1x8x32xf32> to vector<8x32xf32>
    %587 = vector.extract_strided_slice %564 {offsets = [4, 0, 0], sizes = [1, 32, 128], strides = [1, 1, 1]} : vector<8x32x128xf32> to vector<1x32x128xf32>
    %588 = vector.shape_cast %587 : vector<1x32x128xf32> to vector<32x128xf32>
    %cst_67 = arith.constant dense<0.000000e+00> : vector<8x128xf32>
    %589 = tpu.matmul %586, %588, %cst_67 {dimension_numbers = #tpu.dot_dimension_numbers<[1], [0], [0], [1], [0, 0, 1, 1], [], []>} : vector<8x32xf32>, vector<32x128xf32>, vector<8x128xf32> -> vector<8x128xf32>
    %590 = vector.extract_strided_slice %563 {offsets = [5, 0, 0], sizes = [1, 8, 32], strides = [1, 1, 1]} : vector<8x8x32xf32> to vector<1x8x32xf32>
    %591 = vector.shape_cast %590 : vector<1x8x32xf32> to vector<8x32xf32>
    %592 = vector.extract_strided_slice %564 {offsets = [5, 0, 0], sizes = [1, 32, 128], strides = [1, 1, 1]} : vector<8x32x128xf32> to vector<1x32x128xf32>
    %593 = vector.shape_cast %592 : vector<1x32x128xf32> to vector<32x128xf32>
    %cst_68 = arith.constant dense<0.000000e+00> : vector<8x128xf32>
    %594 = tpu.matmul %591, %593, %cst_68 {dimension_numbers = #tpu.dot_dimension_numbers<[1], [0], [0], [1], [0, 0, 1, 1], [], []>} : vector<8x32xf32>, vector<32x128xf32>, vector<8x128xf32> -> vector<8x128xf32>
    %595 = vector.extract_strided_slice %563 {offsets = [6, 0, 0], sizes = [1, 8, 32], strides = [1, 1, 1]} : vector<8x8x32xf32> to vector<1x8x32xf32>
    %596 = vector.shape_cast %595 : vector<1x8x32xf32> to vector<8x32xf32>
    %597 = vector.extract_strided_slice %564 {offsets = [6, 0, 0], sizes = [1, 32, 128], strides = [1, 1, 1]} : vector<8x32x128xf32> to vector<1x32x128xf32>
    %598 = vector.shape_cast %597 : vector<1x32x128xf32> to vector<32x128xf32>
    %cst_69 = arith.constant dense<0.000000e+00> : vector<8x128xf32>
    %599 = tpu.matmul %596, %598, %cst_69 {dimension_numbers = #tpu.dot_dimension_numbers<[1], [0], [0], [1], [0, 0, 1, 1], [], []>} : vector<8x32xf32>, vector<32x128xf32>, vector<8x128xf32> -> vector<8x128xf32>
    %600 = vector.extract_strided_slice %563 {offsets = [7, 0, 0], sizes = [1, 8, 32], strides = [1, 1, 1]} : vector<8x8x32xf32> to vector<1x8x32xf32>
    %601 = vector.shape_cast %600 : vector<1x8x32xf32> to vector<8x32xf32>
    %602 = vector.extract_strided_slice %564 {offsets = [7, 0, 0], sizes = [1, 32, 128], strides = [1, 1, 1]} : vector<8x32x128xf32> to vector<1x32x128xf32>
    %603 = vector.shape_cast %602 : vector<1x32x128xf32> to vector<32x128xf32>
    %cst_70 = arith.constant dense<0.000000e+00> : vector<8x128xf32>
    %604 = tpu.matmul %601, %603, %cst_70 {dimension_numbers = #tpu.dot_dimension_numbers<[1], [0], [0], [1], [0, 0, 1, 1], [], []>} : vector<8x32xf32>, vector<32x128xf32>, vector<8x128xf32> -> vector<8x128xf32>
    %605 = arith.addf %569, %574 : vector<8x128xf32>
    %606 = arith.addf %579, %584 : vector<8x128xf32>
    %607 = arith.addf %589, %594 : vector<8x128xf32>
    %608 = arith.addf %599, %604 : vector<8x128xf32>
    %609 = arith.addf %605, %606 : vector<8x128xf32>
    %610 = arith.addf %607, %608 : vector<8x128xf32>
    %611 = arith.addf %609, %610 : vector<8x128xf32>
    %c0_71 = arith.constant 0 : index
    %c0_72 = arith.constant 0 : index
    %612 = vector.load %arg22[%c0_71, %c0_72] : memref<1x128xf32, #tpu.memory_space<vmem>>, vector<1x128xf32>
    %613 = vector.broadcast %612 : vector<1x128xf32> to vector<8x128xf32>
    %614 = arith.addf %611, %613 : vector<8x128xf32>
    %c0_73 = arith.constant 0 : index
    %c0_74 = arith.constant 0 : index
    %615 = vector.load %arg23[%c0_73, %c0_74] : memref<8x128xf32, #tpu.memory_space<vmem>>, vector<8x128xf32>
    tpu.vector_store %arg23[%c0_73, %c0_74], %614 {strides = array<i32>} : memref<8x128xf32, #tpu.memory_space<vmem>>, vector<8x128xf32>,
    return
  }
  func.func @transform_0(%arg0: i32) -> (i32, i32, i32) {
    %c0_i32 = arith.constant 0 : i32
    %c0_i32_0 = arith.constant 0 : i32
    %c0_i32_1 = arith.constant 0 : i32
    return %c0_i32, %arg0, %c0_i32_0 : i32, i32, i32
  }
  func.func @transform_1(%arg0: i32) -> (i32, i32) {
    %c0_i32 = arith.constant 0 : i32
    %c0_i32_0 = arith.constant 0 : i32
    return %arg0, %c0_i32 : i32, i32
  }
  func.func @transform_2(%arg0: i32) -> (i32, i32) {
    %c0_i32 = arith.constant 0 : i32
    %c0_i32_0 = arith.constant 0 : i32
    %c0_i32_1 = arith.constant 0 : i32
    return %c0_i32, %c0_i32_0 : i32, i32
  }
  func.func @transform_3(%arg0: i32) -> (i32, i32) {
    %c0_i32 = arith.constant 0 : i32
    %c0_i32_0 = arith.constant 0 : i32
    %c0_i32_1 = arith.constant 0 : i32
    return %c0_i32, %c0_i32_0 : i32, i32
  }
  func.func @transform_4(%arg0: i32) -> (i32, i32) {
    %c0_i32 = arith.constant 0 : i32
    %c0_i32_0 = arith.constant 0 : i32
    %c0_i32_1 = arith.constant 0 : i32
    return %c0_i32, %c0_i32_0 : i32, i32
  }
  func.func @transform_5(%arg0: i32) -> (i32, i32, i32) {
    %c0_i32 = arith.constant 0 : i32
    %c0_i32_0 = arith.constant 0 : i32
    %c0_i32_1 = arith.constant 0 : i32
    %c0_i32_2 = arith.constant 0 : i32
    return %c0_i32, %c0_i32_0, %c0_i32_1 : i32, i32, i32
  }
  func.func @transform_6(%arg0: i32) -> (i32, i32) {
    %c0_i32 = arith.constant 0 : i32
    %c0_i32_0 = arith.constant 0 : i32
    %c0_i32_1 = arith.constant 0 : i32
    return %c0_i32, %c0_i32_0 : i32, i32
  }
  func.func @transform_7(%arg0: i32) -> (i32, i32, i32) {
    %c0_i32 = arith.constant 0 : i32
    %c0_i32_0 = arith.constant 0 : i32
    %c0_i32_1 = arith.constant 0 : i32
    %c0_i32_2 = arith.constant 0 : i32
    return %c0_i32, %c0_i32_0, %c0_i32_1 : i32, i32, i32
  }
  func.func @transform_8(%arg0: i32) -> (i32, i32) {
    %c0_i32 = arith.constant 0 : i32
    %c0_i32_0 = arith.constant 0 : i32
    %c0_i32_1 = arith.constant 0 : i32
    return %c0_i32, %c0_i32_0 : i32, i32
  }
  func.func @transform_9(%arg0: i32) -> (i32, i32) {
    %c0_i32 = arith.constant 0 : i32
    %c0_i32_0 = arith.constant 0 : i32
    %c0_i32_1 = arith.constant 0 : i32
    return %c0_i32, %c0_i32_0 : i32, i32
  }
  func.func @transform_10(%arg0: i32) -> (i32, i32) {
    %c0_i32 = arith.constant 0 : i32
    %c0_i32_0 = arith.constant 0 : i32
    %c0_i32_1 = arith.constant 0 : i32
    return %c0_i32, %c0_i32_0 : i32, i32
  }
  func.func @transform_11(%arg0: i32) -> (i32, i32) {
    %c0_i32 = arith.constant 0 : i32
    %c0_i32_0 = arith.constant 0 : i32
    %c0_i32_1 = arith.constant 0 : i32
    return %c0_i32, %c0_i32_0 : i32, i32
  }
  func.func @transform_12(%arg0: i32) -> (i32, i32) {
    %c0_i32 = arith.constant 0 : i32
    %c0_i32_0 = arith.constant 0 : i32
    %c0_i32_1 = arith.constant 0 : i32
    return %c0_i32, %c0_i32_0 : i32, i32
  }
  func.func @transform_13(%arg0: i32) -> (i32, i32, i32) {
    %c0_i32 = arith.constant 0 : i32
    %c0_i32_0 = arith.constant 0 : i32
    %c0_i32_1 = arith.constant 0 : i32
    %c0_i32_2 = arith.constant 0 : i32
    return %c0_i32, %c0_i32_0, %c0_i32_1 : i32, i32, i32
  }
  func.func @transform_14(%arg0: i32) -> (i32, i32) {
    %c0_i32 = arith.constant 0 : i32
    %c0_i32_0 = arith.constant 0 : i32
    %c0_i32_1 = arith.constant 0 : i32
    return %c0_i32, %c0_i32_0 : i32, i32
  }
  func.func @transform_15(%arg0: i32) -> (i32, i32, i32) {
    %c0_i32 = arith.constant 0 : i32
    %c0_i32_0 = arith.constant 0 : i32
    %c0_i32_1 = arith.constant 0 : i32
    %c0_i32_2 = arith.constant 0 : i32
    return %c0_i32, %c0_i32_0, %c0_i32_1 : i32, i32, i32
  }
  func.func @transform_16(%arg0: i32) -> (i32, i32) {
    %c0_i32 = arith.constant 0 : i32
    %c0_i32_0 = arith.constant 0 : i32
    %c0_i32_1 = arith.constant 0 : i32
    return %c0_i32, %c0_i32_0 : i32, i32
  }
  func.func @transform_17(%arg0: i32) -> (i32, i32) {
    %c0_i32 = arith.constant 0 : i32
    %c0_i32_0 = arith.constant 0 : i32
    %c0_i32_1 = arith.constant 0 : i32
    return %c0_i32, %c0_i32_0 : i32, i32
  }
  func.func @transform_18(%arg0: i32) -> (i32, i32) {
    %c0_i32 = arith.constant 0 : i32
    %c0_i32_0 = arith.constant 0 : i32
    %c0_i32_1 = arith.constant 0 : i32
    return %c0_i32, %c0_i32_0 : i32, i32
  }
  func.func @transform_19(%arg0: i32) -> (i32, i32) {
    %c0_i32 = arith.constant 0 : i32
    %c0_i32_0 = arith.constant 0 : i32
    %c0_i32_1 = arith.constant 0 : i32
    return %c0_i32, %c0_i32_0 : i32, i32
  }
  func.func @transform_20(%arg0: i32) -> (i32, i32, i32) {
    %c0_i32 = arith.constant 0 : i32
    %c0_i32_0 = arith.constant 0 : i32
    %c0_i32_1 = arith.constant 0 : i32
    %c0_i32_2 = arith.constant 0 : i32
    return %c0_i32, %c0_i32_0, %c0_i32_1 : i32, i32, i32
  }
  func.func @transform_21(%arg0: i32) -> (i32, i32) {
    %c0_i32 = arith.constant 0 : i32
    %c0_i32_0 = arith.constant 0 : i32
    %c0_i32_1 = arith.constant 0 : i32
    return %c0_i32, %c0_i32_0 : i32, i32
  }
  func.func @transform_22(%arg0: i32) -> (i32, i32) {
    %c0_i32 = arith.constant 0 : i32
    %c0_i32_0 = arith.constant 0 : i32
    return %arg0, %c0_i32 : i32, i32
  }
}

</mosaic_0001>

<llo_original>
// kernel: wpmixer_core_forward.1
$region0: #{wpmixer_core_forward.1}
  #allocation0 [shape = 'u32[]', space=smem, size = 0x4, offset = 0x4, fixed_abs, tag = 'smem constant byte address 0x4 - core index']
  #allocation1 [shape = 'u32[144,128]{1,0:T(1,128)}', space=vmem, size = 0x12000, scoped, tag = 'internal scratch']
  %s0 = inlined_call_operand.vmem [shape: f32[8,8,4], index: 0, kind: input, shape index: {}]
  %s1 = inlined_call_operand.vmem [shape: f32[8,16], index: 1, kind: input, shape index: {}]
  %s2 = inlined_call_operand.vmem [shape: f32[4,32], index: 2, kind: input, shape index: {}]
  %s3 = inlined_call_operand.vmem [shape: f32[1,32], index: 3, kind: input, shape index: {}]
  %s4 = inlined_call_operand.vmem [shape: f32[16,8], index: 4, kind: input, shape index: {}]
  %s5 = inlined_call_operand.vmem [shape: f32[16,1,1], index: 5, kind: input, shape index: {}]
  %s6 = inlined_call_operand.vmem [shape: f32[8,16], index: 6, kind: input, shape index: {}]
  %s7 = inlined_call_operand.vmem [shape: f32[8,1,1], index: 7, kind: input, shape index: {}]
  %s8 = inlined_call_operand.vmem [shape: f32[32,64], index: 8, kind: input, shape index: {}]
  %s9 = inlined_call_operand.vmem [shape: f32[1,64], index: 9, kind: input, shape index: {}]
  %s10 = inlined_call_operand.vmem [shape: f32[64,32], index: 10, kind: input, shape index: {}]
  %s11 = inlined_call_operand.vmem [shape: f32[1,32], index: 11, kind: input, shape index: {}]
  %s12 = inlined_call_operand.vmem [shape: f32[16,8], index: 12, kind: input, shape index: {}]
  %s13 = inlined_call_operand.vmem [shape: f32[16,1,1], index: 13, kind: input, shape index: {}]
  %s14 = inlined_call_operand.vmem [shape: f32[8,16], index: 14, kind: input, shape index: {}]
  %s15 = inlined_call_operand.vmem [shape: f32[8,1,1], index: 15, kind: input, shape index: {}]
  %s16 = inlined_call_operand.vmem [shape: f32[32,64], index: 16, kind: input, shape index: {}]
  %s17 = inlined_call_operand.vmem [shape: f32[1,64], index: 17, kind: input, shape index: {}]
  %s18 = inlined_call_operand.vmem [shape: f32[64,32], index: 18, kind: input, shape index: {}]
  %s19 = inlined_call_operand.vmem [shape: f32[1,32], index: 19, kind: input, shape index: {}]
  %s20 = inlined_call_operand.vmem [shape: f32[8,32,128], index: 20, kind: input, shape index: {}]
  %s21 = inlined_call_operand.vmem [shape: f32[1,128], index: 21, kind: input, shape index: {}]
  %s22 = inlined_call_operand.hbm [shape: f32[8,128], index: 22, kind: output, shape index: {}]
  %s23 = sld [smem:[#allocation0]]
  $region98: #{wpmixer_core_forward.1} parent=0
    _
  %s25 = ssub.s32 1, %s23
  %s26 = scalar_select 0, %s25, %s23
  $region1: #{wpmixer_core_forward.1} parent=0
    #allocation2 [shape = 'u8[4096]{0}', space=vmem, size = 0x1000, scoped, tag = 'output window, operand 0, single buffered']
    #allocation3 [shape = 's32[1]{0}', space=sflag, size = 0x4, scoped, tag = 'scoped memory for wpmixer_core_forward.1']
    %27 = vsyncpa [#allocation3], 0
    // Predicated region
    $region2: #{wpmixer_core_forward.1} parent=1 // pred_check
      _
    $region3: #{wpmixer_core_forward.1} parent=1 // pred_check_branch
      %29 = sbr.rel (0) target = $region5
    $region4: #{wpmixer_core_forward.1} parent=1 // pred_region
      _
    $region5: #{wpmixer_core_forward.1} parent=1 // pred_fallthru
      _
    // Predicated region
    $region6: #{wpmixer_core_forward.1} parent=1 // pred_check
      _
    $region7: #{wpmixer_core_forward.1} parent=1 // pred_check_branch
      %31 = sbr.rel (0) target = $region9
    $region8: #{wpmixer_core_forward.1} parent=1 // pred_region
      _
    $region9: #{wpmixer_core_forward.1} parent=1 // pred_fallthru
      _
    // Predicated region
    $region10: #{wpmixer_core_forward.1} parent=1 // pred_check
      _
    $region11: #{wpmixer_core_forward.1} parent=1 // pred_check_branch
      %33 = sbr.rel (0) target = $region13
    $region12: #{wpmixer_core_forward.1} parent=1 // pred_region
      _
    $region13: #{wpmixer_core_forward.1} parent=1 // pred_fallthru
      _
    // Predicated region
    $region14: #{wpmixer_core_forward.1} parent=1 // pred_check
      _
    $region15: #{wpmixer_core_forward.1} parent=1 // pred_check_branch
      %35 = sbr.rel (0) target = $region17
    $region16: #{wpmixer_core_forward.1} parent=1 // pred_region
      _
    $region17: #{wpmixer_core_forward.1} parent=1 // pred_fallthru
      _
    // Predicated region
    $region18: #{wpmixer_core_forward.1} parent=1 // pred_check
      _
    $region19: #{wpmixer_core_forward.1} parent=1 // pred_check_branch
      %37 = sbr.rel (0) target = $region21
    $region20: #{wpmixer_core_forward.1} parent=1 // pred_region
      _
    $region21: #{wpmixer_core_forward.1} parent=1 // pred_fallthru
      _
    // Predicated region
    $region22: #{wpmixer_core_forward.1} parent=1 // pred_check
      _
    $region23: #{wpmixer_core_forward.1} parent=1 // pred_check_branch
      %39 = sbr.rel (0) target = $region25
    $region24: #{wpmixer_core_forward.1} parent=1 // pred_region
      _
    $region25: #{wpmixer_core_forward.1} parent=1 // pred_fallthru
      _
    // Predicated region
    $region26: #{wpmixer_core_forward.1} parent=1 // pred_check
      _
    $region27: #{wpmixer_core_forward.1} parent=1 // pred_check_branch
      %41 = sbr.rel (0) target = $region29
    $region28: #{wpmixer_core_forward.1} parent=1 // pred_region
      _
    $region29: #{wpmixer_core_forward.1} parent=1 // pred_fallthru
      _
    // Predicated region
    $region30: #{wpmixer_core_forward.1} parent=1 // pred_check
      _
    $region31: #{wpmixer_core_forward.1} parent=1 // pred_check_branch
      %43 = sbr.rel (0) target = $region33
    $region32: #{wpmixer_core_forward.1} parent=1 // pred_region
      _
    $region33: #{wpmixer_core_forward.1} parent=1 // pred_fallthru
      _
    // Predicated region
    $region34: #{wpmixer_core_forward.1} parent=1 // pred_check
      _
    $region35: #{wpmixer_core_forward.1} parent=1 // pred_check_branch
      %45 = sbr.rel (0) target = $region37
    $region36: #{wpmixer_core_forward.1} parent=1 // pred_region
      _
    $region37: #{wpmixer_core_forward.1} parent=1 // pred_fallthru
      _
    // Predicated region
    $region38: #{wpmixer_core_forward.1} parent=1 // pred_check
      _
    $region39: #{wpmixer_core_forward.1} parent=1 // pred_check_branch
      %47 = sbr.rel (0) target = $region41
    $region40: #{wpmixer_core_forward.1} parent=1 // pred_region
      _
    $region41: #{wpmixer_core_forward.1} parent=1 // pred_fallthru
      _
    // Predicated region
    $region42: #{wpmixer_core_forward.1} parent=1 // pred_check
      _
    $region43: #{wpmixer_core_forward.1} parent=1 // pred_check_branch
      %49 = sbr.rel (0) target = $region45
    $region44: #{wpmixer_core_forward.1} parent=1 // pred_region
      _
    $region45: #{wpmixer_core_forward.1} parent=1 // pred_fallthru
      _
    // Predicated region
    $region46: #{wpmixer_core_forward.1} parent=1 // pred_check
      _
    $region47: #{wpmixer_core_forward.1} parent=1 // pred_check_branch
      %51 = sbr.rel (0) target = $region49
    $region48: #{wpmixer_core_forward.1} parent=1 // pred_region
      _
    $region49: #{wpmixer_core_forward.1} parent=1 // pred_fallthru
      _
    // Predicated region
    $region50: #{wpmixer_core_forward.1} parent=1 // pred_check
      _
    $region51: #{wpmixer_core_forward.1} parent=1 // pred_check_branch
      %53 = sbr.rel (0) target = $region53
    $region52: #{wpmixer_core_forward.1} parent=1 // pred_region
      _
    $region53: #{wpmixer_core_forward.1} parent=1 // pred_fallthru
      _
    // Predicated region
    $region54: #{wpmixer_core_forward.1} parent=1 // pred_check
      _
    $region55: #{wpmixer_core_forward.1} parent=1 // pred_check_branch
      %55 = sbr.rel (0) target = $region57
    $region56: #{wpmixer_core_forward.1} parent=1 // pred_region
      _
    $region57: #{wpmixer_core_forward.1} parent=1 // pred_fallthru
      _
    // Predicated region
    $region58: #{wpmixer_core_forward.1} parent=1 // pred_check
      _
    $region59: #{wpmixer_core_forward.1} parent=1 // pred_check_branch
      %57 = sbr.rel (0) target = $region61
    $region60: #{wpmixer_core_forward.1} parent=1 // pred_region
      _
    $region61: #{wpmixer_core_forward.1} parent=1 // pred_fallthru
      _
    // Predicated region
    $region62: #{wpmixer_core_forward.1} parent=1 // pred_check
      _
    $region63: #{wpmixer_core_forward.1} parent=1 // pred_check_branch
      %59 = sbr.rel (0) target = $region65
    $region64: #{wpmixer_core_forward.1} parent=1 // pred_region
      _
    $region65: #{wpmixer_core_forward.1} parent=1 // pred_fallthru
      _
    // Predicated region
    $region66: #{wpmixer_core_forward.1} parent=1 // pred_check
      _
    $region67: #{wpmixer_core_forward.1} parent=1 // pred_check_branch
      %61 = sbr.rel (0) target = $region69
    $region68: #{wpmixer_core_forward.1} parent=1 // pred_region
      _
    $region69: #{wpmixer_core_forward.1} parent=1 // pred_fallthru
      _
    // Predicated region
    $region70: #{wpmixer_core_forward.1} parent=1 // pred_check
      _
    $region71: #{wpmixer_core_forward.1} parent=1 // pred_check_branch
      %63 = sbr.rel (0) target = $region73
    $region72: #{wpmixer_core_forward.1} parent=1 // pred_region
      _
    $region73: #{wpmixer_core_forward.1} parent=1 // pred_fallthru
      _
    // Predicated region
    $region74: #{wpmixer_core_forward.1} parent=1 // pred_check
      _
    $region75: #{wpmixer_core_forward.1} parent=1 // pred_check_branch
      %65 = sbr.rel (0) target = $region77
    $region76: #{wpmixer_core_forward.1} parent=1 // pred_region
      _
    $region77: #{wpmixer_core_forward.1} parent=1 // pred_fallthru
      _
    // Predicated region
    $region78: #{wpmixer_core_forward.1} parent=1 // pred_check
      _
    $region79: #{wpmixer_core_forward.1} parent=1 // pred_check_branch
      %67 = sbr.rel (0) target = $region81
    $region80: #{wpmixer_core_forward.1} parent=1 // pred_region
      _
    $region81: #{wpmixer_core_forward.1} parent=1 // pred_fallthru
      _
    // Predicated region
    $region82: #{wpmixer_core_forward.1} parent=1 // pred_check
      _
    $region83: #{wpmixer_core_forward.1} parent=1 // pred_check_branch
      %69 = sbr.rel (0) target = $region85
    $region84: #{wpmixer_core_forward.1} parent=1 // pred_region
      _
    $region85: #{wpmixer_core_forward.1} parent=1 // pred_fallthru
      _
    // Predicated region
    $region86: #{wpmixer_core_forward.1} parent=1 // pred_check
      _
    $region87: #{wpmixer_core_forward.1} parent=1 // pred_check_branch
      %71 = sbr.rel (0) target = $region89
    $region88: #{wpmixer_core_forward.1} parent=1 // pred_region
      _
    $region89: #{wpmixer_core_forward.1} parent=1 // pred_fallthru
      _
    %v72 = vld [vmem:[%s1] sm:$0xff]
    %v73 = vld [vmem:[%s0] sm:$0xff]
    %v74 = vld [vmem:[%s0 + $0x8] sm:$0xff]
    %v75 = vld [vmem:[%s0 + $0x10] sm:$0xff]
    %v76 = vld [vmem:[%s0 + $0x18] sm:$0xff]
    %v77 = vld [vmem:[%s0 + $0x20] sm:$0xff]
    %v78 = vld [vmem:[%s0 + $0x28] sm:$0xff]
    %v79 = vld [vmem:[%s0 + $0x30] sm:$0xff]
    %v80 = vld [vmem:[%s0 + $0x38] sm:$0xff]
    %82 = vset.pattern.permute.xlu0 0
    %83 = vperm.xlu0 %82, %v72
    %v84 = vpop.permute.xlu0 %83
    %v86 = vmul.f32 %v73, %v84
    %v87 = vmul.f32 %v74, %v84
    %v88 = vmul.f32 %v75, %v84
    %v89 = vmul.f32 %v76, %v84
    %v90 = vmul.f32 %v77, %v84
    %v91 = vmul.f32 %v78, %v84
    %v92 = vmul.f32 %v79, %v84
    %v93 = vmul.f32 %v80, %v84
    %94 = vset.pattern.permute.xlu0 1
    %95 = vperm.xlu0 %94, %v72
    %v96 = vpop.permute.xlu0 %95
    %v98 = vadd.f32 %v86, %v96
    %v99 = vadd.f32 %v87, %v96
    %v100 = vadd.f32 %v88, %v96
    %v101 = vadd.f32 %v89, %v96
    %v102 = vadd.f32 %v90, %v96
    %v103 = vadd.f32 %v91, %v96
    %v104 = vadd.f32 %v92, %v96
    %v105 = vadd.f32 %v93, %v96
    %v106 = vld [vmem:[%s2] sm:$0xf]
    %v107 = vld [vmem:[%s3] sm:$0x1]
    %v109 = vlaneseq
    %v110 = vshrl.u32 %v109, 7
    %v111 = vsub.s32 0, %v110
    %v112 = vrot.slane %v107, %v111
    %vm114 = vcmask 31744
    %v116 = vsel %vm114, %v98, 0
    %v119 = vsel %vm114, %v99, 0
    %v122 = vsel %vm114, %v100, 0
    %v125 = vsel %vm114, %v101, 0
    %v128 = vsel %vm114, %v102, 0
    %v131 = vsel %vm114, %v103, 0
    %v134 = vsel %vm114, %v104, 0
    %v137 = vsel %vm114, %v105, 0
    %vm139 = vcmask 1043456
    %v141 = vsel %vm139, %v106, 0
    %143 = vmatprep.subr.mxu0 0.0
    %144 = vmatpush1.msra.mxu0 %v141
    %145 = vmatprep.subr.mxu0 0.0
    %146 = vmatpush1.msra.mxu0 0.0
    %147 = vmatprep.subr.mxu0 0.0
    %148 = vmatpush1.msra.mxu0 0.0
    %149 = vmatprep.subr.mxu0 0.0
    %150 = vmatpush1.msra.mxu0 0.0
    %151 = vmatprep.subr.mxu0 0.0
    %152 = vmatpush1.msra.mxu0 0.0
    %153 = vmatprep.subr.mxu0 0.0
    %154 = vmatpush1.msra.mxu0 0.0
    %155 = vmatprep.subr.mxu0 0.0
    %156 = vmatpush1.msra.mxu0 0.0
    %157 = vmatprep.subr.mxu0 0.0
    %158 = vmatpush1.msra.mxu0 0.0
    %159 = vmatprep.subr.mxu0 0.0
    %160 = vmatpush1.msra.mxu0 0.0
    %161 = vmatprep.subr.mxu0 0.0
    %162 = vmatpush1.msra.mxu0 0.0
    %163 = vmatprep.subr.mxu0 0.0
    %164 = vmatpush1.msra.mxu0 0.0
    %165 = vmatprep.subr.mxu0 0.0
    %166 = vmatpush1.msra.mxu0 0.0
    %167 = vmatprep.subr.mxu0 0.0
    %168 = vmatpush1.msra.mxu0 0.0
    %169 = vmatprep.subr.mxu0 0.0
    %170 = vmatpush1.msra.mxu0 0.0
    %171 = vmatprep.subr.mxu0 0.0
    %172 = vmatpush1.msra.mxu0 0.0
    %173 = vmatprep.subr.mxu0 0.0
    %174 = vmatpush1.msra.mxu0 0.0
    %175 = vmatprep.subr.mxu0 0.0
    %176 = vmatpush1.msra.mxu0 0.0
    %177 = vmatprep.subr.mxu0 0.0
    %178 = vmatpush1.msra.mxu0 0.0
    %179 = vmatprep.subr.mxu0 0.0
    %180 = vmatpush1.msra.mxu0 0.0
    %181 = vmatprep.subr.mxu0 0.0
    %182 = vmatpush1.msra.mxu0 0.0
    %183 = vmatprep.subr.mxu0 0.0
    %184 = vmatpush1.msra.mxu0 0.0
    %185 = vmatprep.subr.mxu0 0.0
    %186 = vmatpush1.msra.mxu0 0.0
    %187 = vmatprep.subr.mxu0 0.0
    %188 = vmatpush1.msra.mxu0 0.0
    %189 = vmatprep.subr.mxu0 0.0
    %190 = vmatpush1.msra.mxu0 0.0
    %191 = vmatprep.subr.mxu0 0.0
    %192 = vmatpush1.msra.mxu0 0.0
    %193 = vmatprep.subr.mxu0 0.0
    %194 = vmatpush1.msra.mxu0 0.0
    %195 = vmatprep.subr.mxu0 0.0
    %196 = vmatpush1.msra.mxu0 0.0
    %197 = vmatprep.subr.mxu0 0.0
    %198 = vmatpush1.msra.mxu0 0.0
    %199 = vmatprep.subr.mxu0 0.0
    %200 = vmatpush1.msra.mxu0 0.0
    %201 = vmatprep.subr.mxu0 0.0
    %202 = vmatpush1.msra.mxu0 0.0
    %203 = vmatprep.subr.mxu0 0.0
    %204 = vmatpush1.msra.mxu0 0.0
    %205 = vmatprep.subr.mxu0 0.0
    %206 = vmatpush1.msra.mxu0 0.0
    %207 = vmatprep.mubr.f32.mxu0 0.0
    %208 = vmatmul.mubr.f32.gmra.mrb[0].mxu0 %v116
    %v209 = vpop.f32.mrb[0].mxu0
    %v210 = vadd.f32 %v112, %v209
    %v211 = vpop.f32.mrb[0].mxu0
    %212 = vmatprep.mubr.f32.mxu0 0.0
    %213 = vmatmul.mubr.f32.gmra.mrb[0].mxu0 %v119
    %v214 = vpop.f32.mrb[0].mxu0
    %v215 = vadd.f32 %v112, %v214
    %v216 = vpop.f32.mrb[0].mxu0
    %217 = vmatprep.mubr.f32.mxu0 0.0
    %218 = vmatmul.mubr.f32.gmra.mrb[0].mxu0 %v122
    %v219 = vpop.f32.mrb[0].mxu0
    %v220 = vadd.f32 %v112, %v219
    %v221 = vpop.f32.mrb[0].mxu0
    %222 = vmatprep.mubr.f32.mxu0 0.0
    %223 = vmatmul.mubr.f32.gmra.mrb[0].mxu0 %v125
    %v224 = vpop.f32.mrb[0].mxu0
    %v225 = vadd.f32 %v112, %v224
    %v226 = vpop.f32.mrb[0].mxu0
    %227 = vmatprep.mubr.f32.mxu0 0.0
    %228 = vmatmul.mubr.f32.gmra.mrb[0].mxu0 %v128
    %v229 = vpop.f32.mrb[0].mxu0
    %v230 = vadd.f32 %v112, %v229
    %v231 = vpop.f32.mrb[0].mxu0
    %232 = vmatprep.mubr.f32.mxu0 0.0
    %233 = vmatmul.mubr.f32.gmra.mrb[0].mxu0 %v131
    %v234 = vpop.f32.mrb[0].mxu0
    %v235 = vadd.f32 %v112, %v234
    %v236 = vpop.f32.mrb[0].mxu0
    %237 = vmatprep.mubr.f32.mxu0 0.0
    %238 = vmatmul.mubr.f32.gmra.mrb[0].mxu0 %v134
    %v239 = vpop.f32.mrb[0].mxu0
    %v240 = vadd.f32 %v112, %v239
    %v241 = vpop.f32.mrb[0].mxu0
    %242 = vmatprep.mubr.f32.mxu0 0.0
    %243 = vmatmul.mubr.f32.gmra.mrb[0].mxu0 %v137
    %v244 = vpop.f32.mrb[0].mxu0
    %v245 = vadd.f32 %v112, %v244
    %v246 = vpop.f32.mrb[0].mxu0
    %247 = vdwg.mxu0
    %248 = vset.pattern.permute.xlu0 2
    %249 = vperm.xlu0 %248, %v72
    %v250 = vpop.permute.xlu0 %249
    %v252 = vmul.f32 %v210, %v250
    %v253 = vmul.f32 %v215, %v250
    %v254 = vmul.f32 %v220, %v250
    %v255 = vmul.f32 %v225, %v250
    %v256 = vmul.f32 %v230, %v250
    %v257 = vmul.f32 %v235, %v250
    %v258 = vmul.f32 %v240, %v250
    %v259 = vmul.f32 %v245, %v250
    %260 = vset.pattern.permute.xlu0 3
    %261 = vperm.xlu0 %260, %v72
    %v262 = vpop.permute.xlu0 %261
    %v264 = vadd.f32 %v252, %v262
    %v265 = vadd.f32 %v253, %v262
    %v266 = vadd.f32 %v254, %v262
    %v267 = vadd.f32 %v255, %v262
    %v268 = vadd.f32 %v256, %v262
    %v269 = vadd.f32 %v257, %v262
    %v270 = vadd.f32 %v258, %v262
    %v271 = vadd.f32 %v259, %v262
    %v272 = vld [vmem:[%s4] sm:$0xff]
    %v273 = vld [vmem:[%s4 + $0x8] sm:$0xff]
    %v274 = vld [vmem:[%s6] sm:$0xff]
    %v277 = vcombine.high %v272, %v272
    %v279 = vunpack.c.l.s4 1966171168
    %v280 = vunpack.c.0.s8 %v279
    %v281 = vlaneseq
    %v282 = vshrl.u32 %v281, 7
    %v283 = vsub.s32 %v280, %v282
    %v284 = vrot.slane %v272, %v283
    %v286 = vunpack.c.l.s4 1966171168
    %v287 = vunpack.c.0.s8 %v286
    %v288 = vlaneseq
    %v289 = vshrl.u32 %v288, 7
    %v290 = vsub.s32 %v287, %v289
    %v291 = vrot.slane %v277, %v290
    %v292 = vcombine.high %v284, %v284
    %v293 = vcombine.high %v291, %v291
    %v295 = vunpack.c.l.s4 1966171168
    %v296 = vunpack.c.0.s8 %v295
    %v297 = vlaneseq
    %v298 = vshrl.u32 %v297, 7
    %v299 = vsub.s32 %v296, %v298
    %v300 = vrot.slane %v284, %v299
    %v302 = vunpack.c.l.s4 1966171168
    %v303 = vunpack.c.0.s8 %v302
    %v304 = vlaneseq
    %v305 = vshrl.u32 %v304, 7
    %v306 = vsub.s32 %v303, %v305
    %v307 = vrot.slane %v291, %v306
    %v309 = vunpack.c.l.s4 1966171168
    %v310 = vunpack.c.0.s8 %v309
    %v311 = vlaneseq
    %v312 = vshrl.u32 %v311, 7
    %v313 = vsub.s32 %v310, %v312
    %v314 = vrot.slane %v292, %v313
    %v316 = vunpack.c.l.s4 1966171168
    %v317 = vunpack.c.0.s8 %v316
    %v318 = vlaneseq
    %v319 = vshrl.u32 %v318, 7
    %v320 = vsub.s32 %v317, %v319
    %v321 = vrot.slane %v293, %v320
    %v322 = vcombine.high %v300, %v300
    %v323 = vcombine.high %v307, %v307
    %v324 = vcombine.high %v314, %v314
    %v325 = vcombine.high %v321, %v321
    %v326 = vcombine.high %v273, %v273
    %v328 = vunpack.c.l.s4 1966171168
    %v329 = vunpack.c.0.s8 %v328
    %v330 = vlaneseq
    %v331 = vshrl.u32 %v330, 7
    %v332 = vsub.s32 %v329, %v331
    %v333 = vrot.slane %v273, %v332
    %v335 = vunpack.c.l.s4 1966171168
    %v336 = vunpack.c.0.s8 %v335
    %v337 = vlaneseq
    %v338 = vshrl.u32 %v337, 7
    %v339 = vsub.s32 %v336, %v338
    %v340 = vrot.slane %v326, %v339
    %v341 = vcombine.high %v333, %v333
    %v342 = vcombine.high %v340, %v340
    %v344 = vunpack.c.l.s4 1966171168
    %v345 = vunpack.c.0.s8 %v344
    %v346 = vlaneseq
    %v347 = vshrl.u32 %v346, 7
    %v348 = vsub.s32 %v345, %v347
    %v349 = vrot.slane %v333, %v348
    %v351 = vunpack.c.l.s4 1966171168
    %v352 = vunpack.c.0.s8 %v351
    %v353 = vlaneseq
    %v354 = vshrl.u32 %v353, 7
    %v355 = vsub.s32 %v352, %v354
    %v356 = vrot.slane %v340, %v355
    %v358 = vunpack.c.l.s4 1966171168
    %v359 = vunpack.c.0.s8 %v358
    %v360 = vlaneseq
    %v361 = vshrl.u32 %v360, 7
    %v362 = vsub.s32 %v359, %v361
    %v363 = vrot.slane %v341, %v362
    %v365 = vunpack.c.l.s4 1966171168
    %v366 = vunpack.c.0.s8 %v365
    %v367 = vlaneseq
    %v368 = vshrl.u32 %v367, 7
    %v369 = vsub.s32 %v366, %v368
    %v370 = vrot.slane %v342, %v369
    %v371 = vcombine.high %v349, %v349
    %v372 = vcombine.high %v356, %v356
    %v373 = vcombine.high %v363, %v363
    %v374 = vcombine.high %v370, %v370
    %v375 = vlaneseq
    %v376 = vshrl.u32 %v375, 7
    %v377 = vsub.s32 0, %v376
    %v378 = vrot.slane %v300, %v377
    %v379 = vlaneseq
    %v380 = vshrl.u32 %v379, 7
    %v381 = vsub.s32 0, %v380
    %v382 = vrot.slane %v314, %v381
    %v383 = vlaneseq
    %v384 = vshrl.u32 %v383, 7
    %v385 = vsub.s32 0, %v384
    %v386 = vrot.slane %v322, %v385
    %v387 = vlaneseq
    %v388 = vshrl.u32 %v387, 7
    %v389 = vsub.s32 0, %v388
    %v390 = vrot.slane %v324, %v389
    %v391 = vlaneseq
    %v392 = vshrl.u32 %v391, 7
    %v393 = vsub.s32 0, %v392
    %v394 = vrot.slane %v307, %v393
    %v395 = vlaneseq
    %v396 = vshrl.u32 %v395, 7
    %v397 = vsub.s32 0, %v396
    %v398 = vrot.slane %v321, %v397
    %v399 = vlaneseq
    %v400 = vshrl.u32 %v399, 7
    %v401 = vsub.s32 0, %v400
    %v402 = vrot.slane %v323, %v401
    %v403 = vlaneseq
    %v404 = vshrl.u32 %v403, 7
    %v405 = vsub.s32 0, %v404
    %v406 = vrot.slane %v325, %v405
    %v407 = vlaneseq
    %v408 = vshrl.u32 %v407, 7
    %v409 = vsub.s32 0, %v408
    %v410 = vrot.slane %v349, %v409
    %v411 = vlaneseq
    %v412 = vshrl.u32 %v411, 7
    %v413 = vsub.s32 0, %v412
    %v414 = vrot.slane %v363, %v413
    %v415 = vlaneseq
    %v416 = vshrl.u32 %v415, 7
    %v417 = vsub.s32 0, %v416
    %v418 = vrot.slane %v371, %v417
    %v419 = vlaneseq
    %v420 = vshrl.u32 %v419, 7
    %v421 = vsub.s32 0, %v420
    %v422 = vrot.slane %v373, %v421
    %v423 = vlaneseq
    %v424 = vshrl.u32 %v423, 7
    %v425 = vsub.s32 0, %v424
    %v426 = vrot.slane %v356, %v425
    %v427 = vlaneseq
    %v428 = vshrl.u32 %v427, 7
    %v429 = vsub.s32 0, %v428
    %v430 = vrot.slane %v370, %v429
    %v431 = vlaneseq
    %v432 = vshrl.u32 %v431, 7
    %v433 = vsub.s32 0, %v432
    %v434 = vrot.slane %v372, %v433
    %v435 = vlaneseq
    %v436 = vshrl.u32 %v435, 7
    %v437 = vsub.s32 0, %v436
    %v438 = vrot.slane %v374, %v437
    %439 = vset.pattern.permute.xlu0 0
    %440 = vperm.xlu0 %439, %v378
    %v441 = vpop.permute.xlu0 %440
    %443 = vset.pattern.permute.xlu0 0
    %444 = vperm.xlu0 %443, %v382
    %v445 = vpop.permute.xlu0 %444
    %447 = vset.pattern.permute.xlu0 0
    %448 = vperm.xlu0 %447, %v386
    %v449 = vpop.permute.xlu0 %448
    %451 = vset.pattern.permute.xlu0 0
    %452 = vperm.xlu0 %451, %v390
    %v453 = vpop.permute.xlu0 %452
    %455 = vset.pattern.permute.xlu0 0
    %456 = vperm.xlu0 %455, %v394
    %v457 = vpop.permute.xlu0 %456
    %459 = vset.pattern.permute.xlu0 0
    %460 = vperm.xlu0 %459, %v398
    %v461 = vpop.permute.xlu0 %460
    %463 = vset.pattern.permute.xlu0 0
    %464 = vperm.xlu0 %463, %v402
    %v465 = vpop.permute.xlu0 %464
    %467 = vset.pattern.permute.xlu0 0
    %468 = vperm.xlu0 %467, %v406
    %v469 = vpop.permute.xlu0 %468
    %471 = vset.pattern.permute.xlu0 0
    %472 = vperm.xlu0 %471, %v410
    %v473 = vpop.permute.xlu0 %472
    %475 = vset.pattern.permute.xlu0 0
    %476 = vperm.xlu0 %475, %v414
    %v477 = vpop.permute.xlu0 %476
    %479 = vset.pattern.permute.xlu0 0
    %480 = vperm.xlu0 %479, %v418
    %v481 = vpop.permute.xlu0 %480
    %483 = vset.pattern.permute.xlu0 0
    %484 = vperm.xlu0 %483, %v422
    %v485 = vpop.permute.xlu0 %484
    %487 = vset.pattern.permute.xlu0 0
    %488 = vperm.xlu0 %487, %v426
    %v489 = vpop.permute.xlu0 %488
    %491 = vset.pattern.permute.xlu0 0
    %492 = vperm.xlu0 %491, %v430
    %v493 = vpop.permute.xlu0 %492
    %495 = vset.pattern.permute.xlu0 0
    %496 = vperm.xlu0 %495, %v434
    %v497 = vpop.permute.xlu0 %496
    %499 = vset.pattern.permute.xlu0 0
    %500 = vperm.xlu0 %499, %v438
    %v501 = vpop.permute.xlu0 %500
    %v503 = vmul.f32 %v441, %v264
    %v504 = vmul.f32 %v445, %v264
    %v505 = vmul.f32 %v449, %v264
    %v506 = vmul.f32 %v453, %v264
    %v507 = vmul.f32 %v457, %v264
    %v508 = vmul.f32 %v461, %v264
    %v509 = vmul.f32 %v465, %v264
    %v510 = vmul.f32 %v469, %v264
    %v511 = vmul.f32 %v473, %v264
    %v512 = vmul.f32 %v477, %v264
    %v513 = vmul.f32 %v481, %v264
    %v514 = vmul.f32 %v485, %v264
    %v515 = vmul.f32 %v489, %v264
    %v516 = vmul.f32 %v493, %v264
    %v517 = vmul.f32 %v497, %v264
    %v518 = vmul.f32 %v501, %v264
    %519 = vset.pattern.permute.xlu0 1
    %520 = vperm.xlu0 %519, %v378
    %v521 = vpop.permute.xlu0 %520
    %523 = vset.pattern.permute.xlu0 1
    %524 = vperm.xlu0 %523, %v382
    %v525 = vpop.permute.xlu0 %524
    %527 = vset.pattern.permute.xlu0 1
    %528 = vperm.xlu0 %527, %v386
    %v529 = vpop.permute.xlu0 %528
    %531 = vset.pattern.permute.xlu0 1
    %532 = vperm.xlu0 %531, %v390
    %v533 = vpop.permute.xlu0 %532
    %535 = vset.pattern.permute.xlu0 1
    %536 = vperm.xlu0 %535, %v394
    %v537 = vpop.permute.xlu0 %536
    %539 = vset.pattern.permute.xlu0 1
    %540 = vperm.xlu0 %539, %v398
    %v541 = vpop.permute.xlu0 %540
    %543 = vset.pattern.permute.xlu0 1
    %544 = vperm.xlu0 %543, %v402
    %v545 = vpop.permute.xlu0 %544
    %547 = vset.pattern.permute.xlu0 1
    %548 = vperm.xlu0 %547, %v406
    %v549 = vpop.permute.xlu0 %548
    %551 = vset.pattern.permute.xlu0 1
    %552 = vperm.xlu0 %551, %v410
    %v553 = vpop.permute.xlu0 %552
    %555 = vset.pattern.permute.xlu0 1
    %556 = vperm.xlu0 %555, %v414
    %v557 = vpop.permute.xlu0 %556
    %559 = vset.pattern.permute.xlu0 1
    %560 = vperm.xlu0 %559, %v418
    %v561 = vpop.permute.xlu0 %560
    %563 = vset.pattern.permute.xlu0 1
    %564 = vperm.xlu0 %563, %v422
    %v565 = vpop.permute.xlu0 %564
    %567 = vset.pattern.permute.xlu0 1
    %568 = vperm.xlu0 %567, %v426
    %v569 = vpop.permute.xlu0 %568
    %571 = vset.pattern.permute.xlu0 1
    %572 = vperm.xlu0 %571, %v430
    %v573 = vpop.permute.xlu0 %572
    %575 = vset.pattern.permute.xlu0 1
    %576 = vperm.xlu0 %575, %v434
    %v577 = vpop.permute.xlu0 %576
    %579 = vset.pattern.permute.xlu0 1
    %580 = vperm.xlu0 %579, %v438
    %v581 = vpop.permute.xlu0 %580
    %v583 = vmul.f32 %v521, %v265
    %v584 = vmul.f32 %v525, %v265
    %v585 = vmul.f32 %v529, %v265
    %v586 = vmul.f32 %v533, %v265
    %v587 = vmul.f32 %v537, %v265
    %v588 = vmul.f32 %v541, %v265
    %v589 = vmul.f32 %v545, %v265
    %v590 = vmul.f32 %v549, %v265
    %v591 = vmul.f32 %v553, %v265
    %v592 = vmul.f32 %v557, %v265
    %v593 = vmul.f32 %v561, %v265
    %v594 = vmul.f32 %v565, %v265
    %v595 = vmul.f32 %v569, %v265
    %v596 = vmul.f32 %v573, %v265
    %v597 = vmul.f32 %v577, %v265
    %v598 = vmul.f32 %v581, %v265
    %v599 = vadd.f32 %v503, %v583
    %v600 = vadd.f32 %v504, %v584
    %v601 = vadd.f32 %v505, %v585
    %v602 = vadd.f32 %v506, %v586
    %v603 = vadd.f32 %v507, %v587
    %v604 = vadd.f32 %v508, %v588
    %v605 = vadd.f32 %v509, %v589
    %v606 = vadd.f32 %v510, %v590
    %v607 = vadd.f32 %v511, %v591
    %v608 = vadd.f32 %v512, %v592
    %v609 = vadd.f32 %v513, %v593
    %v610 = vadd.f32 %v514, %v594
    %v611 = vadd.f32 %v515, %v595
    %v612 = vadd.f32 %v516, %v596
    %v613 = vadd.f32 %v517, %v597
    %v614 = vadd.f32 %v518, %v598
    %615 = vset.pattern.permute.xlu0 2
    %616 = vperm.xlu0 %615, %v378
    %v617 = vpop.permute.xlu0 %616
    %619 = vset.pattern.permute.xlu0 2
    %620 = vperm.xlu0 %619, %v382
    %v621 = vpop.permute.xlu0 %620
    %623 = vset.pattern.permute.xlu0 2
    %624 = vperm.xlu0 %623, %v386
    %v625 = vpop.permute.xlu0 %624
    %627 = vset.pattern.permute.xlu0 2
    %628 = vperm.xlu0 %627, %v390
    %v629 = vpop.permute.xlu0 %628
    %631 = vset.pattern.permute.xlu0 2
    %632 = vperm.xlu0 %631, %v394
    %v633 = vpop.permute.xlu0 %632
    %635 = vset.pattern.permute.xlu0 2
    %636 = vperm.xlu0 %635, %v398
    %v637 = vpop.permute.xlu0 %636
    %639 = vset.pattern.permute.xlu0 2
    %640 = vperm.xlu0 %639, %v402
    %v641 = vpop.permute.xlu0 %640
    %643 = vset.pattern.permute.xlu0 2
    %644 = vperm.xlu0 %643, %v406
    %v645 = vpop.permute.xlu0 %644
    %647 = vset.pattern.permute.xlu0 2
    %648 = vperm.xlu0 %647, %v410
    %v649 = vpop.permute.xlu0 %648
    %651 = vset.pattern.permute.xlu0 2
    %652 = vperm.xlu0 %651, %v414
    %v653 = vpop.permute.xlu0 %652
    %655 = vset.pattern.permute.xlu0 2
    %656 = vperm.xlu0 %655, %v418
    %v657 = vpop.permute.xlu0 %656
    %659 = vset.pattern.permute.xlu0 2
    %660 = vperm.xlu0 %659, %v422
    %v661 = vpop.permute.xlu0 %660
    %663 = vset.pattern.permute.xlu0 2
    %664 = vperm.xlu0 %663, %v426
    %v665 = vpop.permute.xlu0 %664
    %667 = vset.pattern.permute.xlu0 2
    %668 = vperm.xlu0 %667, %v430
    %v669 = vpop.permute.xlu0 %668
    %671 = vset.pattern.permute.xlu0 2
    %672 = vperm.xlu0 %671, %v434
    %v673 = vpop.permute.xlu0 %672
    %675 = vset.pattern.permute.xlu0 2
    %676 = vperm.xlu0 %675, %v438
    %v677 = vpop.permute.xlu0 %676
    %v679 = vmul.f32 %v617, %v266
    %v680 = vmul.f32 %v621, %v266
    %v681 = vmul.f32 %v625, %v266
    %v682 = vmul.f32 %v629, %v266
    %v683 = vmul.f32 %v633, %v266
    %v684 = vmul.f32 %v637, %v266
    %v685 = vmul.f32 %v641, %v266
    %v686 = vmul.f32 %v645, %v266
    %v687 = vmul.f32 %v649, %v266
    %v688 = vmul.f32 %v653, %v266
    %v689 = vmul.f32 %v657, %v266
    %v690 = vmul.f32 %v661, %v266
    %v691 = vmul.f32 %v665, %v266
    %v692 = vmul.f32 %v669, %v266
    %v693 = vmul.f32 %v673, %v266
    %v694 = vmul.f32 %v677, %v266
    %v695 = vadd.f32 %v599, %v679
    %v696 = vadd.f32 %v600, %v680
    %v697 = vadd.f32 %v601, %v681
    %v698 = vadd.f32 %v602, %v682
    %v699 = vadd.f32 %v603, %v683
    %v700 = vadd.f32 %v604, %v684
    %v701 = vadd.f32 %v605, %v685
    %v702 = vadd.f32 %v606, %v686
    %v703 = vadd.f32 %v607, %v687
    %v704 = vadd.f32 %v608, %v688
    %v705 = vadd.f32 %v609, %v689
    %v706 = vadd.f32 %v610, %v690
    %v707 = vadd.f32 %v611, %v691
    %v708 = vadd.f32 %v612, %v692
    %v709 = vadd.f32 %v613, %v693
    %v710 = vadd.f32 %v614, %v694
    %711 = vset.pattern.permute.xlu0 3
    %712 = vperm.xlu0 %711, %v378
    %v713 = vpop.permute.xlu0 %712
    %715 = vset.pattern.permute.xlu0 3
    %716 = vperm.xlu0 %715, %v382
    %v717 = vpop.permute.xlu0 %716
    %719 = vset.pattern.permute.xlu0 3
    %720 = vperm.xlu0 %719, %v386
    %v721 = vpop.permute.xlu0 %720
    %723 = vset.pattern.permute.xlu0 3
    %724 = vperm.xlu0 %723, %v390
    %v725 = vpop.permute.xlu0 %724
    %727 = vset.pattern.permute.xlu0 3
    %728 = vperm.xlu0 %727, %v394
    %v729 = vpop.permute.xlu0 %728
    %731 = vset.pattern.permute.xlu0 3
    %732 = vperm.xlu0 %731, %v398
    %v733 = vpop.permute.xlu0 %732
    %735 = vset.pattern.permute.xlu0 3
    %736 = vperm.xlu0 %735, %v402
    %v737 = vpop.permute.xlu0 %736
    %739 = vset.pattern.permute.xlu0 3
    %740 = vperm.xlu0 %739, %v406
    %v741 = vpop.permute.xlu0 %740
    %743 = vset.pattern.permute.xlu0 3
    %744 = vperm.xlu0 %743, %v410
    %v745 = vpop.permute.xlu0 %744
    %747 = vset.pattern.permute.xlu0 3
    %748 = vperm.xlu0 %747, %v414
    %v749 = vpop.permute.xlu0 %748
    %751 = vset.pattern.permute.xlu0 3
    %752 = vperm.xlu0 %751, %v418
    %v753 = vpop.permute.xlu0 %752
    %755 = vset.pattern.permute.xlu0 3
    %756 = vperm.xlu0 %755, %v422
    %v757 = vpop.permute.xlu0 %756
    %759 = vset.pattern.permute.xlu0 3
    %760 = vperm.xlu0 %759, %v426
    %v761 = vpop.permute.xlu0 %760
    %763 = vset.pattern.permute.xlu0 3
    %764 = vperm.xlu0 %763, %v430
    %v765 = vpop.permute.xlu0 %764
    %767 = vset.pattern.permute.xlu0 3
    %768 = vperm.xlu0 %767, %v434
    %v769 = vpop.permute.xlu0 %768
    %771 = vset.pattern.permute.xlu0 3
    %772 = vperm.xlu0 %771, %v438
    %v773 = vpop.permute.xlu0 %772
    %v775 = vmul.f32 %v713, %v267
    %v776 = vmul.f32 %v717, %v267
    %v777 = vmul.f32 %v721, %v267
    %v778 = vmul.f32 %v725, %v267
    %v779 = vmul.f32 %v729, %v267
    %v780 = vmul.f32 %v733, %v267
    %v781 = vmul.f32 %v737, %v267
    %v782 = vmul.f32 %v741, %v267
    %v783 = vmul.f32 %v745, %v267
    %v784 = vmul.f32 %v749, %v267
    %v785 = vmul.f32 %v753, %v267
    %v786 = vmul.f32 %v757, %v267
    %v787 = vmul.f32 %v761, %v267
    %v788 = vmul.f32 %v765, %v267
    %v789 = vmul.f32 %v769, %v267
    %v790 = vmul.f32 %v773, %v267
    %v791 = vadd.f32 %v695, %v775
    %v792 = vadd.f32 %v696, %v776
    %v793 = vadd.f32 %v697, %v777
    %v794 = vadd.f32 %v698, %v778
    %v795 = vadd.f32 %v699, %v779
    %v796 = vadd.f32 %v700, %v780
    %v797 = vadd.f32 %v701, %v781
    %v798 = vadd.f32 %v702, %v782
    %v799 = vadd.f32 %v703, %v783
    %v800 = vadd.f32 %v704, %v784
    %v801 = vadd.f32 %v705, %v785
    %v802 = vadd.f32 %v706, %v786
    %v803 = vadd.f32 %v707, %v787
    %v804 = vadd.f32 %v708, %v788
    %v805 = vadd.f32 %v709, %v789
    %v806 = vadd.f32 %v710, %v790
    %807 = vset.pattern.permute.xlu0 4
    %808 = vperm.xlu0 %807, %v378
    %v809 = vpop.permute.xlu0 %808
    %811 = vset.pattern.permute.xlu0 4
    %812 = vperm.xlu0 %811, %v382
    %v813 = vpop.permute.xlu0 %812
    %815 = vset.pattern.permute.xlu0 4
    %816 = vperm.xlu0 %815, %v386
    %v817 = vpop.permute.xlu0 %816
    %819 = vset.pattern.permute.xlu0 4
    %820 = vperm.xlu0 %819, %v390
    %v821 = vpop.permute.xlu0 %820
    %823 = vset.pattern.permute.xlu0 4
    %824 = vperm.xlu0 %823, %v394
    %v825 = vpop.permute.xlu0 %824
    %827 = vset.pattern.permute.xlu0 4
    %828 = vperm.xlu0 %827, %v398
    %v829 = vpop.permute.xlu0 %828
    %831 = vset.pattern.permute.xlu0 4
    %832 = vperm.xlu0 %831, %v402
    %v833 = vpop.permute.xlu0 %832
    %835 = vset.pattern.permute.xlu0 4
    %836 = vperm.xlu0 %835, %v406
    %v837 = vpop.permute.xlu0 %836
    %839 = vset.pattern.permute.xlu0 4
    %840 = vperm.xlu0 %839, %v410
    %v841 = vpop.permute.xlu0 %840
    %843 = vset.pattern.permute.xlu0 4
    %844 = vperm.xlu0 %843, %v414
    %v845 = vpop.permute.xlu0 %844
    %847 = vset.pattern.permute.xlu0 4
    %848 = vperm.xlu0 %847, %v418
    %v849 = vpop.permute.xlu0 %848
    %851 = vset.pattern.permute.xlu0 4
    %852 = vperm.xlu0 %851, %v422
    %v853 = vpop.permute.xlu0 %852
    %855 = vset.pattern.permute.xlu0 4
    %856 = vperm.xlu0 %855, %v426
    %v857 = vpop.permute.xlu0 %856
    %859 = vset.pattern.permute.xlu0 4
    %860 = vperm.xlu0 %859, %v430
    %v861 = vpop.permute.xlu0 %860
    %863 = vset.pattern.permute.xlu0 4
    %864 = vperm.xlu0 %863, %v434
    %v865 = vpop.permute.xlu0 %864
    %867 = vset.pattern.permute.xlu0 4
    %868 = vperm.xlu0 %867, %v438
    %v869 = vpop.permute.xlu0 %868
    %v871 = vmul.f32 %v809, %v268
    %v872 = vmul.f32 %v813, %v268
    %v873 = vmul.f32 %v817, %v268
    %v874 = vmul.f32 %v821, %v268
    %v875 = vmul.f32 %v825, %v268
    %v876 = vmul.f32 %v829, %v268
    %v877 = vmul.f32 %v833, %v268
    %v878 = vmul.f32 %v837, %v268
    %v879 = vmul.f32 %v841, %v268
    %v880 = vmul.f32 %v845, %v268
    %v881 = vmul.f32 %v849, %v268
    %v882 = vmul.f32 %v853, %v268
    %v883 = vmul.f32 %v857, %v268
    %v884 = vmul.f32 %v861, %v268
    %v885 = vmul.f32 %v865, %v268
    %v886 = vmul.f32 %v869, %v268
    %v887 = vadd.f32 %v791, %v871
    %v888 = vadd.f32 %v792, %v872
    %v889 = vadd.f32 %v793, %v873
    %v890 = vadd.f32 %v794, %v874
    %v891 = vadd.f32 %v795, %v875
    %v892 = vadd.f32 %v796, %v876
    %v893 = vadd.f32 %v797, %v877
    %v894 = vadd.f32 %v798, %v878
    %v895 = vadd.f32 %v799, %v879
    %v896 = vadd.f32 %v800, %v880
    %v897 = vadd.f32 %v801, %v881
    %v898 = vadd.f32 %v802, %v882
    %v899 = vadd.f32 %v803, %v883
    %v900 = vadd.f32 %v804, %v884
    %v901 = vadd.f32 %v805, %v885
    %v902 = vadd.f32 %v806, %v886
    %903 = vset.pattern.permute.xlu0 5
    %904 = vperm.xlu0 %903, %v378
    %v905 = vpop.permute.xlu0 %904
    %907 = vset.pattern.permute.xlu0 5
    %908 = vperm.xlu0 %907, %v382
    %v909 = vpop.permute.xlu0 %908
    %911 = vset.pattern.permute.xlu0 5
    %912 = vperm.xlu0 %911, %v386
    %v913 = vpop.permute.xlu0 %912
    %915 = vset.pattern.permute.xlu0 5
    %916 = vperm.xlu0 %915, %v390
    %v917 = vpop.permute.xlu0 %916
    %919 = vset.pattern.permute.xlu0 5
    %920 = vperm.xlu0 %919, %v394
    %v921 = vpop.permute.xlu0 %920
    %923 = vset.pattern.permute.xlu0 5
    %924 = vperm.xlu0 %923, %v398
    %v925 = vpop.permute.xlu0 %924
    %927 = vset.pattern.permute.xlu0 5
    %928 = vperm.xlu0 %927, %v402
    %v929 = vpop.permute.xlu0 %928
    %931 = vset.pattern.permute.xlu0 5
    %932 = vperm.xlu0 %931, %v406
    %v933 = vpop.permute.xlu0 %932
    %935 = vset.pattern.permute.xlu0 5
    %936 = vperm.xlu0 %935, %v410
    %v937 = vpop.permute.xlu0 %936
    %939 = vset.pattern.permute.xlu0 5
    %940 = vperm.xlu0 %939, %v414
    %v941 = vpop.permute.xlu0 %940
    %943 = vset.pattern.permute.xlu0 5
    %944 = vperm.xlu0 %943, %v418
    %v945 = vpop.permute.xlu0 %944
    %947 = vset.pattern.permute.xlu0 5
    %948 = vperm.xlu0 %947, %v422
    %v949 = vpop.permute.xlu0 %948
    %951 = vset.pattern.permute.xlu0 5
    %952 = vperm.xlu0 %951, %v426
    %v953 = vpop.permute.xlu0 %952
    %955 = vset.pattern.permute.xlu0 5
    %956 = vperm.xlu0 %955, %v430
    %v957 = vpop.permute.xlu0 %956
    %959 = vset.pattern.permute.xlu0 5
    %960 = vperm.xlu0 %959, %v434
    %v961 = vpop.permute.xlu0 %960
    %963 = vset.pattern.permute.xlu0 5
    %964 = vperm.xlu0 %963, %v438
    %v965 = vpop.permute.xlu0 %964
    %v967 = vmul.f32 %v905, %v269
    %v968 = vmul.f32 %v909, %v269
    %v969 = vmul.f32 %v913, %v269
    %v970 = vmul.f32 %v917, %v269
    %v971 = vmul.f32 %v921, %v269
    %v972 = vmul.f32 %v925, %v269
    %v973 = vmul.f32 %v929, %v269
    %v974 = vmul.f32 %v933, %v269
    %v975 = vmul.f32 %v937, %v269
    %v976 = vmul.f32 %v941, %v269
    %v977 = vmul.f32 %v945, %v269
    %v978 = vmul.f32 %v949, %v269
    %v979 = vmul.f32 %v953, %v269
    %v980 = vmul.f32 %v957, %v269
    %v981 = vmul.f32 %v961, %v269
    %v982 = vmul.f32 %v965, %v269
    %v983 = vadd.f32 %v887, %v967
    %v984 = vadd.f32 %v888, %v968
    %v985 = vadd.f32 %v889, %v969
    %v986 = vadd.f32 %v890, %v970
    %v987 = vadd.f32 %v891, %v971
    %v988 = vadd.f32 %v892, %v972
    %v989 = vadd.f32 %v893, %v973
    %v990 = vadd.f32 %v894, %v974
    %v991 = vadd.f32 %v895, %v975
    %v992 = vadd.f32 %v896, %v976
    %v993 = vadd.f32 %v897, %v977
    %v994 = vadd.f32 %v898, %v978
    %v995 = vadd.f32 %v899, %v979
    %v996 = vadd.f32 %v900, %v980
    %v997 = vadd.f32 %v901, %v981
    %v998 = vadd.f32 %v902, %v982
    %999 = vset.pattern.permute.xlu0 6
    %1000 = vperm.xlu0 %999, %v378
    %v1001 = vpop.permute.xlu0 %1000
    %1003 = vset.pattern.permute.xlu0 6
    %1004 = vperm.xlu0 %1003, %v382
    %v1005 = vpop.permute.xlu0 %1004
    %1007 = vset.pattern.permute.xlu0 6
    %1008 = vperm.xlu0 %1007, %v386
    %v1009 = vpop.permute.xlu0 %1008
    %1011 = vset.pattern.permute.xlu0 6
    %1012 = vperm.xlu0 %1011, %v390
    %v1013 = vpop.permute.xlu0 %1012
    %1015 = vset.pattern.permute.xlu0 6
    %1016 = vperm.xlu0 %1015, %v394
    %v1017 = vpop.permute.xlu0 %1016
    %1019 = vset.pattern.permute.xlu0 6
    %1020 = vperm.xlu0 %1019, %v398
    %v1021 = vpop.permute.xlu0 %1020
    %1023 = vset.pattern.permute.xlu0 6
    %1024 = vperm.xlu0 %1023, %v402
    %v1025 = vpop.permute.xlu0 %1024
    %1027 = vset.pattern.permute.xlu0 6
    %1028 = vperm.xlu0 %1027, %v406
    %v1029 = vpop.permute.xlu0 %1028
    %1031 = vset.pattern.permute.xlu0 6
    %1032 = vperm.xlu0 %1031, %v410
    %v1033 = vpop.permute.xlu0 %1032
    %1035 = vset.pattern.permute.xlu0 6
    %1036 = vperm.xlu0 %1035, %v414
    %v1037 = vpop.permute.xlu0 %1036
    %1039 = vset.pattern.permute.xlu0 6
    %1040 = vperm.xlu0 %1039, %v418
    %v1041 = vpop.permute.xlu0 %1040
    %1043 = vset.pattern.permute.xlu0 6
    %1044 = vperm.xlu0 %1043, %v422
    %v1045 = vpop.permute.xlu0 %1044
    %1047 = vset.pattern.permute.xlu0 6
    %1048 = vperm.xlu0 %1047, %v426
    %v1049 = vpop.permute.xlu0 %1048
    %1051 = vset.pattern.permute.xlu0 6
    %1052 = vperm.xlu0 %1051, %v430
    %v1053 = vpop.permute.xlu0 %1052
    %1055 = vset.pattern.permute.xlu0 6
    %1056 = vperm.xlu0 %1055, %v434
    %v1057 = vpop.permute.xlu0 %1056
    %1059 = vset.pattern.permute.xlu0 6
    %1060 = vperm.xlu0 %1059, %v438
    %v1061 = vpop.permute.xlu0 %1060
    %v1063 = vmul.f32 %v1001, %v270
    %v1064 = vmul.f32 %v1005, %v270
    %v1065 = vmul.f32 %v1009, %v270
    %v1066 = vmul.f32 %v1013, %v270
    %v1067 = vmul.f32 %v1017, %v270
    %v1068 = vmul.f32 %v1021, %v270
    %v1069 = vmul.f32 %v1025, %v270
    %v1070 = vmul.f32 %v1029, %v270
    %v1071 = vmul.f32 %v1033, %v270
    %v1072 = vmul.f32 %v1037, %v270
    %v1073 = vmul.f32 %v1041, %v270
    %v1074 = vmul.f32 %v1045, %v270
    %v1075 = vmul.f32 %v1049, %v270
    %v1076 = vmul.f32 %v1053, %v270
    %v1077 = vmul.f32 %v1057, %v270
    %v1078 = vmul.f32 %v1061, %v270
    %v1079 = vadd.f32 %v983, %v1063
    %v1080 = vadd.f32 %v984, %v1064
    %v1081 = vadd.f32 %v985, %v1065
    %v1082 = vadd.f32 %v986, %v1066
    %v1083 = vadd.f32 %v987, %v1067
    %v1084 = vadd.f32 %v988, %v1068
    %v1085 = vadd.f32 %v989, %v1069
    %v1086 = vadd.f32 %v990, %v1070
    %v1087 = vadd.f32 %v991, %v1071
    %v1088 = vadd.f32 %v992, %v1072
    %v1089 = vadd.f32 %v993, %v1073
    %v1090 = vadd.f32 %v994, %v1074
    %v1091 = vadd.f32 %v995, %v1075
    %v1092 = vadd.f32 %v996, %v1076
    %v1093 = vadd.f32 %v997, %v1077
    %v1094 = vadd.f32 %v998, %v1078
    %1095 = vset.pattern.permute.xlu0 7
    %1096 = vperm.xlu0 %1095, %v378
    %v1097 = vpop.permute.xlu0 %1096
    %1099 = vset.pattern.permute.xlu0 7
    %1100 = vperm.xlu0 %1099, %v382
    %v1101 = vpop.permute.xlu0 %1100
    %1103 = vset.pattern.permute.xlu0 7
    %1104 = vperm.xlu0 %1103, %v386
    %v1105 = vpop.permute.xlu0 %1104
    %1107 = vset.pattern.permute.xlu0 7
    %1108 = vperm.xlu0 %1107, %v390
    %v1109 = vpop.permute.xlu0 %1108
    %1111 = vset.pattern.permute.xlu0 7
    %1112 = vperm.xlu0 %1111, %v394
    %v1113 = vpop.permute.xlu0 %1112
    %1115 = vset.pattern.permute.xlu0 7
    %1116 = vperm.xlu0 %1115, %v398
    %v1117 = vpop.permute.xlu0 %1116
    %1119 = vset.pattern.permute.xlu0 7
    %1120 = vperm.xlu0 %1119, %v402
    %v1121 = vpop.permute.xlu0 %1120
    %1123 = vset.pattern.permute.xlu0 7
    %1124 = vperm.xlu0 %1123, %v406
    %v1125 = vpop.permute.xlu0 %1124
    %1127 = vset.pattern.permute.xlu0 7
    %1128 = vperm.xlu0 %1127, %v410
    %v1129 = vpop.permute.xlu0 %1128
    %1131 = vset.pattern.permute.xlu0 7
    %1132 = vperm.xlu0 %1131, %v414
    %v1133 = vpop.permute.xlu0 %1132
    %1135 = vset.pattern.permute.xlu0 7
    %1136 = vperm.xlu0 %1135, %v418
    %v1137 = vpop.permute.xlu0 %1136
    %1139 = vset.pattern.permute.xlu0 7
    %1140 = vperm.xlu0 %1139, %v422
    %v1141 = vpop.permute.xlu0 %1140
    %1143 = vset.pattern.permute.xlu0 7
    %1144 = vperm.xlu0 %1143, %v426
    %v1145 = vpop.permute.xlu0 %1144
    %1147 = vset.pattern.permute.xlu0 7
    %1148 = vperm.xlu0 %1147, %v430
    %v1149 = vpop.permute.xlu0 %1148
    %1151 = vset.pattern.permute.xlu0 7
    %1152 = vperm.xlu0 %1151, %v434
    %v1153 = vpop.permute.xlu0 %1152
    %1155 = vset.pattern.permute.xlu0 7
    %1156 = vperm.xlu0 %1155, %v438
    %v1157 = vpop.permute.xlu0 %1156
    %v1159 = vmul.f32 %v1097, %v271
    %v1160 = vmul.f32 %v1101, %v271
    %v1161 = vmul.f32 %v1105, %v271
    %v1162 = vmul.f32 %v1109, %v271
    %v1163 = vmul.f32 %v1113, %v271
    %v1164 = vmul.f32 %v1117, %v271
    %v1165 = vmul.f32 %v1121, %v271
    %v1166 = vmul.f32 %v1125, %v271
    %v1167 = vmul.f32 %v1129, %v271
    %v1168 = vmul.f32 %v1133, %v271
    %v1169 = vmul.f32 %v1137, %v271
    %v1170 = vmul.f32 %v1141, %v271
    %v1171 = vmul.f32 %v1145, %v271
    %v1172 = vmul.f32 %v1149, %v271
    %v1173 = vmul.f32 %v1153, %v271
    %v1174 = vmul.f32 %v1157, %v271
    %v1175 = vadd.f32 %v1079, %v1159
    %v1176 = vadd.f32 %v1080, %v1160
    %v1177 = vadd.f32 %v1081, %v1161
    %v1178 = vadd.f32 %v1082, %v1162
    %v1179 = vadd.f32 %v1083, %v1163
    %v1180 = vadd.f32 %v1084, %v1164
    %v1181 = vadd.f32 %v1085, %v1165
    %v1182 = vadd.f32 %v1086, %v1166
    %v1183 = vadd.f32 %v1087, %v1167
    %v1184 = vadd.f32 %v1088, %v1168
    %v1185 = vadd.f32 %v1089, %v1169
    %v1186 = vadd.f32 %v1090, %v1170
    %v1187 = vadd.f32 %v1091, %v1171
    %v1188 = vadd.f32 %v1092, %v1172
    %v1189 = vadd.f32 %v1093, %v1173
    %v1190 = vadd.f32 %v1094, %v1174
    %v1191 = vld [vmem:[%s5] sm:$0x1]
    %v1192 = vld [vmem:[%s5 + $0x1] sm:$0x1]
    %v1193 = vld [vmem:[%s5 + $0x2] sm:$0x1]
    %v1194 = vld [vmem:[%s5 + $0x3] sm:$0x1]
    %v1195 = vld [vmem:[%s5 + $0x4] sm:$0x1]
    %v1196 = vld [vmem:[%s5 + $0x5] sm:$0x1]
    %v1197 = vld [vmem:[%s5 + $0x6] sm:$0x1]
    %v1198 = vld [vmem:[%s5 + $0x7] sm:$0x1]
    %v1199 = vld [vmem:[%s5 + $0x8] sm:$0x1]
    %v1200 = vld [vmem:[%s5 + $0x9] sm:$0x1]
    %v1201 = vld [vmem:[%s5 + $0xa] sm:$0x1]
    %v1202 = vld [vmem:[%s5 + $0xb] sm:$0x1]
    %v1203 = vld [vmem:[%s5 + $0xc] sm:$0x1]
    %v1204 = vld [vmem:[%s5 + $0xd] sm:$0x1]
    %v1205 = vld [vmem:[%s5 + $0xe] sm:$0x1]
    %v1206 = vld [vmem:[%s5 + $0xf] sm:$0x1]
    %v1223 = vlaneseq
    %v1224 = vshrl.u32 %v1223, 7
    %v1225 = vsub.s32 0, %v1224
    %v1226 = vrot.slane %v1191, %v1225
    %v1227 = vlaneseq
    %v1228 = vshrl.u32 %v1227, 7
    %v1229 = vsub.s32 0, %v1228
    %v1230 = vrot.slane %v1192, %v1229
    %v1231 = vlaneseq
    %v1232 = vshrl.u32 %v1231, 7
    %v1233 = vsub.s32 0, %v1232
    %v1234 = vrot.slane %v1193, %v1233
    %v1235 = vlaneseq
    %v1236 = vshrl.u32 %v1235, 7
    %v1237 = vsub.s32 0, %v1236
    %v1238 = vrot.slane %v1194, %v1237
    %v1239 = vlaneseq
    %v1240 = vshrl.u32 %v1239, 7
    %v1241 = vsub.s32 0, %v1240
    %v1242 = vrot.slane %v1195, %v1241
    %v1243 = vlaneseq
    %v1244 = vshrl.u32 %v1243, 7
    %v1245 = vsub.s32 0, %v1244
    %v1246 = vrot.slane %v1196, %v1245
    %v1247 = vlaneseq
    %v1248 = vshrl.u32 %v1247, 7
    %v1249 = vsub.s32 0, %v1248
    %v1250 = vrot.slane %v1197, %v1249
    %v1251 = vlaneseq
    %v1252 = vshrl.u32 %v1251, 7
    %v1253 = vsub.s32 0, %v1252
    %v1254 = vrot.slane %v1198, %v1253
    %v1255 = vlaneseq
    %v1256 = vshrl.u32 %v1255, 7
    %v1257 = vsub.s32 0, %v1256
    %v1258 = vrot.slane %v1199, %v1257
    %v1259 = vlaneseq
    %v1260 = vshrl.u32 %v1259, 7
    %v1261 = vsub.s32 0, %v1260
    %v1262 = vrot.slane %v1200, %v1261
    %v1263 = vlaneseq
    %v1264 = vshrl.u32 %v1263, 7
    %v1265 = vsub.s32 0, %v1264
    %v1266 = vrot.slane %v1201, %v1265
    %v1267 = vlaneseq
    %v1268 = vshrl.u32 %v1267, 7
    %v1269 = vsub.s32 0, %v1268
    %v1270 = vrot.slane %v1202, %v1269
    %v1271 = vlaneseq
    %v1272 = vshrl.u32 %v1271, 7
    %v1273 = vsub.s32 0, %v1272
    %v1274 = vrot.slane %v1203, %v1273
    %v1275 = vlaneseq
    %v1276 = vshrl.u32 %v1275, 7
    %v1277 = vsub.s32 0, %v1276
    %v1278 = vrot.slane %v1204, %v1277
    %v1279 = vlaneseq
    %v1280 = vshrl.u32 %v1279, 7
    %v1281 = vsub.s32 0, %v1280
    %v1282 = vrot.slane %v1205, %v1281
    %v1283 = vlaneseq
    %v1284 = vshrl.u32 %v1283, 7
    %v1285 = vsub.s32 0, %v1284
    %v1286 = vrot.slane %v1206, %v1285
    %1287 = vset.pattern.permute.xlu0 0
    %1288 = vperm.xlu0 %1287, %v1226
    %v1289 = vpop.permute.xlu0 %1288
    %1291 = vset.pattern.permute.xlu0 0
    %1292 = vperm.xlu0 %1291, %v1230
    %v1293 = vpop.permute.xlu0 %1292
    %1295 = vset.pattern.permute.xlu0 0
    %1296 = vperm.xlu0 %1295, %v1234
    %v1297 = vpop.permute.xlu0 %1296
    %1299 = vset.pattern.permute.xlu0 0
    %1300 = vperm.xlu0 %1299, %v1238
    %v1301 = vpop.permute.xlu0 %1300
    %1303 = vset.pattern.permute.xlu0 0
    %1304 = vperm.xlu0 %1303, %v1242
    %v1305 = vpop.permute.xlu0 %1304
    %1307 = vset.pattern.permute.xlu0 0
    %1308 = vperm.xlu0 %1307, %v1246
    %v1309 = vpop.permute.xlu0 %1308
    %1311 = vset.pattern.permute.xlu0 0
    %1312 = vperm.xlu0 %1311, %v1250
    %v1313 = vpop.permute.xlu0 %1312
    %1315 = vset.pattern.permute.xlu0 0
    %1316 = vperm.xlu0 %1315, %v1254
    %v1317 = vpop.permute.xlu0 %1316
    %1319 = vset.pattern.permute.xlu0 0
    %1320 = vperm.xlu0 %1319, %v1258
    %v1321 = vpop.permute.xlu0 %1320
    %1323 = vset.pattern.permute.xlu0 0
    %1324 = vperm.xlu0 %1323, %v1262
    %v1325 = vpop.permute.xlu0 %1324
    %1327 = vset.pattern.permute.xlu0 0
    %1328 = vperm.xlu0 %1327, %v1266
    %v1329 = vpop.permute.xlu0 %1328
    %1331 = vset.pattern.permute.xlu0 0
    %1332 = vperm.xlu0 %1331, %v1270
    %v1333 = vpop.permute.xlu0 %1332
    %1335 = vset.pattern.permute.xlu0 0
    %1336 = vperm.xlu0 %1335, %v1274
    %v1337 = vpop.permute.xlu0 %1336
    %1339 = vset.pattern.permute.xlu0 0
    %1340 = vperm.xlu0 %1339, %v1278
    %v1341 = vpop.permute.xlu0 %1340
    %1343 = vset.pattern.permute.xlu0 0
    %1344 = vperm.xlu0 %1343, %v1282
    %v1345 = vpop.permute.xlu0 %1344
    %1347 = vset.pattern.permute.xlu0 0
    %1348 = vperm.xlu0 %1347, %v1286
    %v1349 = vpop.permute.xlu0 %1348
    %v1351 = vadd.f32 %v1175, %v1289
    %v1352 = vadd.f32 %v1176, %v1293
    %v1353 = vadd.f32 %v1177, %v1297
    %v1354 = vadd.f32 %v1178, %v1301
    %v1355 = vadd.f32 %v1179, %v1305
    %v1356 = vadd.f32 %v1180, %v1309
    %v1357 = vadd.f32 %v1181, %v1313
    %v1358 = vadd.f32 %v1182, %v1317
    %v1359 = vadd.f32 %v1183, %v1321
    %v1360 = vadd.f32 %v1184, %v1325
    %v1361 = vadd.f32 %v1185, %v1329
    %v1362 = vadd.f32 %v1186, %v1333
    %v1363 = vadd.f32 %v1187, %v1337
    %v1364 = vadd.f32 %v1188, %v1341
    %v1365 = vadd.f32 %v1189, %v1345
    %v1366 = vadd.f32 %v1190, %v1349
    %v1367 = vmul.f32 %v1351, 0.5
    %v1368 = vmul.f32 %v1352, 0.5
    %v1369 = vmul.f32 %v1353, 0.5
    %v1370 = vmul.f32 %v1354, 0.5
    %v1371 = vmul.f32 %v1355, 0.5
    %v1372 = vmul.f32 %v1356, 0.5
    %v1373 = vmul.f32 %v1357, 0.5
    %v1374 = vmul.f32 %v1358, 0.5
    %v1375 = vmul.f32 %v1359, 0.5
    %v1376 = vmul.f32 %v1360, 0.5
    %v1377 = vmul.f32 %v1361, 0.5
    %v1378 = vmul.f32 %v1362, 0.5
    %v1379 = vmul.f32 %v1363, 0.5
    %v1380 = vmul.f32 %v1364, 0.5
    %v1381 = vmul.f32 %v1365, 0.5
    %v1382 = vmul.f32 %v1366, 0.5
    %v1383 = vmul.f32 %v1351, 0.70710677
    %v1384 = vmul.f32 %v1352, 0.70710677
    %v1385 = vmul.f32 %v1353, 0.70710677
    %v1386 = vmul.f32 %v1354, 0.70710677
    %v1387 = vmul.f32 %v1355, 0.70710677
    %v1388 = vmul.f32 %v1356, 0.70710677
    %v1389 = vmul.f32 %v1357, 0.70710677
    %v1390 = vmul.f32 %v1358, 0.70710677
    %v1391 = vmul.f32 %v1359, 0.70710677
    %v1392 = vmul.f32 %v1360, 0.70710677
    %v1393 = vmul.f32 %v1361, 0.70710677
    %v1394 = vmul.f32 %v1362, 0.70710677
    %v1395 = vmul.f32 %v1363, 0.70710677
    %v1396 = vmul.f32 %v1364, 0.70710677
    %v1397 = vmul.f32 %v1365, 0.70710677
    %v1398 = vmul.f32 %v1366, 0.70710677
    %v1399 = verf.f32.pop %v1383
    %v1400 = verf.f32.pop %v1384
    %v1401 = verf.f32.pop %v1385
    %v1402 = verf.f32.pop %v1386
    %v1403 = verf.f32.pop %v1387
    %v1404 = verf.f32.pop %v1388
    %v1405 = verf.f32.pop %v1389
    %v1406 = verf.f32.pop %v1390
    %v1407 = verf.f32.pop %v1391
    %v1408 = verf.f32.pop %v1392
    %v1409 = verf.f32.pop %v1393
    %v1410 = verf.f32.pop %v1394
    %v1411 = verf.f32.pop %v1395
    %v1412 = verf.f32.pop %v1396
    %v1413 = verf.f32.pop %v1397
    %v1414 = verf.f32.pop %v1398
    %v1415 = vadd.f32 %v1399, 1.0
    %v1416 = vadd.f32 %v1400, 1.0
    %v1417 = vadd.f32 %v1401, 1.0
    %v1418 = vadd.f32 %v1402, 1.0
    %v1419 = vadd.f32 %v1403, 1.0
    %v1420 = vadd.f32 %v1404, 1.0
    %v1421 = vadd.f32 %v1405, 1.0
    %v1422 = vadd.f32 %v1406, 1.0
    %v1423 = vadd.f32 %v1407, 1.0
    %v1424 = vadd.f32 %v1408, 1.0
    %v1425 = vadd.f32 %v1409, 1.0
    %v1426 = vadd.f32 %v1410, 1.0
    %v1427 = vadd.f32 %v1411, 1.0
    %v1428 = vadd.f32 %v1412, 1.0
    %v1429 = vadd.f32 %v1413, 1.0
    %v1430 = vadd.f32 %v1414, 1.0
    %v1431 = vmul.f32 %v1367, %v1415
    %v1432 = vmul.f32 %v1368, %v1416
    %v1433 = vmul.f32 %v1369, %v1417
    %v1434 = vmul.f32 %v1370, %v1418
    %v1435 = vmul.f32 %v1371, %v1419
    %v1436 = vmul.f32 %v1372, %v1420
    %v1437 = vmul.f32 %v1373, %v1421
    %v1438 = vmul.f32 %v1374, %v1422
    %v1439 = vmul.f32 %v1375, %v1423
    %v1440 = vmul.f32 %v1376, %v1424
    %v1441 = vmul.f32 %v1377, %v1425
    %v1442 = vmul.f32 %v1378, %v1426
    %v1443 = vmul.f32 %v1379, %v1427
    %v1444 = vmul.f32 %v1380, %v1428
    %v1445 = vmul.f32 %v1381, %v1429
    %v1446 = vmul.f32 %v1382, %v1430
    %v1448 = vcombine.high %v274, %v274
    %v1450 = vunpack.c.l.s4 1966171168
    %v1451 = vunpack.c.0.s8 %v1450
    %v1452 = vlaneseq
    %v1453 = vshrl.u32 %v1452, 7
    %v1454 = vsub.s32 %v1451, %v1453
    %v1455 = vrot.slane %v274, %v1454
    %v1457 = vunpack.c.l.s4 1966171168
    %v1458 = vunpack.c.0.s8 %v1457
    %v1459 = vlaneseq
    %v1460 = vshrl.u32 %v1459, 7
    %v1461 = vsub.s32 %v1458, %v1460
    %v1462 = vrot.slane %v1448, %v1461
    %v1463 = vcombine.high %v1455, %v1455
    %v1464 = vcombine.high %v1462, %v1462
    %v1466 = vunpack.c.l.s4 1966171168
    %v1467 = vunpack.c.0.s8 %v1466
    %v1468 = vlaneseq
    %v1469 = vshrl.u32 %v1468, 7
    %v1470 = vsub.s32 %v1467, %v1469
    %v1471 = vrot.slane %v1455, %v1470
    %v1473 = vunpack.c.l.s4 1966171168
    %v1474 = vunpack.c.0.s8 %v1473
    %v1475 = vlaneseq
    %v1476 = vshrl.u32 %v1475, 7
    %v1477 = vsub.s32 %v1474, %v1476
    %v1478 = vrot.slane %v1462, %v1477
    %v1480 = vunpack.c.l.s4 1966171168
    %v1481 = vunpack.c.0.s8 %v1480
    %v1482 = vlaneseq
    %v1483 = vshrl.u32 %v1482, 7
    %v1484 = vsub.s32 %v1481, %v1483
    %v1485 = vrot.slane %v1463, %v1484
    %v1487 = vunpack.c.l.s4 1966171168
    %v1488 = vunpack.c.0.s8 %v1487
    %v1489 = vlaneseq
    %v1490 = vshrl.u32 %v1489, 7
    %v1491 = vsub.s32 %v1488, %v1490
    %v1492 = vrot.slane %v1464, %v1491
    %v1493 = vcombine.high %v1471, %v1471
    %v1494 = vcombine.high %v1478, %v1478
    %v1495 = vcombine.high %v1485, %v1485
    %v1496 = vcombine.high %v1492, %v1492
    %v1497 = vlaneseq
    %v1498 = vshrl.u32 %v1497, 7
    %v1499 = vsub.s32 0, %v1498
    %v1500 = vrot.slane %v1471, %v1499
    %v1501 = vlaneseq
    %v1502 = vshrl.u32 %v1501, 7
    %v1503 = vsub.s32 0, %v1502
    %v1504 = vrot.slane %v1485, %v1503
    %v1505 = vlaneseq
    %v1506 = vshrl.u32 %v1505, 7
    %v1507 = vsub.s32 0, %v1506
    %v1508 = vrot.slane %v1493, %v1507
    %v1509 = vlaneseq
    %v1510 = vshrl.u32 %v1509, 7
    %v1511 = vsub.s32 0, %v1510
    %v1512 = vrot.slane %v1495, %v1511
    %v1513 = vlaneseq
    %v1514 = vshrl.u32 %v1513, 7
    %v1515 = vsub.s32 0, %v1514
    %v1516 = vrot.slane %v1478, %v1515
    %v1517 = vlaneseq
    %v1518 = vshrl.u32 %v1517, 7
    %v1519 = vsub.s32 0, %v1518
    %v1520 = vrot.slane %v1492, %v1519
    %v1521 = vlaneseq
    %v1522 = vshrl.u32 %v1521, 7
    %v1523 = vsub.s32 0, %v1522
    %v1524 = vrot.slane %v1494, %v1523
    %v1525 = vlaneseq
    %v1526 = vshrl.u32 %v1525, 7
    %v1527 = vsub.s32 0, %v1526
    %v1528 = vrot.slane %v1496, %v1527
    %1529 = vset.pattern.permute.xlu0 0
    %1530 = vperm.xlu0 %1529, %v1500
    %v1531 = vpop.permute.xlu0 %1530
    %1533 = vset.pattern.permute.xlu0 0
    %1534 = vperm.xlu0 %1533, %v1504
    %v1535 = vpop.permute.xlu0 %1534
    %1537 = vset.pattern.permute.xlu0 0
    %1538 = vperm.xlu0 %1537, %v1508
    %v1539 = vpop.permute.xlu0 %1538
    %1541 = vset.pattern.permute.xlu0 0
    %1542 = vperm.xlu0 %1541, %v1512
    %v1543 = vpop.permute.xlu0 %1542
    %1545 = vset.pattern.permute.xlu0 0
    %1546 = vperm.xlu0 %1545, %v1516
    %v1547 = vpop.permute.xlu0 %1546
    %1549 = vset.pattern.permute.xlu0 0
    %1550 = vperm.xlu0 %1549, %v1520
    %v1551 = vpop.permute.xlu0 %1550
    %1553 = vset.pattern.permute.xlu0 0
    %1554 = vperm.xlu0 %1553, %v1524
    %v1555 = vpop.permute.xlu0 %1554
    %1557 = vset.pattern.permute.xlu0 0
    %1558 = vperm.xlu0 %1557, %v1528
    %v1559 = vpop.permute.xlu0 %1558
    %v1561 = vmul.f32 %v1531, %v1431
    %v1562 = vmul.f32 %v1535, %v1431
    %v1563 = vmul.f32 %v1539, %v1431
    %v1564 = vmul.f32 %v1543, %v1431
    %v1565 = vmul.f32 %v1547, %v1431
    %v1566 = vmul.f32 %v1551, %v1431
    %v1567 = vmul.f32 %v1555, %v1431
    %v1568 = vmul.f32 %v1559, %v1431
    %1569 = vset.pattern.permute.xlu0 1
    %1570 = vperm.xlu0 %1569, %v1500
    %v1571 = vpop.permute.xlu0 %1570
    %1573 = vset.pattern.permute.xlu0 1
    %1574 = vperm.xlu0 %1573, %v1504
    %v1575 = vpop.permute.xlu0 %1574
    %1577 = vset.pattern.permute.xlu0 1
    %1578 = vperm.xlu0 %1577, %v1508
    %v1579 = vpop.permute.xlu0 %1578
    %1581 = vset.pattern.permute.xlu0 1
    %1582 = vperm.xlu0 %1581, %v1512
    %v1583 = vpop.permute.xlu0 %1582
    %1585 = vset.pattern.permute.xlu0 1
    %1586 = vperm.xlu0 %1585, %v1516
    %v1587 = vpop.permute.xlu0 %1586
    %1589 = vset.pattern.permute.xlu0 1
    %1590 = vperm.xlu0 %1589, %v1520
    %v1591 = vpop.permute.xlu0 %1590
    %1593 = vset.pattern.permute.xlu0 1
    %1594 = vperm.xlu0 %1593, %v1524
    %v1595 = vpop.permute.xlu0 %1594
    %1597 = vset.pattern.permute.xlu0 1
    %1598 = vperm.xlu0 %1597, %v1528
    %v1599 = vpop.permute.xlu0 %1598
    %v1601 = vmul.f32 %v1571, %v1432
    %v1602 = vmul.f32 %v1575, %v1432
    %v1603 = vmul.f32 %v1579, %v1432
    %v1604 = vmul.f32 %v1583, %v1432
    %v1605 = vmul.f32 %v1587, %v1432
    %v1606 = vmul.f32 %v1591, %v1432
    %v1607 = vmul.f32 %v1595, %v1432
    %v1608 = vmul.f32 %v1599, %v1432
    %v1609 = vadd.f32 %v1561, %v1601
    %v1610 = vadd.f32 %v1562, %v1602
    %v1611 = vadd.f32 %v1563, %v1603
    %v1612 = vadd.f32 %v1564, %v1604
    %v1613 = vadd.f32 %v1565, %v1605
    %v1614 = vadd.f32 %v1566, %v1606
    %v1615 = vadd.f32 %v1567, %v1607
    %v1616 = vadd.f32 %v1568, %v1608
    %1617 = vset.pattern.permute.xlu0 2
    %1618 = vperm.xlu0 %1617, %v1500
    %v1619 = vpop.permute.xlu0 %1618
    %1621 = vset.pattern.permute.xlu0 2
    %1622 = vperm.xlu0 %1621, %v1504
    %v1623 = vpop.permute.xlu0 %1622
    %1625 = vset.pattern.permute.xlu0 2
    %1626 = vperm.xlu0 %1625, %v1508
    %v1627 = vpop.permute.xlu0 %1626
    %1629 = vset.pattern.permute.xlu0 2
    %1630 = vperm.xlu0 %1629, %v1512
    %v1631 = vpop.permute.xlu0 %1630
    %1633 = vset.pattern.permute.xlu0 2
    %1634 = vperm.xlu0 %1633, %v1516
    %v1635 = vpop.permute.xlu0 %1634
    %1637 = vset.pattern.permute.xlu0 2
    %1638 = vperm.xlu0 %1637, %v1520
    %v1639 = vpop.permute.xlu0 %1638
    %1641 = vset.pattern.permute.xlu0 2
    %1642 = vperm.xlu0 %1641, %v1524
    %v1643 = vpop.permute.xlu0 %1642
    %1645 = vset.pattern.permute.xlu0 2
    %1646 = vperm.xlu0 %1645, %v1528
    %v1647 = vpop.permute.xlu0 %1646
    %v1649 = vmul.f32 %v1619, %v1433
    %v1650 = vmul.f32 %v1623, %v1433
    %v1651 = vmul.f32 %v1627, %v1433
    %v1652 = vmul.f32 %v1631, %v1433
    %v1653 = vmul.f32 %v1635, %v1433
    %v1654 = vmul.f32 %v1639, %v1433
    %v1655 = vmul.f32 %v1643, %v1433
    %v1656 = vmul.f32 %v1647, %v1433
    %v1657 = vadd.f32 %v1609, %v1649
    %v1658 = vadd.f32 %v1610, %v1650
    %v1659 = vadd.f32 %v1611, %v1651
    %v1660 = vadd.f32 %v1612, %v1652
    %v1661 = vadd.f32 %v1613, %v1653
    %v1662 = vadd.f32 %v1614, %v1654
    %v1663 = vadd.f32 %v1615, %v1655
    %v1664 = vadd.f32 %v1616, %v1656
    %1665 = vset.pattern.permute.xlu0 3
    %1666 = vperm.xlu0 %1665, %v1500
    %v1667 = vpop.permute.xlu0 %1666
    %1669 = vset.pattern.permute.xlu0 3
    %1670 = vperm.xlu0 %1669, %v1504
    %v1671 = vpop.permute.xlu0 %1670
    %1673 = vset.pattern.permute.xlu0 3
    %1674 = vperm.xlu0 %1673, %v1508
    %v1675 = vpop.permute.xlu0 %1674
    %1677 = vset.pattern.permute.xlu0 3
    %1678 = vperm.xlu0 %1677, %v1512
    %v1679 = vpop.permute.xlu0 %1678
    %1681 = vset.pattern.permute.xlu0 3
    %1682 = vperm.xlu0 %1681, %v1516
    %v1683 = vpop.permute.xlu0 %1682
    %1685 = vset.pattern.permute.xlu0 3
    %1686 = vperm.xlu0 %1685, %v1520
    %v1687 = vpop.permute.xlu0 %1686
    %1689 = vset.pattern.permute.xlu0 3
    %1690 = vperm.xlu0 %1689, %v1524
    %v1691 = vpop.permute.xlu0 %1690
    %1693 = vset.pattern.permute.xlu0 3
    %1694 = vperm.xlu0 %1693, %v1528
    %v1695 = vpop.permute.xlu0 %1694
    %v1697 = vmul.f32 %v1667, %v1434
    %v1698 = vmul.f32 %v1671, %v1434
    %v1699 = vmul.f32 %v1675, %v1434
    %v1700 = vmul.f32 %v1679, %v1434
    %v1701 = vmul.f32 %v1683, %v1434
    %v1702 = vmul.f32 %v1687, %v1434
    %v1703 = vmul.f32 %v1691, %v1434
    %v1704 = vmul.f32 %v1695, %v1434
    %v1705 = vadd.f32 %v1657, %v1697
    %v1706 = vadd.f32 %v1658, %v1698
    %v1707 = vadd.f32 %v1659, %v1699
    %v1708 = vadd.f32 %v1660, %v1700
    %v1709 = vadd.f32 %v1661, %v1701
    %v1710 = vadd.f32 %v1662, %v1702
    %v1711 = vadd.f32 %v1663, %v1703
    %v1712 = vadd.f32 %v1664, %v1704
    %1713 = vset.pattern.permute.xlu0 4
    %1714 = vperm.xlu0 %1713, %v1500
    %v1715 = vpop.permute.xlu0 %1714
    %1717 = vset.pattern.permute.xlu0 4
    %1718 = vperm.xlu0 %1717, %v1504
    %v1719 = vpop.permute.xlu0 %1718
    %1721 = vset.pattern.permute.xlu0 4
    %1722 = vperm.xlu0 %1721, %v1508
    %v1723 = vpop.permute.xlu0 %1722
    %1725 = vset.pattern.permute.xlu0 4
    %1726 = vperm.xlu0 %1725, %v1512
    %v1727 = vpop.permute.xlu0 %1726
    %1729 = vset.pattern.permute.xlu0 4
    %1730 = vperm.xlu0 %1729, %v1516
    %v1731 = vpop.permute.xlu0 %1730
    %1733 = vset.pattern.permute.xlu0 4
    %1734 = vperm.xlu0 %1733, %v1520
    %v1735 = vpop.permute.xlu0 %1734
    %1737 = vset.pattern.permute.xlu0 4
    %1738 = vperm.xlu0 %1737, %v1524
    %v1739 = vpop.permute.xlu0 %1738
    %1741 = vset.pattern.permute.xlu0 4
    %1742 = vperm.xlu0 %1741, %v1528
    %v1743 = vpop.permute.xlu0 %1742
    %v1745 = vmul.f32 %v1715, %v1435
    %v1746 = vmul.f32 %v1719, %v1435
    %v1747 = vmul.f32 %v1723, %v1435
    %v1748 = vmul.f32 %v1727, %v1435
    %v1749 = vmul.f32 %v1731, %v1435
    %v1750 = vmul.f32 %v1735, %v1435
    %v1751 = vmul.f32 %v1739, %v1435
    %v1752 = vmul.f32 %v1743, %v1435
    %v1753 = vadd.f32 %v1705, %v1745
    %v1754 = vadd.f32 %v1706, %v1746
    %v1755 = vadd.f32 %v1707, %v1747
    %v1756 = vadd.f32 %v1708, %v1748
    %v1757 = vadd.f32 %v1709, %v1749
    %v1758 = vadd.f32 %v1710, %v1750
    %v1759 = vadd.f32 %v1711, %v1751
    %v1760 = vadd.f32 %v1712, %v1752
    %1761 = vset.pattern.permute.xlu0 5
    %1762 = vperm.xlu0 %1761, %v1500
    %v1763 = vpop.permute.xlu0 %1762
    %1765 = vset.pattern.permute.xlu0 5
    %1766 = vperm.xlu0 %1765, %v1504
    %v1767 = vpop.permute.xlu0 %1766
    %1769 = vset.pattern.permute.xlu0 5
    %1770 = vperm.xlu0 %1769, %v1508
    %v1771 = vpop.permute.xlu0 %1770
    %1773 = vset.pattern.permute.xlu0 5
    %1774 = vperm.xlu0 %1773, %v1512
    %v1775 = vpop.permute.xlu0 %1774
    %1777 = vset.pattern.permute.xlu0 5
    %1778 = vperm.xlu0 %1777, %v1516
    %v1779 = vpop.permute.xlu0 %1778
    %1781 = vset.pattern.permute.xlu0 5
    %1782 = vperm.xlu0 %1781, %v1520
    %v1783 = vpop.permute.xlu0 %1782
    %1785 = vset.pattern.permute.xlu0 5
    %1786 = vperm.xlu0 %1785, %v1524
    %v1787 = vpop.permute.xlu0 %1786
    %1789 = vset.pattern.permute.xlu0 5
    %1790 = vperm.xlu0 %1789, %v1528
    %v1791 = vpop.permute.xlu0 %1790
    %v1793 = vmul.f32 %v1763, %v1436
    %v1794 = vmul.f32 %v1767, %v1436
    %v1795 = vmul.f32 %v1771, %v1436
    %v1796 = vmul.f32 %v1775, %v1436
    %v1797 = vmul.f32 %v1779, %v1436
    %v1798 = vmul.f32 %v1783, %v1436
    %v1799 = vmul.f32 %v1787, %v1436
    %v1800 = vmul.f32 %v1791, %v1436
    %v1801 = vadd.f32 %v1753, %v1793
    %v1802 = vadd.f32 %v1754, %v1794
    %v1803 = vadd.f32 %v1755, %v1795
    %v1804 = vadd.f32 %v1756, %v1796
    %v1805 = vadd.f32 %v1757, %v1797
    %v1806 = vadd.f32 %v1758, %v1798
    %v1807 = vadd.f32 %v1759, %v1799
    %v1808 = vadd.f32 %v1760, %v1800
    %1809 = vset.pattern.permute.xlu0 6
    %1810 = vperm.xlu0 %1809, %v1500
    %v1811 = vpop.permute.xlu0 %1810
    %1813 = vset.pattern.permute.xlu0 6
    %1814 = vperm.xlu0 %1813, %v1504
    %v1815 = vpop.permute.xlu0 %1814
    %1817 = vset.pattern.permute.xlu0 6
    %1818 = vperm.xlu0 %1817, %v1508
    %v1819 = vpop.permute.xlu0 %1818
    %1821 = vset.pattern.permute.xlu0 6
    %1822 = vperm.xlu0 %1821, %v1512
    %v1823 = vpop.permute.xlu0 %1822
    %1825 = vset.pattern.permute.xlu0 6
    %1826 = vperm.xlu0 %1825, %v1516
    %v1827 = vpop.permute.xlu0 %1826
    %1829 = vset.pattern.permute.xlu0 6
    %1830 = vperm.xlu0 %1829, %v1520
    %v1831 = vpop.permute.xlu0 %1830
    %1833 = vset.pattern.permute.xlu0 6
    %1834 = vperm.xlu0 %1833, %v1524
    %v1835 = vpop.permute.xlu0 %1834
    %1837 = vset.pattern.permute.xlu0 6
    %1838 = vperm.xlu0 %1837, %v1528
    %v1839 = vpop.permute.xlu0 %1838
    %v1841 = vmul.f32 %v1811, %v1437
    %v1842 = vmul.f32 %v1815, %v1437
    %v1843 = vmul.f32 %v1819, %v1437
    %v1844 = vmul.f32 %v1823, %v1437
    %v1845 = vmul.f32 %v1827, %v1437
    %v1846 = vmul.f32 %v1831, %v1437
    %v1847 = vmul.f32 %v1835, %v1437
    %v1848 = vmul.f32 %v1839, %v1437
    %v1849 = vadd.f32 %v1801, %v1841
    %v1850 = vadd.f32 %v1802, %v1842
    %v1851 = vadd.f32 %v1803, %v1843
    %v1852 = vadd.f32 %v1804, %v1844
    %v1853 = vadd.f32 %v1805, %v1845
    %v1854 = vadd.f32 %v1806, %v1846
    %v1855 = vadd.f32 %v1807, %v1847
    %v1856 = vadd.f32 %v1808, %v1848
    %1857 = vset.pattern.permute.xlu0 7
    %1858 = vperm.xlu0 %1857, %v1500
    %v1859 = vpop.permute.xlu0 %1858
    %1861 = vset.pattern.permute.xlu0 7
    %1862 = vperm.xlu0 %1861, %v1504
    %v1863 = vpop.permute.xlu0 %1862
    %1865 = vset.pattern.permute.xlu0 7
    %1866 = vperm.xlu0 %1865, %v1508
    %v1867 = vpop.permute.xlu0 %1866
    %1869 = vset.pattern.permute.xlu0 7
    %1870 = vperm.xlu0 %1869, %v1512
    %v1871 = vpop.permute.xlu0 %1870
    %1873 = vset.pattern.permute.xlu0 7
    %1874 = vperm.xlu0 %1873, %v1516
    %v1875 = vpop.permute.xlu0 %1874
    %1877 = vset.pattern.permute.xlu0 7
    %1878 = vperm.xlu0 %1877, %v1520
    %v1879 = vpop.permute.xlu0 %1878
    %1881 = vset.pattern.permute.xlu0 7
    %1882 = vperm.xlu0 %1881, %v1524
    %v1883 = vpop.permute.xlu0 %1882
    %1885 = vset.pattern.permute.xlu0 7
    %1886 = vperm.xlu0 %1885, %v1528
    %v1887 = vpop.permute.xlu0 %1886
    %v1889 = vmul.f32 %v1859, %v1438
    %v1890 = vmul.f32 %v1863, %v1438
    %v1891 = vmul.f32 %v1867, %v1438
    %v1892 = vmul.f32 %v1871, %v1438
    %v1893 = vmul.f32 %v1875, %v1438
    %v1894 = vmul.f32 %v1879, %v1438
    %v1895 = vmul.f32 %v1883, %v1438
    %v1896 = vmul.f32 %v1887, %v1438
    %v1897 = vadd.f32 %v1849, %v1889
    %v1898 = vadd.f32 %v1850, %v1890
    %v1899 = vadd.f32 %v1851, %v1891
    %v1900 = vadd.f32 %v1852, %v1892
    %v1901 = vadd.f32 %v1853, %v1893
    %v1902 = vadd.f32 %v1854, %v1894
    %v1903 = vadd.f32 %v1855, %v1895
    %v1904 = vadd.f32 %v1856, %v1896
    %1905 = vset.pattern.permute.xlu0 8
    %1906 = vperm.xlu0 %1905, %v1500
    %v1907 = vpop.permute.xlu0 %1906
    %1909 = vset.pattern.permute.xlu0 8
    %1910 = vperm.xlu0 %1909, %v1504
    %v1911 = vpop.permute.xlu0 %1910
    %1913 = vset.pattern.permute.xlu0 8
    %1914 = vperm.xlu0 %1913, %v1508
    %v1915 = vpop.permute.xlu0 %1914
    %1917 = vset.pattern.permute.xlu0 8
    %1918 = vperm.xlu0 %1917, %v1512
    %v1919 = vpop.permute.xlu0 %1918
    %1921 = vset.pattern.permute.xlu0 8
    %1922 = vperm.xlu0 %1921, %v1516
    %v1923 = vpop.permute.xlu0 %1922
    %1925 = vset.pattern.permute.xlu0 8
    %1926 = vperm.xlu0 %1925, %v1520
    %v1927 = vpop.permute.xlu0 %1926
    %1929 = vset.pattern.permute.xlu0 8
    %1930 = vperm.xlu0 %1929, %v1524
    %v1931 = vpop.permute.xlu0 %1930
    %1933 = vset.pattern.permute.xlu0 8
    %1934 = vperm.xlu0 %1933, %v1528
    %v1935 = vpop.permute.xlu0 %1934
    %v1937 = vmul.f32 %v1907, %v1439
    %v1938 = vmul.f32 %v1911, %v1439
    %v1939 = vmul.f32 %v1915, %v1439
    %v1940 = vmul.f32 %v1919, %v1439
    %v1941 = vmul.f32 %v1923, %v1439
    %v1942 = vmul.f32 %v1927, %v1439
    %v1943 = vmul.f32 %v1931, %v1439
    %v1944 = vmul.f32 %v1935, %v1439
    %v1945 = vadd.f32 %v1897, %v1937
    %v1946 = vadd.f32 %v1898, %v1938
    %v1947 = vadd.f32 %v1899, %v1939
    %v1948 = vadd.f32 %v1900, %v1940
    %v1949 = vadd.f32 %v1901, %v1941
    %v1950 = vadd.f32 %v1902, %v1942
    %v1951 = vadd.f32 %v1903, %v1943
    %v1952 = vadd.f32 %v1904, %v1944
    %1953 = vset.pattern.permute.xlu0 9
    %1954 = vperm.xlu0 %1953, %v1500
    %v1955 = vpop.permute.xlu0 %1954
    %1957 = vset.pattern.permute.xlu0 9
    %1958 = vperm.xlu0 %1957, %v1504
    %v1959 = vpop.permute.xlu0 %1958
    %1961 = vset.pattern.permute.xlu0 9
    %1962 = vperm.xlu0 %1961, %v1508
    %v1963 = vpop.permute.xlu0 %1962
    %1965 = vset.pattern.permute.xlu0 9
    %1966 = vperm.xlu0 %1965, %v1512
    %v1967 = vpop.permute.xlu0 %1966
    %1969 = vset.pattern.permute.xlu0 9
    %1970 = vperm.xlu0 %1969, %v1516
    %v1971 = vpop.permute.xlu0 %1970
    %1973 = vset.pattern.permute.xlu0 9
    %1974 = vperm.xlu0 %1973, %v1520
    %v1975 = vpop.permute.xlu0 %1974
    %1977 = vset.pattern.permute.xlu0 9
    %1978 = vperm.xlu0 %1977, %v1524
    %v1979 = vpop.permute.xlu0 %1978
    %1981 = vset.pattern.permute.xlu0 9
    %1982 = vperm.xlu0 %1981, %v1528
    %v1983 = vpop.permute.xlu0 %1982
    %v1985 = vmul.f32 %v1955, %v1440
    %v1986 = vmul.f32 %v1959, %v1440
    %v1987 = vmul.f32 %v1963, %v1440
    %v1988 = vmul.f32 %v1967, %v1440
    %v1989 = vmul.f32 %v1971, %v1440
    %v1990 = vmul.f32 %v1975, %v1440
    %v1991 = vmul.f32 %v1979, %v1440
    %v1992 = vmul.f32 %v1983, %v1440
    %v1993 = vadd.f32 %v1945, %v1985
    %v1994 = vadd.f32 %v1946, %v1986
    %v1995 = vadd.f32 %v1947, %v1987
    %v1996 = vadd.f32 %v1948, %v1988
    %v1997 = vadd.f32 %v1949, %v1989
    %v1998 = vadd.f32 %v1950, %v1990
    %v1999 = vadd.f32 %v1951, %v1991
    %v2000 = vadd.f32 %v1952, %v1992
    %2001 = vset.pattern.permute.xlu0 10
    %2002 = vperm.xlu0 %2001, %v1500
    %v2003 = vpop.permute.xlu0 %2002
    %2005 = vset.pattern.permute.xlu0 10
    %2006 = vperm.xlu0 %2005, %v1504
    %v2007 = vpop.permute.xlu0 %2006
    %2009 = vset.pattern.permute.xlu0 10
    %2010 = vperm.xlu0 %2009, %v1508
    %v2011 = vpop.permute.xlu0 %2010
    %2013 = vset.pattern.permute.xlu0 10
    %2014 = vperm.xlu0 %2013, %v1512
    %v2015 = vpop.permute.xlu0 %2014
    %2017 = vset.pattern.permute.xlu0 10
    %2018 = vperm.xlu0 %2017, %v1516
    %v2019 = vpop.permute.xlu0 %2018
    %2021 = vset.pattern.permute.xlu0 10
    %2022 = vperm.xlu0 %2021, %v1520
    %v2023 = vpop.permute.xlu0 %2022
    %2025 = vset.pattern.permute.xlu0 10
    %2026 = vperm.xlu0 %2025, %v1524
    %v2027 = vpop.permute.xlu0 %2026
    %2029 = vset.pattern.permute.xlu0 10
    %2030 = vperm.xlu0 %2029, %v1528
    %v2031 = vpop.permute.xlu0 %2030
    %v2033 = vmul.f32 %v2003, %v1441
    %v2034 = vmul.f32 %v2007, %v1441
    %v2035 = vmul.f32 %v2011, %v1441
    %v2036 = vmul.f32 %v2015, %v1441
    %v2037 = vmul.f32 %v2019, %v1441
    %v2038 = vmul.f32 %v2023, %v1441
    %v2039 = vmul.f32 %v2027, %v1441
    %v2040 = vmul.f32 %v2031, %v1441
    %v2041 = vadd.f32 %v1993, %v2033
    %v2042 = vadd.f32 %v1994, %v2034
    %v2043 = vadd.f32 %v1995, %v2035
    %v2044 = vadd.f32 %v1996, %v2036
    %v2045 = vadd.f32 %v1997, %v2037
    %v2046 = vadd.f32 %v1998, %v2038
    %v2047 = vadd.f32 %v1999, %v2039
    %v2048 = vadd.f32 %v2000, %v2040
    %2049 = vset.pattern.permute.xlu0 11
    %2050 = vperm.xlu0 %2049, %v1500
    %v2051 = vpop.permute.xlu0 %2050
    %2053 = vset.pattern.permute.xlu0 11
    %2054 = vperm.xlu0 %2053, %v1504
    %v2055 = vpop.permute.xlu0 %2054
    %2057 = vset.pattern.permute.xlu0 11
    %2058 = vperm.xlu0 %2057, %v1508
    %v2059 = vpop.permute.xlu0 %2058
    %2061 = vset.pattern.permute.xlu0 11
    %2062 = vperm.xlu0 %2061, %v1512
    %v2063 = vpop.permute.xlu0 %2062
    %2065 = vset.pattern.permute.xlu0 11
    %2066 = vperm.xlu0 %2065, %v1516
    %v2067 = vpop.permute.xlu0 %2066
    %2069 = vset.pattern.permute.xlu0 11
    %2070 = vperm.xlu0 %2069, %v1520
    %v2071 = vpop.permute.xlu0 %2070
    %2073 = vset.pattern.permute.xlu0 11
    %2074 = vperm.xlu0 %2073, %v1524
    %v2075 = vpop.permute.xlu0 %2074
    %2077 = vset.pattern.permute.xlu0 11
    %2078 = vperm.xlu0 %2077, %v1528
    %v2079 = vpop.permute.xlu0 %2078
    %v2081 = vmul.f32 %v2051, %v1442
    %v2082 = vmul.f32 %v2055, %v1442
    %v2083 = vmul.f32 %v2059, %v1442
    %v2084 = vmul.f32 %v2063, %v1442
    %v2085 = vmul.f32 %v2067, %v1442
    %v2086 = vmul.f32 %v2071, %v1442
    %v2087 = vmul.f32 %v2075, %v1442
    %v2088 = vmul.f32 %v2079, %v1442
    %v2089 = vadd.f32 %v2041, %v2081
    %v2090 = vadd.f32 %v2042, %v2082
    %v2091 = vadd.f32 %v2043, %v2083
    %v2092 = vadd.f32 %v2044, %v2084
    %v2093 = vadd.f32 %v2045, %v2085
    %v2094 = vadd.f32 %v2046, %v2086
    %v2095 = vadd.f32 %v2047, %v2087
    %v2096 = vadd.f32 %v2048, %v2088
    %2097 = vset.pattern.permute.xlu0 12
    %2098 = vperm.xlu0 %2097, %v1500
    %v2099 = vpop.permute.xlu0 %2098
    %2101 = vset.pattern.permute.xlu0 12
    %2102 = vperm.xlu0 %2101, %v1504
    %v2103 = vpop.permute.xlu0 %2102
    %2105 = vset.pattern.permute.xlu0 12
    %2106 = vperm.xlu0 %2105, %v1508
    %v2107 = vpop.permute.xlu0 %2106
    %2109 = vset.pattern.permute.xlu0 12
    %2110 = vperm.xlu0 %2109, %v1512
    %v2111 = vpop.permute.xlu0 %2110
    %2113 = vset.pattern.permute.xlu0 12
    %2114 = vperm.xlu0 %2113, %v1516
    %v2115 = vpop.permute.xlu0 %2114
    %2117 = vset.pattern.permute.xlu0 12
    %2118 = vperm.xlu0 %2117, %v1520
    %v2119 = vpop.permute.xlu0 %2118
    %2121 = vset.pattern.permute.xlu0 12
    %2122 = vperm.xlu0 %2121, %v1524
    %v2123 = vpop.permute.xlu0 %2122
    %2125 = vset.pattern.permute.xlu0 12
    %2126 = vperm.xlu0 %2125, %v1528
    %v2127 = vpop.permute.xlu0 %2126
    %v2129 = vmul.f32 %v2099, %v1443
    %v2130 = vmul.f32 %v2103, %v1443
    %v2131 = vmul.f32 %v2107, %v1443
    %v2132 = vmul.f32 %v2111, %v1443
    %v2133 = vmul.f32 %v2115, %v1443
    %v2134 = vmul.f32 %v2119, %v1443
    %v2135 = vmul.f32 %v2123, %v1443
    %v2136 = vmul.f32 %v2127, %v1443
    %v2137 = vadd.f32 %v2089, %v2129
    %v2138 = vadd.f32 %v2090, %v2130
    %v2139 = vadd.f32 %v2091, %v2131
    %v2140 = vadd.f32 %v2092, %v2132
    %v2141 = vadd.f32 %v2093, %v2133
    %v2142 = vadd.f32 %v2094, %v2134
    %v2143 = vadd.f32 %v2095, %v2135
    %v2144 = vadd.f32 %v2096, %v2136
    %2145 = vset.pattern.permute.xlu0 13
    %2146 = vperm.xlu0 %2145, %v1500
    %v2147 = vpop.permute.xlu0 %2146
    %2149 = vset.pattern.permute.xlu0 13
    %2150 = vperm.xlu0 %2149, %v1504
    %v2151 = vpop.permute.xlu0 %2150
    %2153 = vset.pattern.permute.xlu0 13
    %2154 = vperm.xlu0 %2153, %v1508
    %v2155 = vpop.permute.xlu0 %2154
    %2157 = vset.pattern.permute.xlu0 13
    %2158 = vperm.xlu0 %2157, %v1512
    %v2159 = vpop.permute.xlu0 %2158
    %2161 = vset.pattern.permute.xlu0 13
    %2162 = vperm.xlu0 %2161, %v1516
    %v2163 = vpop.permute.xlu0 %2162
    %2165 = vset.pattern.permute.xlu0 13
    %2166 = vperm.xlu0 %2165, %v1520
    %v2167 = vpop.permute.xlu0 %2166
    %2169 = vset.pattern.permute.xlu0 13
    %2170 = vperm.xlu0 %2169, %v1524
    %v2171 = vpop.permute.xlu0 %2170
    %2173 = vset.pattern.permute.xlu0 13
    %2174 = vperm.xlu0 %2173, %v1528
    %v2175 = vpop.permute.xlu0 %2174
    %v2177 = vmul.f32 %v2147, %v1444
    %v2178 = vmul.f32 %v2151, %v1444
    %v2179 = vmul.f32 %v2155, %v1444
    %v2180 = vmul.f32 %v2159, %v1444
    %v2181 = vmul.f32 %v2163, %v1444
    %v2182 = vmul.f32 %v2167, %v1444
    %v2183 = vmul.f32 %v2171, %v1444
    %v2184 = vmul.f32 %v2175, %v1444
    %v2185 = vadd.f32 %v2137, %v2177
    %v2186 = vadd.f32 %v2138, %v2178
    %v2187 = vadd.f32 %v2139, %v2179
    %v2188 = vadd.f32 %v2140, %v2180
    %v2189 = vadd.f32 %v2141, %v2181
    %v2190 = vadd.f32 %v2142, %v2182
    %v2191 = vadd.f32 %v2143, %v2183
    %v2192 = vadd.f32 %v2144, %v2184
    %2193 = vset.pattern.permute.xlu0 14
    %2194 = vperm.xlu0 %2193, %v1500
    %v2195 = vpop.permute.xlu0 %2194
    %2197 = vset.pattern.permute.xlu0 14
    %2198 = vperm.xlu0 %2197, %v1504
    %v2199 = vpop.permute.xlu0 %2198
    %2201 = vset.pattern.permute.xlu0 14
    %2202 = vperm.xlu0 %2201, %v1508
    %v2203 = vpop.permute.xlu0 %2202
    %2205 = vset.pattern.permute.xlu0 14
    %2206 = vperm.xlu0 %2205, %v1512
    %v2207 = vpop.permute.xlu0 %2206
    %2209 = vset.pattern.permute.xlu0 14
    %2210 = vperm.xlu0 %2209, %v1516
    %v2211 = vpop.permute.xlu0 %2210
    %2213 = vset.pattern.permute.xlu0 14
    %2214 = vperm.xlu0 %2213, %v1520
    %v2215 = vpop.permute.xlu0 %2214
    %2217 = vset.pattern.permute.xlu0 14
    %2218 = vperm.xlu0 %2217, %v1524
    %v2219 = vpop.permute.xlu0 %2218
    %2221 = vset.pattern.permute.xlu0 14
    %2222 = vperm.xlu0 %2221, %v1528
    %v2223 = vpop.permute.xlu0 %2222
    %v2225 = vmul.f32 %v2195, %v1445
    %v2226 = vmul.f32 %v2199, %v1445
    %v2227 = vmul.f32 %v2203, %v1445
    %v2228 = vmul.f32 %v2207, %v1445
    %v2229 = vmul.f32 %v2211, %v1445
    %v2230 = vmul.f32 %v2215, %v1445
    %v2231 = vmul.f32 %v2219, %v1445
    %v2232 = vmul.f32 %v2223, %v1445
    %v2233 = vadd.f32 %v2185, %v2225
    %v2234 = vadd.f32 %v2186, %v2226
    %v2235 = vadd.f32 %v2187, %v2227
    %v2236 = vadd.f32 %v2188, %v2228
    %v2237 = vadd.f32 %v2189, %v2229
    %v2238 = vadd.f32 %v2190, %v2230
    %v2239 = vadd.f32 %v2191, %v2231
    %v2240 = vadd.f32 %v2192, %v2232
    %2241 = vset.pattern.permute.xlu0 15
    %2242 = vperm.xlu0 %2241, %v1500
    %v2243 = vpop.permute.xlu0 %2242
    %2245 = vset.pattern.permute.xlu0 15
    %2246 = vperm.xlu0 %2245, %v1504
    %v2247 = vpop.permute.xlu0 %2246
    %2249 = vset.pattern.permute.xlu0 15
    %2250 = vperm.xlu0 %2249, %v1508
    %v2251 = vpop.permute.xlu0 %2250
    %2253 = vset.pattern.permute.xlu0 15
    %2254 = vperm.xlu0 %2253, %v1512
    %v2255 = vpop.permute.xlu0 %2254
    %2257 = vset.pattern.permute.xlu0 15
    %2258 = vperm.xlu0 %2257, %v1516
    %v2259 = vpop.permute.xlu0 %2258
    %2261 = vset.pattern.permute.xlu0 15
    %2262 = vperm.xlu0 %2261, %v1520
    %v2263 = vpop.permute.xlu0 %2262
    %2265 = vset.pattern.permute.xlu0 15
    %2266 = vperm.xlu0 %2265, %v1524
    %v2267 = vpop.permute.xlu0 %2266
    %2269 = vset.pattern.permute.xlu0 15
    %2270 = vperm.xlu0 %2269, %v1528
    %v2271 = vpop.permute.xlu0 %2270
    %v2273 = vmul.f32 %v2243, %v1446
    %v2274 = vmul.f32 %v2247, %v1446
    %v2275 = vmul.f32 %v2251, %v1446
    %v2276 = vmul.f32 %v2255, %v1446
    %v2277 = vmul.f32 %v2259, %v1446
    %v2278 = vmul.f32 %v2263, %v1446
    %v2279 = vmul.f32 %v2267, %v1446
    %v2280 = vmul.f32 %v2271, %v1446
    %v2281 = vadd.f32 %v2233, %v2273
    %v2282 = vadd.f32 %v2234, %v2274
    %v2283 = vadd.f32 %v2235, %v2275
    %v2284 = vadd.f32 %v2236, %v2276
    %v2285 = vadd.f32 %v2237, %v2277
    %v2286 = vadd.f32 %v2238, %v2278
    %v2287 = vadd.f32 %v2239, %v2279
    %v2288 = vadd.f32 %v2240, %v2280
    %v2289 = vld [vmem:[%s7] sm:$0x1]
    %v2290 = vld [vmem:[%s7 + $0x1] sm:$0x1]
    %v2291 = vld [vmem:[%s7 + $0x2] sm:$0x1]
    %v2292 = vld [vmem:[%s7 + $0x3] sm:$0x1]
    %v2293 = vld [vmem:[%s7 + $0x4] sm:$0x1]
    %v2294 = vld [vmem:[%s7 + $0x5] sm:$0x1]
    %v2295 = vld [vmem:[%s7 + $0x6] sm:$0x1]
    %v2296 = vld [vmem:[%s7 + $0x7] sm:$0x1]
    %v2305 = vlaneseq
    %v2306 = vshrl.u32 %v2305, 7
    %v2307 = vsub.s32 0, %v2306
    %v2308 = vrot.slane %v2289, %v2307
    %v2309 = vlaneseq
    %v2310 = vshrl.u32 %v2309, 7
    %v2311 = vsub.s32 0, %v2310
    %v2312 = vrot.slane %v2290, %v2311
    %v2313 = vlaneseq
    %v2314 = vshrl.u32 %v2313, 7
    %v2315 = vsub.s32 0, %v2314
    %v2316 = vrot.slane %v2291, %v2315
    %v2317 = vlaneseq
    %v2318 = vshrl.u32 %v2317, 7
    %v2319 = vsub.s32 0, %v2318
    %v2320 = vrot.slane %v2292, %v2319
    %v2321 = vlaneseq
    %v2322 = vshrl.u32 %v2321, 7
    %v2323 = vsub.s32 0, %v2322
    %v2324 = vrot.slane %v2293, %v2323
    %v2325 = vlaneseq
    %v2326 = vshrl.u32 %v2325, 7
    %v2327 = vsub.s32 0, %v2326
    %v2328 = vrot.slane %v2294, %v2327
    %v2329 = vlaneseq
    %v2330 = vshrl.u32 %v2329, 7
    %v2331 = vsub.s32 0, %v2330
    %v2332 = vrot.slane %v2295, %v2331
    %v2333 = vlaneseq
    %v2334 = vshrl.u32 %v2333, 7
    %v2335 = vsub.s32 0, %v2334
    %v2336 = vrot.slane %v2296, %v2335
    %2337 = vset.pattern.permute.xlu0 0
    %2338 = vperm.xlu0 %2337, %v2308
    %v2339 = vpop.permute.xlu0 %2338
    %2341 = vset.pattern.permute.xlu0 0
    %2342 = vperm.xlu0 %2341, %v2312
    %v2343 = vpop.permute.xlu0 %2342
    %2345 = vset.pattern.permute.xlu0 0
    %2346 = vperm.xlu0 %2345, %v2316
    %v2347 = vpop.permute.xlu0 %2346
    %2349 = vset.pattern.permute.xlu0 0
    %2350 = vperm.xlu0 %2349, %v2320
    %v2351 = vpop.permute.xlu0 %2350
    %2353 = vset.pattern.permute.xlu0 0
    %2354 = vperm.xlu0 %2353, %v2324
    %v2355 = vpop.permute.xlu0 %2354
    %2357 = vset.pattern.permute.xlu0 0
    %2358 = vperm.xlu0 %2357, %v2328
    %v2359 = vpop.permute.xlu0 %2358
    %2361 = vset.pattern.permute.xlu0 0
    %2362 = vperm.xlu0 %2361, %v2332
    %v2363 = vpop.permute.xlu0 %2362
    %2365 = vset.pattern.permute.xlu0 0
    %2366 = vperm.xlu0 %2365, %v2336
    %v2367 = vpop.permute.xlu0 %2366
    %v2369 = vadd.f32 %v2281, %v2339
    %v2370 = vadd.f32 %v2282, %v2343
    %v2371 = vadd.f32 %v2283, %v2347
    %v2372 = vadd.f32 %v2284, %v2351
    %v2373 = vadd.f32 %v2285, %v2355
    %v2374 = vadd.f32 %v2286, %v2359
    %v2375 = vadd.f32 %v2287, %v2363
    %v2376 = vadd.f32 %v2288, %v2367
    %2377 = vset.pattern.permute.xlu0 4
    %2378 = vperm.xlu0 %2377, %v72
    %v2379 = vpop.permute.xlu0 %2378
    %v2381 = vmul.f32 %v2369, %v2379
    %v2382 = vmul.f32 %v2370, %v2379
    %v2383 = vmul.f32 %v2371, %v2379
    %v2384 = vmul.f32 %v2372, %v2379
    %v2385 = vmul.f32 %v2373, %v2379
    %v2386 = vmul.f32 %v2374, %v2379
    %v2387 = vmul.f32 %v2375, %v2379
    %v2388 = vmul.f32 %v2376, %v2379
    %2389 = vset.pattern.permute.xlu0 5
    %2390 = vperm.xlu0 %2389, %v72
    %v2391 = vpop.permute.xlu0 %2390
    %v2393 = vadd.f32 %v2381, %v2391
    %v2394 = vadd.f32 %v2382, %v2391
    %v2395 = vadd.f32 %v2383, %v2391
    %v2396 = vadd.f32 %v2384, %v2391
    %v2397 = vadd.f32 %v2385, %v2391
    %v2398 = vadd.f32 %v2386, %v2391
    %v2399 = vadd.f32 %v2387, %v2391
    %v2400 = vadd.f32 %v2388, %v2391
    %v2401 = vld [vmem:[%s8] sm:$0xff]
    %v2402 = vld [vmem:[%s8 + $0x8] sm:$0xff]
    %v2403 = vld [vmem:[%s8 + $0x10] sm:$0xff]
    %v2404 = vld [vmem:[%s8 + $0x18] sm:$0xff]
    %v2405 = vld [vmem:[%s9] sm:$0x1]
    %v2407 = vlaneseq
    %v2408 = vshrl.u32 %v2407, 7
    %v2409 = vsub.s32 0, %v2408
    %v2410 = vrot.slane %v2405, %v2409
    %vm2412 = vcmask 261120
    %v2414 = vsel %vm2412, %v2393, 0
    %v2417 = vsel %vm2412, %v2394, 0
    %v2420 = vsel %vm2412, %v2395, 0
    %v2423 = vsel %vm2412, %v2396, 0
    %v2426 = vsel %vm2412, %v2397, 0
    %v2429 = vsel %vm2412, %v2398, 0
    %v2432 = vsel %vm2412, %v2399, 0
    %v2435 = vsel %vm2412, %v2400, 0
    %2437 = vmatprep.subr.mxu0 0.0
    %2438 = vmatpush1.msra.mxu0 %v2401
    %2439 = vmatprep.subr.mxu0 0.0
    %2440 = vmatpush1.msra.mxu0 %v2402
    %2441 = vmatprep.subr.mxu0 0.0
    %2442 = vmatpush1.msra.mxu0 %v2403
    %2443 = vmatprep.subr.mxu0 0.0
    %2444 = vmatpush1.msra.mxu0 %v2404
    %2445 = vmatprep.subr.mxu0 0.0
    %2446 = vmatpush1.msra.mxu0 0.0
    %2447 = vmatprep.subr.mxu0 0.0
    %2448 = vmatpush1.msra.mxu0 0.0
    %2449 = vmatprep.subr.mxu0 0.0
    %2450 = vmatpush1.msra.mxu0 0.0
    %2451 = vmatprep.subr.mxu0 0.0
    %2452 = vmatpush1.msra.mxu0 0.0
    %2453 = vmatprep.subr.mxu0 0.0
    %2454 = vmatpush1.msra.mxu0 0.0
    %2455 = vmatprep.subr.mxu0 0.0
    %2456 = vmatpush1.msra.mxu0 0.0
    %2457 = vmatprep.subr.mxu0 0.0
    %2458 = vmatpush1.msra.mxu0 0.0
    %2459 = vmatprep.subr.mxu0 0.0
    %2460 = vmatpush1.msra.mxu0 0.0
    %2461 = vmatprep.subr.mxu0 0.0
    %2462 = vmatpush1.msra.mxu0 0.0
    %2463 = vmatprep.subr.mxu0 0.0
    %2464 = vmatpush1.msra.mxu0 0.0
    %2465 = vmatprep.subr.mxu0 0.0
    %2466 = vmatpush1.msra.mxu0 0.0
    %2467 = vmatprep.subr.mxu0 0.0
    %2468 = vmatpush1.msra.mxu0 0.0
    %2469 = vmatprep.subr.mxu0 0.0
    %2470 = vmatpush1.msra.mxu0 0.0
    %2471 = vmatprep.subr.mxu0 0.0
    %2472 = vmatpush1.msra.mxu0 0.0
    %2473 = vmatprep.subr.mxu0 0.0
    %2474 = vmatpush1.msra.mxu0 0.0
    %2475 = vmatprep.subr.mxu0 0.0
    %2476 = vmatpush1.msra.mxu0 0.0
    %2477 = vmatprep.subr.mxu0 0.0
    %2478 = vmatpush1.msra.mxu0 0.0
    %2479 = vmatprep.subr.mxu0 0.0
    %2480 = vmatpush1.msra.mxu0 0.0
    %2481 = vmatprep.subr.mxu0 0.0
    %2482 = vmatpush1.msra.mxu0 0.0
    %2483 = vmatprep.subr.mxu0 0.0
    %2484 = vmatpush1.msra.mxu0 0.0
    %2485 = vmatprep.subr.mxu0 0.0
    %2486 = vmatpush1.msra.mxu0 0.0
    %2487 = vmatprep.subr.mxu0 0.0
    %2488 = vmatpush1.msra.mxu0 0.0
    %2489 = vmatprep.subr.mxu0 0.0
    %2490 = vmatpush1.msra.mxu0 0.0
    %2491 = vmatprep.subr.mxu0 0.0
    %2492 = vmatpush1.msra.mxu0 0.0
    %2493 = vmatprep.subr.mxu0 0.0
    %2494 = vmatpush1.msra.mxu0 0.0
    %2495 = vmatprep.subr.mxu0 0.0
    %2496 = vmatpush1.msra.mxu0 0.0
    %2497 = vmatprep.subr.mxu0 0.0
    %2498 = vmatpush1.msra.mxu0 0.0
    %2499 = vmatprep.subr.mxu0 0.0
    %2500 = vmatpush1.msra.mxu0 0.0
    %2501 = vmatprep.mubr.f32.mxu0 0.0
    %2502 = vmatmul.mubr.f32.gmra.mrb[0].mxu0 %v2414
    %v2503 = vpop.f32.mrb[0].mxu0
    %v2504 = vadd.f32 %v2410, %v2503
    %v2505 = vpop.f32.mrb[0].mxu0
    %2506 = vmatprep.mubr.f32.mxu0 0.0
    %2507 = vmatmul.mubr.f32.gmra.mrb[0].mxu0 %v2417
    %v2508 = vpop.f32.mrb[0].mxu0
    %v2509 = vadd.f32 %v2410, %v2508
    %v2510 = vpop.f32.mrb[0].mxu0
    %2511 = vmatprep.mubr.f32.mxu0 0.0
    %2512 = vmatmul.mubr.f32.gmra.mrb[0].mxu0 %v2420
    %v2513 = vpop.f32.mrb[0].mxu0
    %v2514 = vadd.f32 %v2410, %v2513
    %v2515 = vpop.f32.mrb[0].mxu0
    %2516 = vmatprep.mubr.f32.mxu0 0.0
    %2517 = vmatmul.mubr.f32.gmra.mrb[0].mxu0 %v2423
    %v2518 = vpop.f32.mrb[0].mxu0
    %v2519 = vadd.f32 %v2410, %v2518
    %v2520 = vpop.f32.mrb[0].mxu0
    %2521 = vmatprep.mubr.f32.mxu0 0.0
    %2522 = vmatmul.mubr.f32.gmra.mrb[0].mxu0 %v2426
    %v2523 = vpop.f32.mrb[0].mxu0
    %v2524 = vadd.f32 %v2410, %v2523
    %v2525 = vpop.f32.mrb[0].mxu0
    %2526 = vmatprep.mubr.f32.mxu0 0.0
    %2527 = vmatmul.mubr.f32.gmra.mrb[0].mxu0 %v2429
    %v2528 = vpop.f32.mrb[0].mxu0
    %v2529 = vadd.f32 %v2410, %v2528
    %v2530 = vpop.f32.mrb[0].mxu0
    %2531 = vmatprep.mubr.f32.mxu0 0.0
    %2532 = vmatmul.mubr.f32.gmra.mrb[0].mxu0 %v2432
    %v2533 = vpop.f32.mrb[0].mxu0
    %v2534 = vadd.f32 %v2410, %v2533
    %v2535 = vpop.f32.mrb[0].mxu0
    %2536 = vmatprep.mubr.f32.mxu0 0.0
    %2537 = vmatmul.mubr.f32.gmra.mrb[0].mxu0 %v2435
    %v2538 = vpop.f32.mrb[0].mxu0
    %v2539 = vadd.f32 %v2410, %v2538
    %v2540 = vpop.f32.mrb[0].mxu0
    %2541 = vdwg.mxu0
    %v2542 = vmul.f32 %v2504, 0.5
    %v2543 = vmul.f32 %v2509, 0.5
    %v2544 = vmul.f32 %v2514, 0.5
    %v2545 = vmul.f32 %v2519, 0.5
    %v2546 = vmul.f32 %v2524, 0.5
    %v2547 = vmul.f32 %v2529, 0.5
    %v2548 = vmul.f32 %v2534, 0.5
    %v2549 = vmul.f32 %v2539, 0.5
    %v2550 = vmul.f32 %v2504, 0.70710677
    %v2551 = vmul.f32 %v2509, 0.70710677
    %v2552 = vmul.f32 %v2514, 0.70710677
    %v2553 = vmul.f32 %v2519, 0.70710677
    %v2554 = vmul.f32 %v2524, 0.70710677
    %v2555 = vmul.f32 %v2529, 0.70710677
    %v2556 = vmul.f32 %v2534, 0.70710677
    %v2557 = vmul.f32 %v2539, 0.70710677
    %v2558 = verf.f32.pop %v2550
    %v2559 = verf.f32.pop %v2551
    %v2560 = verf.f32.pop %v2552
    %v2561 = verf.f32.pop %v2553
    %v2562 = verf.f32.pop %v2554
    %v2563 = verf.f32.pop %v2555
    %v2564 = verf.f32.pop %v2556
    %v2565 = verf.f32.pop %v2557
    %v2566 = vadd.f32 %v2558, 1.0
    %v2567 = vadd.f32 %v2559, 1.0
    %v2568 = vadd.f32 %v2560, 1.0
    %v2569 = vadd.f32 %v2561, 1.0
    %v2570 = vadd.f32 %v2562, 1.0
    %v2571 = vadd.f32 %v2563, 1.0
    %v2572 = vadd.f32 %v2564, 1.0
    %v2573 = vadd.f32 %v2565, 1.0
    %v2574 = vmul.f32 %v2542, %v2566
    %v2575 = vmul.f32 %v2543, %v2567
    %v2576 = vmul.f32 %v2544, %v2568
    %v2577 = vmul.f32 %v2545, %v2569
    %v2578 = vmul.f32 %v2546, %v2570
    %v2579 = vmul.f32 %v2547, %v2571
    %v2580 = vmul.f32 %v2548, %v2572
    %v2581 = vmul.f32 %v2549, %v2573
    %v2582 = vld [vmem:[%s10] sm:$0xff]
    %v2583 = vld [vmem:[%s10 + $0x8] sm:$0xff]
    %v2584 = vld [vmem:[%s10 + $0x10] sm:$0xff]
    %v2585 = vld [vmem:[%s10 + $0x18] sm:$0xff]
    %v2586 = vld [vmem:[%s10 + $0x20] sm:$0xff]
    %v2587 = vld [vmem:[%s10 + $0x28] sm:$0xff]
    %v2588 = vld [vmem:[%s10 + $0x30] sm:$0xff]
    %v2589 = vld [vmem:[%s10 + $0x38] sm:$0xff]
    %v2590 = vld [vmem:[%s11] sm:$0x1]
    %v2592 = vlaneseq
    %v2593 = vshrl.u32 %v2592, 7
    %v2594 = vsub.s32 0, %v2593
    %v2595 = vrot.slane %v2590, %v2594
    %vm2597 = vcmask 523264
    %v2599 = vsel %vm2597, %v2574, 0
    %v2602 = vsel %vm2597, %v2575, 0
    %v2605 = vsel %vm2597, %v2576, 0
    %v2608 = vsel %vm2597, %v2577, 0
    %v2611 = vsel %vm2597, %v2578, 0
    %v2614 = vsel %vm2597, %v2579, 0
    %v2617 = vsel %vm2597, %v2580, 0
    %v2620 = vsel %vm2597, %v2581, 0
    %2622 = vmatprep.subr.mxu0 0.0
    %2623 = vmatpush1.msra.mxu0 %v2582
    %2624 = vmatprep.subr.mxu0 0.0
    %2625 = vmatpush1.msra.mxu0 %v2583
    %2626 = vmatprep.subr.mxu0 0.0
    %2627 = vmatpush1.msra.mxu0 %v2584
    %2628 = vmatprep.subr.mxu0 0.0
    %2629 = vmatpush1.msra.mxu0 %v2585
    %2630 = vmatprep.subr.mxu0 0.0
    %2631 = vmatpush1.msra.mxu0 %v2586
    %2632 = vmatprep.subr.mxu0 0.0
    %2633 = vmatpush1.msra.mxu0 %v2587
    %2634 = vmatprep.subr.mxu0 0.0
    %2635 = vmatpush1.msra.mxu0 %v2588
    %2636 = vmatprep.subr.mxu0 0.0
    %2637 = vmatpush1.msra.mxu0 %v2589
    %2638 = vmatprep.subr.mxu0 0.0
    %2639 = vmatpush1.msra.mxu0 0.0
    %2640 = vmatprep.subr.mxu0 0.0
    %2641 = vmatpush1.msra.mxu0 0.0
    %2642 = vmatprep.subr.mxu0 0.0
    %2643 = vmatpush1.msra.mxu0 0.0
    %2644 = vmatprep.subr.mxu0 0.0
    %2645 = vmatpush1.msra.mxu0 0.0
    %2646 = vmatprep.subr.mxu0 0.0
    %2647 = vmatpush1.msra.mxu0 0.0
    %2648 = vmatprep.subr.mxu0 0.0
    %2649 = vmatpush1.msra.mxu0 0.0
    %2650 = vmatprep.subr.mxu0 0.0
    %2651 = vmatpush1.msra.mxu0 0.0
    %2652 = vmatprep.subr.mxu0 0.0
    %2653 = vmatpush1.msra.mxu0 0.0
    %2654 = vmatprep.subr.mxu0 0.0
    %2655 = vmatpush1.msra.mxu0 0.0
    %2656 = vmatprep.subr.mxu0 0.0
    %2657 = vmatpush1.msra.mxu0 0.0
    %2658 = vmatprep.subr.mxu0 0.0
    %2659 = vmatpush1.msra.mxu0 0.0
    %2660 = vmatprep.subr.mxu0 0.0
    %2661 = vmatpush1.msra.mxu0 0.0
    %2662 = vmatprep.subr.mxu0 0.0
    %2663 = vmatpush1.msra.mxu0 0.0
    %2664 = vmatprep.subr.mxu0 0.0
    %2665 = vmatpush1.msra.mxu0 0.0
    %2666 = vmatprep.subr.mxu0 0.0
    %2667 = vmatpush1.msra.mxu0 0.0
    %2668 = vmatprep.subr.mxu0 0.0
    %2669 = vmatpush1.msra.mxu0 0.0
    %2670 = vmatprep.subr.mxu0 0.0
    %2671 = vmatpush1.msra.mxu0 0.0
    %2672 = vmatprep.subr.mxu0 0.0
    %2673 = vmatpush1.msra.mxu0 0.0
    %2674 = vmatprep.subr.mxu0 0.0
    %2675 = vmatpush1.msra.mxu0 0.0
    %2676 = vmatprep.subr.mxu0 0.0
    %2677 = vmatpush1.msra.mxu0 0.0
    %2678 = vmatprep.subr.mxu0 0.0
    %2679 = vmatpush1.msra.mxu0 0.0
    %2680 = vmatprep.subr.mxu0 0.0
    %2681 = vmatpush1.msra.mxu0 0.0
    %2682 = vmatprep.subr.mxu0 0.0
    %2683 = vmatpush1.msra.mxu0 0.0
    %2684 = vmatprep.subr.mxu0 0.0
    %2685 = vmatpush1.msra.mxu0 0.0
    %2686 = vmatprep.mubr.f32.mxu0 0.0
    %2687 = vmatmul.mubr.f32.gmra.mrb[0].mxu0 %v2599
    %v2688 = vpop.f32.mrb[0].mxu0
    %v2689 = vadd.f32 %v2595, %v2688
    %v2690 = vpop.f32.mrb[0].mxu0
    %2691 = vmatprep.mubr.f32.mxu0 0.0
    %2692 = vmatmul.mubr.f32.gmra.mrb[0].mxu0 %v2602
    %v2693 = vpop.f32.mrb[0].mxu0
    %v2694 = vadd.f32 %v2595, %v2693
    %v2695 = vpop.f32.mrb[0].mxu0
    %2696 = vmatprep.mubr.f32.mxu0 0.0
    %2697 = vmatmul.mubr.f32.gmra.mrb[0].mxu0 %v2605
    %v2698 = vpop.f32.mrb[0].mxu0
    %v2699 = vadd.f32 %v2595, %v2698
    %v2700 = vpop.f32.mrb[0].mxu0
    %2701 = vmatprep.mubr.f32.mxu0 0.0
    %2702 = vmatmul.mubr.f32.gmra.mrb[0].mxu0 %v2608
    %v2703 = vpop.f32.mrb[0].mxu0
    %v2704 = vadd.f32 %v2595, %v2703
    %v2705 = vpop.f32.mrb[0].mxu0
    %2706 = vmatprep.mubr.f32.mxu0 0.0
    %2707 = vmatmul.mubr.f32.gmra.mrb[0].mxu0 %v2611
    %v2708 = vpop.f32.mrb[0].mxu0
    %v2709 = vadd.f32 %v2595, %v2708
    %v2710 = vpop.f32.mrb[0].mxu0
    %2711 = vmatprep.mubr.f32.mxu0 0.0
    %2712 = vmatmul.mubr.f32.gmra.mrb[0].mxu0 %v2614
    %v2713 = vpop.f32.mrb[0].mxu0
    %v2714 = vadd.f32 %v2595, %v2713
    %v2715 = vpop.f32.mrb[0].mxu0
    %2716 = vmatprep.mubr.f32.mxu0 0.0
    %2717 = vmatmul.mubr.f32.gmra.mrb[0].mxu0 %v2617
    %v2718 = vpop.f32.mrb[0].mxu0
    %v2719 = vadd.f32 %v2595, %v2718
    %v2720 = vpop.f32.mrb[0].mxu0
    %2721 = vmatprep.mubr.f32.mxu0 0.0
    %2722 = vmatmul.mubr.f32.gmra.mrb[0].mxu0 %v2620
    %v2723 = vpop.f32.mrb[0].mxu0
    %v2724 = vadd.f32 %v2595, %v2723
    %v2725 = vpop.f32.mrb[0].mxu0
    %2726 = vdwg.mxu0
    %v2727 = vadd.f32 %v2393, %v2689
    %v2728 = vadd.f32 %v2394, %v2694
    %v2729 = vadd.f32 %v2395, %v2699
    %v2730 = vadd.f32 %v2396, %v2704
    %v2731 = vadd.f32 %v2397, %v2709
    %v2732 = vadd.f32 %v2398, %v2714
    %v2733 = vadd.f32 %v2399, %v2719
    %v2734 = vadd.f32 %v2400, %v2724
    %2735 = vset.pattern.permute.xlu0 6
    %2736 = vperm.xlu0 %2735, %v72
    %v2737 = vpop.permute.xlu0 %2736
    %v2739 = vmul.f32 %v2727, %v2737
    %v2740 = vmul.f32 %v2728, %v2737
    %v2741 = vmul.f32 %v2729, %v2737
    %v2742 = vmul.f32 %v2730, %v2737
    %v2743 = vmul.f32 %v2731, %v2737
    %v2744 = vmul.f32 %v2732, %v2737
    %v2745 = vmul.f32 %v2733, %v2737
    %v2746 = vmul.f32 %v2734, %v2737
    %2747 = vset.pattern.permute.xlu0 7
    %2748 = vperm.xlu0 %2747, %v72
    %v2749 = vpop.permute.xlu0 %2748
    %v2751 = vadd.f32 %v2739, %v2749
    %v2752 = vadd.f32 %v2740, %v2749
    %v2753 = vadd.f32 %v2741, %v2749
    %v2754 = vadd.f32 %v2742, %v2749
    %v2755 = vadd.f32 %v2743, %v2749
    %v2756 = vadd.f32 %v2744, %v2749
    %v2757 = vadd.f32 %v2745, %v2749
    %v2758 = vadd.f32 %v2746, %v2749
    %v2759 = vld [vmem:[%s12] sm:$0xff]
    %v2760 = vld [vmem:[%s12 + $0x8] sm:$0xff]
    %v2761 = vld [vmem:[%s14] sm:$0xff]
    %v2764 = vcombine.high %v2759, %v2759
    %v2766 = vunpack.c.l.s4 1966171168
    %v2767 = vunpack.c.0.s8 %v2766
    %v2768 = vlaneseq
    %v2769 = vshrl.u32 %v2768, 7
    %v2770 = vsub.s32 %v2767, %v2769
    %v2771 = vrot.slane %v2759, %v2770
    %v2773 = vunpack.c.l.s4 1966171168
    %v2774 = vunpack.c.0.s8 %v2773
    %v2775 = vlaneseq
    %v2776 = vshrl.u32 %v2775, 7
    %v2777 = vsub.s32 %v2774, %v2776
    %v2778 = vrot.slane %v2764, %v2777
    %v2779 = vcombine.high %v2771, %v2771
    %v2780 = vcombine.high %v2778, %v2778
    %v2782 = vunpack.c.l.s4 1966171168
    %v2783 = vunpack.c.0.s8 %v2782
    %v2784 = vlaneseq
    %v2785 = vshrl.u32 %v2784, 7
    %v2786 = vsub.s32 %v2783, %v2785
    %v2787 = vrot.slane %v2771, %v2786
    %v2789 = vunpack.c.l.s4 1966171168
    %v2790 = vunpack.c.0.s8 %v2789
    %v2791 = vlaneseq
    %v2792 = vshrl.u32 %v2791, 7
    %v2793 = vsub.s32 %v2790, %v2792
    %v2794 = vrot.slane %v2778, %v2793
    %v2796 = vunpack.c.l.s4 1966171168
    %v2797 = vunpack.c.0.s8 %v2796
    %v2798 = vlaneseq
    %v2799 = vshrl.u32 %v2798, 7
    %v2800 = vsub.s32 %v2797, %v2799
    %v2801 = vrot.slane %v2779, %v2800
    %v2803 = vunpack.c.l.s4 1966171168
    %v2804 = vunpack.c.0.s8 %v2803
    %v2805 = vlaneseq
    %v2806 = vshrl.u32 %v2805, 7
    %v2807 = vsub.s32 %v2804, %v2806
    %v2808 = vrot.slane %v2780, %v2807
    %v2809 = vcombine.high %v2787, %v2787
    %v2810 = vcombine.high %v2794, %v2794
    %v2811 = vcombine.high %v2801, %v2801
    %v2812 = vcombine.high %v2808, %v2808
    %v2813 = vcombine.high %v2760, %v2760
    %v2815 = vunpack.c.l.s4 1966171168
    %v2816 = vunpack.c.0.s8 %v2815
    %v2817 = vlaneseq
    %v2818 = vshrl.u32 %v2817, 7
    %v2819 = vsub.s32 %v2816, %v2818
    %v2820 = vrot.slane %v2760, %v2819
    %v2822 = vunpack.c.l.s4 1966171168
    %v2823 = vunpack.c.0.s8 %v2822
    %v2824 = vlaneseq
    %v2825 = vshrl.u32 %v2824, 7
    %v2826 = vsub.s32 %v2823, %v2825
    %v2827 = vrot.slane %v2813, %v2826
    %v2828 = vcombine.high %v2820, %v2820
    %v2829 = vcombine.high %v2827, %v2827
    %v2831 = vunpack.c.l.s4 1966171168
    %v2832 = vunpack.c.0.s8 %v2831
    %v2833 = vlaneseq
    %v2834 = vshrl.u32 %v2833, 7
    %v2835 = vsub.s32 %v2832, %v2834
    %v2836 = vrot.slane %v2820, %v2835
    %v2838 = vunpack.c.l.s4 1966171168
    %v2839 = vunpack.c.0.s8 %v2838
    %v2840 = vlaneseq
    %v2841 = vshrl.u32 %v2840, 7
    %v2842 = vsub.s32 %v2839, %v2841
    %v2843 = vrot.slane %v2827, %v2842
    %v2845 = vunpack.c.l.s4 1966171168
    %v2846 = vunpack.c.0.s8 %v2845
    %v2847 = vlaneseq
    %v2848 = vshrl.u32 %v2847, 7
    %v2849 = vsub.s32 %v2846, %v2848
    %v2850 = vrot.slane %v2828, %v2849
    %v2852 = vunpack.c.l.s4 1966171168
    %v2853 = vunpack.c.0.s8 %v2852
    %v2854 = vlaneseq
    %v2855 = vshrl.u32 %v2854, 7
    %v2856 = vsub.s32 %v2853, %v2855
    %v2857 = vrot.slane %v2829, %v2856
    %v2858 = vcombine.high %v2836, %v2836
    %v2859 = vcombine.high %v2843, %v2843
    %v2860 = vcombine.high %v2850, %v2850
    %v2861 = vcombine.high %v2857, %v2857
    %v2862 = vlaneseq
    %v2863 = vshrl.u32 %v2862, 7
    %v2864 = vsub.s32 0, %v2863
    %v2865 = vrot.slane %v2787, %v2864
    %v2866 = vlaneseq
    %v2867 = vshrl.u32 %v2866, 7
    %v2868 = vsub.s32 0, %v2867
    %v2869 = vrot.slane %v2801, %v2868
    %v2870 = vlaneseq
    %v2871 = vshrl.u32 %v2870, 7
    %v2872 = vsub.s32 0, %v2871
    %v2873 = vrot.slane %v2809, %v2872
    %v2874 = vlaneseq
    %v2875 = vshrl.u32 %v2874, 7
    %v2876 = vsub.s32 0, %v2875
    %v2877 = vrot.slane %v2811, %v2876
    %v2878 = vlaneseq
    %v2879 = vshrl.u32 %v2878, 7
    %v2880 = vsub.s32 0, %v2879
    %v2881 = vrot.slane %v2794, %v2880
    %v2882 = vlaneseq
    %v2883 = vshrl.u32 %v2882, 7
    %v2884 = vsub.s32 0, %v2883
    %v2885 = vrot.slane %v2808, %v2884
    %v2886 = vlaneseq
    %v2887 = vshrl.u32 %v2886, 7
    %v2888 = vsub.s32 0, %v2887
    %v2889 = vrot.slane %v2810, %v2888
    %v2890 = vlaneseq
    %v2891 = vshrl.u32 %v2890, 7
    %v2892 = vsub.s32 0, %v2891
    %v2893 = vrot.slane %v2812, %v2892
    %v2894 = vlaneseq
    %v2895 = vshrl.u32 %v2894, 7
    %v2896 = vsub.s32 0, %v2895
    %v2897 = vrot.slane %v2836, %v2896
    %v2898 = vlaneseq
    %v2899 = vshrl.u32 %v2898, 7
    %v2900 = vsub.s32 0, %v2899
    %v2901 = vrot.slane %v2850, %v2900
    %v2902 = vlaneseq
    %v2903 = vshrl.u32 %v2902, 7
    %v2904 = vsub.s32 0, %v2903
    %v2905 = vrot.slane %v2858, %v2904
    %v2906 = vlaneseq
    %v2907 = vshrl.u32 %v2906, 7
    %v2908 = vsub.s32 0, %v2907
    %v2909 = vrot.slane %v2860, %v2908
    %v2910 = vlaneseq
    %v2911 = vshrl.u32 %v2910, 7
    %v2912 = vsub.s32 0, %v2911
    %v2913 = vrot.slane %v2843, %v2912
    %v2914 = vlaneseq
    %v2915 = vshrl.u32 %v2914, 7
    %v2916 = vsub.s32 0, %v2915
    %v2917 = vrot.slane %v2857, %v2916
    %v2918 = vlaneseq
    %v2919 = vshrl.u32 %v2918, 7
    %v2920 = vsub.s32 0, %v2919
    %v2921 = vrot.slane %v2859, %v2920
    %v2922 = vlaneseq
    %v2923 = vshrl.u32 %v2922, 7
    %v2924 = vsub.s32 0, %v2923
    %v2925 = vrot.slane %v2861, %v2924
    %2926 = vset.pattern.permute.xlu0 0
    %2927 = vperm.xlu0 %2926, %v2865
    %v2928 = vpop.permute.xlu0 %2927
    %2930 = vset.pattern.permute.xlu0 0
    %2931 = vperm.xlu0 %2930, %v2869
    %v2932 = vpop.permute.xlu0 %2931
    %2934 = vset.pattern.permute.xlu0 0
    %2935 = vperm.xlu0 %2934, %v2873
    %v2936 = vpop.permute.xlu0 %2935
    %2938 = vset.pattern.permute.xlu0 0
    %2939 = vperm.xlu0 %2938, %v2877
    %v2940 = vpop.permute.xlu0 %2939
    %2942 = vset.pattern.permute.xlu0 0
    %2943 = vperm.xlu0 %2942, %v2881
    %v2944 = vpop.permute.xlu0 %2943
    %2946 = vset.pattern.permute.xlu0 0
    %2947 = vperm.xlu0 %2946, %v2885
    %v2948 = vpop.permute.xlu0 %2947
    %2950 = vset.pattern.permute.xlu0 0
    %2951 = vperm.xlu0 %2950, %v2889
    %v2952 = vpop.permute.xlu0 %2951
    %2954 = vset.pattern.permute.xlu0 0
    %2955 = vperm.xlu0 %2954, %v2893
    %v2956 = vpop.permute.xlu0 %2955
    %2958 = vset.pattern.permute.xlu0 0
    %2959 = vperm.xlu0 %2958, %v2897
    %v2960 = vpop.permute.xlu0 %2959
    %2962 = vset.pattern.permute.xlu0 0
    %2963 = vperm.xlu0 %2962, %v2901
    %v2964 = vpop.permute.xlu0 %2963
    %2966 = vset.pattern.permute.xlu0 0
    %2967 = vperm.xlu0 %2966, %v2905
    %v2968 = vpop.permute.xlu0 %2967
    %2970 = vset.pattern.permute.xlu0 0
    %2971 = vperm.xlu0 %2970, %v2909
    %v2972 = vpop.permute.xlu0 %2971
    %2974 = vset.pattern.permute.xlu0 0
    %2975 = vperm.xlu0 %2974, %v2913
    %v2976 = vpop.permute.xlu0 %2975
    %2978 = vset.pattern.permute.xlu0 0
    %2979 = vperm.xlu0 %2978, %v2917
    %v2980 = vpop.permute.xlu0 %2979
    %2982 = vset.pattern.permute.xlu0 0
    %2983 = vperm.xlu0 %2982, %v2921
    %v2984 = vpop.permute.xlu0 %2983
    %2986 = vset.pattern.permute.xlu0 0
    %2987 = vperm.xlu0 %2986, %v2925
    %v2988 = vpop.permute.xlu0 %2987
    %v2990 = vmul.f32 %v2928, %v2751
    %v2991 = vmul.f32 %v2932, %v2751
    %v2992 = vmul.f32 %v2936, %v2751
    %v2993 = vmul.f32 %v2940, %v2751
    %v2994 = vmul.f32 %v2944, %v2751
    %v2995 = vmul.f32 %v2948, %v2751
    %v2996 = vmul.f32 %v2952, %v2751
    %v2997 = vmul.f32 %v2956, %v2751
    %v2998 = vmul.f32 %v2960, %v2751
    %v2999 = vmul.f32 %v2964, %v2751
    %v3000 = vmul.f32 %v2968, %v2751
    %v3001 = vmul.f32 %v2972, %v2751
    %v3002 = vmul.f32 %v2976, %v2751
    %v3003 = vmul.f32 %v2980, %v2751
    %v3004 = vmul.f32 %v2984, %v2751
    %v3005 = vmul.f32 %v2988, %v2751
    %3006 = vset.pattern.permute.xlu0 1
    %3007 = vperm.xlu0 %3006, %v2865
    %v3008 = vpop.permute.xlu0 %3007
    %3010 = vset.pattern.permute.xlu0 1
    %3011 = vperm.xlu0 %3010, %v2869
    %v3012 = vpop.permute.xlu0 %3011
    %3014 = vset.pattern.permute.xlu0 1
    %3015 = vperm.xlu0 %3014, %v2873
    %v3016 = vpop.permute.xlu0 %3015
    %3018 = vset.pattern.permute.xlu0 1
    %3019 = vperm.xlu0 %3018, %v2877
    %v3020 = vpop.permute.xlu0 %3019
    %3022 = vset.pattern.permute.xlu0 1
    %3023 = vperm.xlu0 %3022, %v2881
    %v3024 = vpop.permute.xlu0 %3023
    %3026 = vset.pattern.permute.xlu0 1
    %3027 = vperm.xlu0 %3026, %v2885
    %v3028 = vpop.permute.xlu0 %3027
    %3030 = vset.pattern.permute.xlu0 1
    %3031 = vperm.xlu0 %3030, %v2889
    %v3032 = vpop.permute.xlu0 %3031
    %3034 = vset.pattern.permute.xlu0 1
    %3035 = vperm.xlu0 %3034, %v2893
    %v3036 = vpop.permute.xlu0 %3035
    %3038 = vset.pattern.permute.xlu0 1
    %3039 = vperm.xlu0 %3038, %v2897
    %v3040 = vpop.permute.xlu0 %3039
    %3042 = vset.pattern.permute.xlu0 1
    %3043 = vperm.xlu0 %3042, %v2901
    %v3044 = vpop.permute.xlu0 %3043
    %3046 = vset.pattern.permute.xlu0 1
    %3047 = vperm.xlu0 %3046, %v2905
    %v3048 = vpop.permute.xlu0 %3047
    %3050 = vset.pattern.permute.xlu0 1
    %3051 = vperm.xlu0 %3050, %v2909
    %v3052 = vpop.permute.xlu0 %3051
    %3054 = vset.pattern.permute.xlu0 1
    %3055 = vperm.xlu0 %3054, %v2913
    %v3056 = vpop.permute.xlu0 %3055
    %3058 = vset.pattern.permute.xlu0 1
    %3059 = vperm.xlu0 %3058, %v2917
    %v3060 = vpop.permute.xlu0 %3059
    %3062 = vset.pattern.permute.xlu0 1
    %3063 = vperm.xlu0 %3062, %v2921
    %v3064 = vpop.permute.xlu0 %3063
    %3066 = vset.pattern.permute.xlu0 1
    %3067 = vperm.xlu0 %3066, %v2925
    %v3068 = vpop.permute.xlu0 %3067
    %v3070 = vmul.f32 %v3008, %v2752
    %v3071 = vmul.f32 %v3012, %v2752
    %v3072 = vmul.f32 %v3016, %v2752
    %v3073 = vmul.f32 %v3020, %v2752
    %v3074 = vmul.f32 %v3024, %v2752
    %v3075 = vmul.f32 %v3028, %v2752
    %v3076 = vmul.f32 %v3032, %v2752
    %v3077 = vmul.f32 %v3036, %v2752
    %v3078 = vmul.f32 %v3040, %v2752
    %v3079 = vmul.f32 %v3044, %v2752
    %v3080 = vmul.f32 %v3048, %v2752
    %v3081 = vmul.f32 %v3052, %v2752
    %v3082 = vmul.f32 %v3056, %v2752
    %v3083 = vmul.f32 %v3060, %v2752
    %v3084 = vmul.f32 %v3064, %v2752
    %v3085 = vmul.f32 %v3068, %v2752
    %v3086 = vadd.f32 %v2990, %v3070
    %v3087 = vadd.f32 %v2991, %v3071
    %v3088 = vadd.f32 %v2992, %v3072
    %v3089 = vadd.f32 %v2993, %v3073
    %v3090 = vadd.f32 %v2994, %v3074
    %v3091 = vadd.f32 %v2995, %v3075
    %v3092 = vadd.f32 %v2996, %v3076
    %v3093 = vadd.f32 %v2997, %v3077
    %v3094 = vadd.f32 %v2998, %v3078
    %v3095 = vadd.f32 %v2999, %v3079
    %v3096 = vadd.f32 %v3000, %v3080
    %v3097 = vadd.f32 %v3001, %v3081
    %v3098 = vadd.f32 %v3002, %v3082
    %v3099 = vadd.f32 %v3003, %v3083
    %v3100 = vadd.f32 %v3004, %v3084
    %v3101 = vadd.f32 %v3005, %v3085
    %3102 = vset.pattern.permute.xlu0 2
    %3103 = vperm.xlu0 %3102, %v2865
    %v3104 = vpop.permute.xlu0 %3103
    %3106 = vset.pattern.permute.xlu0 2
    %3107 = vperm.xlu0 %3106, %v2869
    %v3108 = vpop.permute.xlu0 %3107
    %3110 = vset.pattern.permute.xlu0 2
    %3111 = vperm.xlu0 %3110, %v2873
    %v3112 = vpop.permute.xlu0 %3111
    %3114 = vset.pattern.permute.xlu0 2
    %3115 = vperm.xlu0 %3114, %v2877
    %v3116 = vpop.permute.xlu0 %3115
    %3118 = vset.pattern.permute.xlu0 2
    %3119 = vperm.xlu0 %3118, %v2881
    %v3120 = vpop.permute.xlu0 %3119
    %3122 = vset.pattern.permute.xlu0 2
    %3123 = vperm.xlu0 %3122, %v2885
    %v3124 = vpop.permute.xlu0 %3123
    %3126 = vset.pattern.permute.xlu0 2
    %3127 = vperm.xlu0 %3126, %v2889
    %v3128 = vpop.permute.xlu0 %3127
    %3130 = vset.pattern.permute.xlu0 2
    %3131 = vperm.xlu0 %3130, %v2893
    %v3132 = vpop.permute.xlu0 %3131
    %3134 = vset.pattern.permute.xlu0 2
    %3135 = vperm.xlu0 %3134, %v2897
    %v3136 = vpop.permute.xlu0 %3135
    %3138 = vset.pattern.permute.xlu0 2
    %3139 = vperm.xlu0 %3138, %v2901
    %v3140 = vpop.permute.xlu0 %3139
    %3142 = vset.pattern.permute.xlu0 2
    %3143 = vperm.xlu0 %3142, %v2905
    %v3144 = vpop.permute.xlu0 %3143
    %3146 = vset.pattern.permute.xlu0 2
    %3147 = vperm.xlu0 %3146, %v2909
    %v3148 = vpop.permute.xlu0 %3147
    %3150 = vset.pattern.permute.xlu0 2
    %3151 = vperm.xlu0 %3150, %v2913
    %v3152 = vpop.permute.xlu0 %3151
    %3154 = vset.pattern.permute.xlu0 2
    %3155 = vperm.xlu0 %3154, %v2917
    %v3156 = vpop.permute.xlu0 %3155
    %3158 = vset.pattern.permute.xlu0 2
    %3159 = vperm.xlu0 %3158, %v2921
    %v3160 = vpop.permute.xlu0 %3159
    %3162 = vset.pattern.permute.xlu0 2
    %3163 = vperm.xlu0 %3162, %v2925
    %v3164 = vpop.permute.xlu0 %3163
    %v3166 = vmul.f32 %v3104, %v2753
    %v3167 = vmul.f32 %v3108, %v2753
    %v3168 = vmul.f32 %v3112, %v2753
    %v3169 = vmul.f32 %v3116, %v2753
    %v3170 = vmul.f32 %v3120, %v2753
    %v3171 = vmul.f32 %v3124, %v2753
    %v3172 = vmul.f32 %v3128, %v2753
    %v3173 = vmul.f32 %v3132, %v2753
    %v3174 = vmul.f32 %v3136, %v2753
    %v3175 = vmul.f32 %v3140, %v2753
    %v3176 = vmul.f32 %v3144, %v2753
    %v3177 = vmul.f32 %v3148, %v2753
    %v3178 = vmul.f32 %v3152, %v2753
    %v3179 = vmul.f32 %v3156, %v2753
    %v3180 = vmul.f32 %v3160, %v2753
    %v3181 = vmul.f32 %v3164, %v2753
    %v3182 = vadd.f32 %v3086, %v3166
    %v3183 = vadd.f32 %v3087, %v3167
    %v3184 = vadd.f32 %v3088, %v3168
    %v3185 = vadd.f32 %v3089, %v3169
    %v3186 = vadd.f32 %v3090, %v3170
    %v3187 = vadd.f32 %v3091, %v3171
    %v3188 = vadd.f32 %v3092, %v3172
    %v3189 = vadd.f32 %v3093, %v3173
    %v3190 = vadd.f32 %v3094, %v3174
    %v3191 = vadd.f32 %v3095, %v3175
    %v3192 = vadd.f32 %v3096, %v3176
    %v3193 = vadd.f32 %v3097, %v3177
    %v3194 = vadd.f32 %v3098, %v3178
    %v3195 = vadd.f32 %v3099, %v3179
    %v3196 = vadd.f32 %v3100, %v3180
    %v3197 = vadd.f32 %v3101, %v3181
    %3198 = vset.pattern.permute.xlu0 3
    %3199 = vperm.xlu0 %3198, %v2865
    %v3200 = vpop.permute.xlu0 %3199
    %3202 = vset.pattern.permute.xlu0 3
    %3203 = vperm.xlu0 %3202, %v2869
    %v3204 = vpop.permute.xlu0 %3203
    %3206 = vset.pattern.permute.xlu0 3
    %3207 = vperm.xlu0 %3206, %v2873
    %v3208 = vpop.permute.xlu0 %3207
    %3210 = vset.pattern.permute.xlu0 3
    %3211 = vperm.xlu0 %3210, %v2877
    %v3212 = vpop.permute.xlu0 %3211
    %3214 = vset.pattern.permute.xlu0 3
    %3215 = vperm.xlu0 %3214, %v2881
    %v3216 = vpop.permute.xlu0 %3215
    %3218 = vset.pattern.permute.xlu0 3
    %3219 = vperm.xlu0 %3218, %v2885
    %v3220 = vpop.permute.xlu0 %3219
    %3222 = vset.pattern.permute.xlu0 3
    %3223 = vperm.xlu0 %3222, %v2889
    %v3224 = vpop.permute.xlu0 %3223
    %3226 = vset.pattern.permute.xlu0 3
    %3227 = vperm.xlu0 %3226, %v2893
    %v3228 = vpop.permute.xlu0 %3227
    %3230 = vset.pattern.permute.xlu0 3
    %3231 = vperm.xlu0 %3230, %v2897
    %v3232 = vpop.permute.xlu0 %3231
    %3234 = vset.pattern.permute.xlu0 3
    %3235 = vperm.xlu0 %3234, %v2901
    %v3236 = vpop.permute.xlu0 %3235
    %3238 = vset.pattern.permute.xlu0 3
    %3239 = vperm.xlu0 %3238, %v2905
    %v3240 = vpop.permute.xlu0 %3239
    %3242 = vset.pattern.permute.xlu0 3
    %3243 = vperm.xlu0 %3242, %v2909
    %v3244 = vpop.permute.xlu0 %3243
    %3246 = vset.pattern.permute.xlu0 3
    %3247 = vperm.xlu0 %3246, %v2913
    %v3248 = vpop.permute.xlu0 %3247
    %3250 = vset.pattern.permute.xlu0 3
    %3251 = vperm.xlu0 %3250, %v2917
    %v3252 = vpop.permute.xlu0 %3251
    %3254 = vset.pattern.permute.xlu0 3
    %3255 = vperm.xlu0 %3254, %v2921
    %v3256 = vpop.permute.xlu0 %3255
    %3258 = vset.pattern.permute.xlu0 3
    %3259 = vperm.xlu0 %3258, %v2925
    %v3260 = vpop.permute.xlu0 %3259
    %v3262 = vmul.f32 %v3200, %v2754
    %v3263 = vmul.f32 %v3204, %v2754
    %v3264 = vmul.f32 %v3208, %v2754
    %v3265 = vmul.f32 %v3212, %v2754
    %v3266 = vmul.f32 %v3216, %v2754
    %v3267 = vmul.f32 %v3220, %v2754
    %v3268 = vmul.f32 %v3224, %v2754
    %v3269 = vmul.f32 %v3228, %v2754
    %v3270 = vmul.f32 %v3232, %v2754
    %v3271 = vmul.f32 %v3236, %v2754
    %v3272 = vmul.f32 %v3240, %v2754
    %v3273 = vmul.f32 %v3244, %v2754
    %v3274 = vmul.f32 %v3248, %v2754
    %v3275 = vmul.f32 %v3252, %v2754
    %v3276 = vmul.f32 %v3256, %v2754
    %v3277 = vmul.f32 %v3260, %v2754
    %v3278 = vadd.f32 %v3182, %v3262
    %v3279 = vadd.f32 %v3183, %v3263
    %v3280 = vadd.f32 %v3184, %v3264
    %v3281 = vadd.f32 %v3185, %v3265
    %v3282 = vadd.f32 %v3186, %v3266
    %v3283 = vadd.f32 %v3187, %v3267
    %v3284 = vadd.f32 %v3188, %v3268
    %v3285 = vadd.f32 %v3189, %v3269
    %v3286 = vadd.f32 %v3190, %v3270
    %v3287 = vadd.f32 %v3191, %v3271
    %v3288 = vadd.f32 %v3192, %v3272
    %v3289 = vadd.f32 %v3193, %v3273
    %v3290 = vadd.f32 %v3194, %v3274
    %v3291 = vadd.f32 %v3195, %v3275
    %v3292 = vadd.f32 %v3196, %v3276
    %v3293 = vadd.f32 %v3197, %v3277
    %3294 = vset.pattern.permute.xlu0 4
    %3295 = vperm.xlu0 %3294, %v2865
    %v3296 = vpop.permute.xlu0 %3295
    %3298 = vset.pattern.permute.xlu0 4
    %3299 = vperm.xlu0 %3298, %v2869
    %v3300 = vpop.permute.xlu0 %3299
    %3302 = vset.pattern.permute.xlu0 4
    %3303 = vperm.xlu0 %3302, %v2873
    %v3304 = vpop.permute.xlu0 %3303
    %3306 = vset.pattern.permute.xlu0 4
    %3307 = vperm.xlu0 %3306, %v2877
    %v3308 = vpop.permute.xlu0 %3307
    %3310 = vset.pattern.permute.xlu0 4
    %3311 = vperm.xlu0 %3310, %v2881
    %v3312 = vpop.permute.xlu0 %3311
    %3314 = vset.pattern.permute.xlu0 4
    %3315 = vperm.xlu0 %3314, %v2885
    %v3316 = vpop.permute.xlu0 %3315
    %3318 = vset.pattern.permute.xlu0 4
    %3319 = vperm.xlu0 %3318, %v2889
    %v3320 = vpop.permute.xlu0 %3319
    %3322 = vset.pattern.permute.xlu0 4
    %3323 = vperm.xlu0 %3322, %v2893
    %v3324 = vpop.permute.xlu0 %3323
    %3326 = vset.pattern.permute.xlu0 4
    %3327 = vperm.xlu0 %3326, %v2897
    %v3328 = vpop.permute.xlu0 %3327
    %3330 = vset.pattern.permute.xlu0 4
    %3331 = vperm.xlu0 %3330, %v2901
    %v3332 = vpop.permute.xlu0 %3331
    %3334 = vset.pattern.permute.xlu0 4
    %3335 = vperm.xlu0 %3334, %v2905
    %v3336 = vpop.permute.xlu0 %3335
    %3338 = vset.pattern.permute.xlu0 4
    %3339 = vperm.xlu0 %3338, %v2909
    %v3340 = vpop.permute.xlu0 %3339
    %3342 = vset.pattern.permute.xlu0 4
    %3343 = vperm.xlu0 %3342, %v2913
    %v3344 = vpop.permute.xlu0 %3343
    %3346 = vset.pattern.permute.xlu0 4
    %3347 = vperm.xlu0 %3346, %v2917
    %v3348 = vpop.permute.xlu0 %3347
    %3350 = vset.pattern.permute.xlu0 4
    %3351 = vperm.xlu0 %3350, %v2921
    %v3352 = vpop.permute.xlu0 %3351
    %3354 = vset.pattern.permute.xlu0 4
    %3355 = vperm.xlu0 %3354, %v2925
    %v3356 = vpop.permute.xlu0 %3355
    %v3358 = vmul.f32 %v3296, %v2755
    %v3359 = vmul.f32 %v3300, %v2755
    %v3360 = vmul.f32 %v3304, %v2755
    %v3361 = vmul.f32 %v3308, %v2755
    %v3362 = vmul.f32 %v3312, %v2755
    %v3363 = vmul.f32 %v3316, %v2755
    %v3364 = vmul.f32 %v3320, %v2755
    %v3365 = vmul.f32 %v3324, %v2755
    %v3366 = vmul.f32 %v3328, %v2755
    %v3367 = vmul.f32 %v3332, %v2755
    %v3368 = vmul.f32 %v3336, %v2755
    %v3369 = vmul.f32 %v3340, %v2755
    %v3370 = vmul.f32 %v3344, %v2755
    %v3371 = vmul.f32 %v3348, %v2755
    %v3372 = vmul.f32 %v3352, %v2755
    %v3373 = vmul.f32 %v3356, %v2755
    %v3374 = vadd.f32 %v3278, %v3358
    %v3375 = vadd.f32 %v3279, %v3359
    %v3376 = vadd.f32 %v3280, %v3360
    %v3377 = vadd.f32 %v3281, %v3361
    %v3378 = vadd.f32 %v3282, %v3362
    %v3379 = vadd.f32 %v3283, %v3363
    %v3380 = vadd.f32 %v3284, %v3364
    %v3381 = vadd.f32 %v3285, %v3365
    %v3382 = vadd.f32 %v3286, %v3366
    %v3383 = vadd.f32 %v3287, %v3367
    %v3384 = vadd.f32 %v3288, %v3368
    %v3385 = vadd.f32 %v3289, %v3369
    %v3386 = vadd.f32 %v3290, %v3370
    %v3387 = vadd.f32 %v3291, %v3371
    %v3388 = vadd.f32 %v3292, %v3372
    %v3389 = vadd.f32 %v3293, %v3373
    %3390 = vset.pattern.permute.xlu0 5
    %3391 = vperm.xlu0 %3390, %v2865
    %v3392 = vpop.permute.xlu0 %3391
    %3394 = vset.pattern.permute.xlu0 5
    %3395 = vperm.xlu0 %3394, %v2869
    %v3396 = vpop.permute.xlu0 %3395
    %3398 = vset.pattern.permute.xlu0 5
    %3399 = vperm.xlu0 %3398, %v2873
    %v3400 = vpop.permute.xlu0 %3399
    %3402 = vset.pattern.permute.xlu0 5
    %3403 = vperm.xlu0 %3402, %v2877
    %v3404 = vpop.permute.xlu0 %3403
    %3406 = vset.pattern.permute.xlu0 5
    %3407 = vperm.xlu0 %3406, %v2881
    %v3408 = vpop.permute.xlu0 %3407
    %3410 = vset.pattern.permute.xlu0 5
    %3411 = vperm.xlu0 %3410, %v2885
    %v3412 = vpop.permute.xlu0 %3411
    %3414 = vset.pattern.permute.xlu0 5
    %3415 = vperm.xlu0 %3414, %v2889
    %v3416 = vpop.permute.xlu0 %3415
    %3418 = vset.pattern.permute.xlu0 5
    %3419 = vperm.xlu0 %3418, %v2893
    %v3420 = vpop.permute.xlu0 %3419
    %3422 = vset.pattern.permute.xlu0 5
    %3423 = vperm.xlu0 %3422, %v2897
    %v3424 = vpop.permute.xlu0 %3423
    %3426 = vset.pattern.permute.xlu0 5
    %3427 = vperm.xlu0 %3426, %v2901
    %v3428 = vpop.permute.xlu0 %3427
    %3430 = vset.pattern.permute.xlu0 5
    %3431 = vperm.xlu0 %3430, %v2905
    %v3432 = vpop.permute.xlu0 %3431
    %3434 = vset.pattern.permute.xlu0 5
    %3435 = vperm.xlu0 %3434, %v2909
    %v3436 = vpop.permute.xlu0 %3435
    %3438 = vset.pattern.permute.xlu0 5
    %3439 = vperm.xlu0 %3438, %v2913
    %v3440 = vpop.permute.xlu0 %3439
    %3442 = vset.pattern.permute.xlu0 5
    %3443 = vperm.xlu0 %3442, %v2917
    %v3444 = vpop.permute.xlu0 %3443
    %3446 = vset.pattern.permute.xlu0 5
    %3447 = vperm.xlu0 %3446, %v2921
    %v3448 = vpop.permute.xlu0 %3447
    %3450 = vset.pattern.permute.xlu0 5
    %3451 = vperm.xlu0 %3450, %v2925
    %v3452 = vpop.permute.xlu0 %3451
    %v3454 = vmul.f32 %v3392, %v2756
    %v3455 = vmul.f32 %v3396, %v2756
    %v3456 = vmul.f32 %v3400, %v2756
    %v3457 = vmul.f32 %v3404, %v2756
    %v3458 = vmul.f32 %v3408, %v2756
    %v3459 = vmul.f32 %v3412, %v2756
    %v3460 = vmul.f32 %v3416, %v2756
    %v3461 = vmul.f32 %v3420, %v2756
    %v3462 = vmul.f32 %v3424, %v2756
    %v3463 = vmul.f32 %v3428, %v2756
    %v3464 = vmul.f32 %v3432, %v2756
    %v3465 = vmul.f32 %v3436, %v2756
    %v3466 = vmul.f32 %v3440, %v2756
    %v3467 = vmul.f32 %v3444, %v2756
    %v3468 = vmul.f32 %v3448, %v2756
    %v3469 = vmul.f32 %v3452, %v2756
    %v3470 = vadd.f32 %v3374, %v3454
    %v3471 = vadd.f32 %v3375, %v3455
    %v3472 = vadd.f32 %v3376, %v3456
    %v3473 = vadd.f32 %v3377, %v3457
    %v3474 = vadd.f32 %v3378, %v3458
    %v3475 = vadd.f32 %v3379, %v3459
    %v3476 = vadd.f32 %v3380, %v3460
    %v3477 = vadd.f32 %v3381, %v3461
    %v3478 = vadd.f32 %v3382, %v3462
    %v3479 = vadd.f32 %v3383, %v3463
    %v3480 = vadd.f32 %v3384, %v3464
    %v3481 = vadd.f32 %v3385, %v3465
    %v3482 = vadd.f32 %v3386, %v3466
    %v3483 = vadd.f32 %v3387, %v3467
    %v3484 = vadd.f32 %v3388, %v3468
    %v3485 = vadd.f32 %v3389, %v3469
    %3486 = vset.pattern.permute.xlu0 6
    %3487 = vperm.xlu0 %3486, %v2865
    %v3488 = vpop.permute.xlu0 %3487
    %3490 = vset.pattern.permute.xlu0 6
    %3491 = vperm.xlu0 %3490, %v2869
    %v3492 = vpop.permute.xlu0 %3491
    %3494 = vset.pattern.permute.xlu0 6
    %3495 = vperm.xlu0 %3494, %v2873
    %v3496 = vpop.permute.xlu0 %3495
    %3498 = vset.pattern.permute.xlu0 6
    %3499 = vperm.xlu0 %3498, %v2877
    %v3500 = vpop.permute.xlu0 %3499
    %3502 = vset.pattern.permute.xlu0 6
    %3503 = vperm.xlu0 %3502, %v2881
    %v3504 = vpop.permute.xlu0 %3503
    %3506 = vset.pattern.permute.xlu0 6
    %3507 = vperm.xlu0 %3506, %v2885
    %v3508 = vpop.permute.xlu0 %3507
    %3510 = vset.pattern.permute.xlu0 6
    %3511 = vperm.xlu0 %3510, %v2889
    %v3512 = vpop.permute.xlu0 %3511
    %3514 = vset.pattern.permute.xlu0 6
    %3515 = vperm.xlu0 %3514, %v2893
    %v3516 = vpop.permute.xlu0 %3515
    %3518 = vset.pattern.permute.xlu0 6
    %3519 = vperm.xlu0 %3518, %v2897
    %v3520 = vpop.permute.xlu0 %3519
    %3522 = vset.pattern.permute.xlu0 6
    %3523 = vperm.xlu0 %3522, %v2901
    %v3524 = vpop.permute.xlu0 %3523
    %3526 = vset.pattern.permute.xlu0 6
    %3527 = vperm.xlu0 %3526, %v2905
    %v3528 = vpop.permute.xlu0 %3527
    %3530 = vset.pattern.permute.xlu0 6
    %3531 = vperm.xlu0 %3530, %v2909
    %v3532 = vpop.permute.xlu0 %3531
    %3534 = vset.pattern.permute.xlu0 6
    %3535 = vperm.xlu0 %3534, %v2913
    %v3536 = vpop.permute.xlu0 %3535
    %3538 = vset.pattern.permute.xlu0 6
    %3539 = vperm.xlu0 %3538, %v2917
    %v3540 = vpop.permute.xlu0 %3539
    %3542 = vset.pattern.permute.xlu0 6
    %3543 = vperm.xlu0 %3542, %v2921
    %v3544 = vpop.permute.xlu0 %3543
    %3546 = vset.pattern.permute.xlu0 6
    %3547 = vperm.xlu0 %3546, %v2925
    %v3548 = vpop.permute.xlu0 %3547
    %v3550 = vmul.f32 %v3488, %v2757
    %v3551 = vmul.f32 %v3492, %v2757
    %v3552 = vmul.f32 %v3496, %v2757
    %v3553 = vmul.f32 %v3500, %v2757
    %v3554 = vmul.f32 %v3504, %v2757
    %v3555 = vmul.f32 %v3508, %v2757
    %v3556 = vmul.f32 %v3512, %v2757
    %v3557 = vmul.f32 %v3516, %v2757
    %v3558 = vmul.f32 %v3520, %v2757
    %v3559 = vmul.f32 %v3524, %v2757
    %v3560 = vmul.f32 %v3528, %v2757
    %v3561 = vmul.f32 %v3532, %v2757
    %v3562 = vmul.f32 %v3536, %v2757
    %v3563 = vmul.f32 %v3540, %v2757
    %v3564 = vmul.f32 %v3544, %v2757
    %v3565 = vmul.f32 %v3548, %v2757
    %v3566 = vadd.f32 %v3470, %v3550
    %v3567 = vadd.f32 %v3471, %v3551
    %v3568 = vadd.f32 %v3472, %v3552
    %v3569 = vadd.f32 %v3473, %v3553
    %v3570 = vadd.f32 %v3474, %v3554
    %v3571 = vadd.f32 %v3475, %v3555
    %v3572 = vadd.f32 %v3476, %v3556
    %v3573 = vadd.f32 %v3477, %v3557
    %v3574 = vadd.f32 %v3478, %v3558
    %v3575 = vadd.f32 %v3479, %v3559
    %v3576 = vadd.f32 %v3480, %v3560
    %v3577 = vadd.f32 %v3481, %v3561
    %v3578 = vadd.f32 %v3482, %v3562
    %v3579 = vadd.f32 %v3483, %v3563
    %v3580 = vadd.f32 %v3484, %v3564
    %v3581 = vadd.f32 %v3485, %v3565
    %3582 = vset.pattern.permute.xlu0 7
    %3583 = vperm.xlu0 %3582, %v2865
    %v3584 = vpop.permute.xlu0 %3583
    %3586 = vset.pattern.permute.xlu0 7
    %3587 = vperm.xlu0 %3586, %v2869
    %v3588 = vpop.permute.xlu0 %3587
    %3590 = vset.pattern.permute.xlu0 7
    %3591 = vperm.xlu0 %3590, %v2873
    %v3592 = vpop.permute.xlu0 %3591
    %3594 = vset.pattern.permute.xlu0 7
    %3595 = vperm.xlu0 %3594, %v2877
    %v3596 = vpop.permute.xlu0 %3595
    %3598 = vset.pattern.permute.xlu0 7
    %3599 = vperm.xlu0 %3598, %v2881
    %v3600 = vpop.permute.xlu0 %3599
    %3602 = vset.pattern.permute.xlu0 7
    %3603 = vperm.xlu0 %3602, %v2885
    %v3604 = vpop.permute.xlu0 %3603
    %3606 = vset.pattern.permute.xlu0 7
    %3607 = vperm.xlu0 %3606, %v2889
    %v3608 = vpop.permute.xlu0 %3607
    %3610 = vset.pattern.permute.xlu0 7
    %3611 = vperm.xlu0 %3610, %v2893
    %v3612 = vpop.permute.xlu0 %3611
    %3614 = vset.pattern.permute.xlu0 7
    %3615 = vperm.xlu0 %3614, %v2897
    %v3616 = vpop.permute.xlu0 %3615
    %3618 = vset.pattern.permute.xlu0 7
    %3619 = vperm.xlu0 %3618, %v2901
    %v3620 = vpop.permute.xlu0 %3619
    %3622 = vset.pattern.permute.xlu0 7
    %3623 = vperm.xlu0 %3622, %v2905
    %v3624 = vpop.permute.xlu0 %3623
    %3626 = vset.pattern.permute.xlu0 7
    %3627 = vperm.xlu0 %3626, %v2909
    %v3628 = vpop.permute.xlu0 %3627
    %3630 = vset.pattern.permute.xlu0 7
    %3631 = vperm.xlu0 %3630, %v2913
    %v3632 = vpop.permute.xlu0 %3631
    %3634 = vset.pattern.permute.xlu0 7
    %3635 = vperm.xlu0 %3634, %v2917
    %v3636 = vpop.permute.xlu0 %3635
    %3638 = vset.pattern.permute.xlu0 7
    %3639 = vperm.xlu0 %3638, %v2921
    %v3640 = vpop.permute.xlu0 %3639
    %3642 = vset.pattern.permute.xlu0 7
    %3643 = vperm.xlu0 %3642, %v2925
    %v3644 = vpop.permute.xlu0 %3643
    %v3646 = vmul.f32 %v3584, %v2758
    %v3647 = vmul.f32 %v3588, %v2758
    %v3648 = vmul.f32 %v3592, %v2758
    %v3649 = vmul.f32 %v3596, %v2758
    %v3650 = vmul.f32 %v3600, %v2758
    %v3651 = vmul.f32 %v3604, %v2758
    %v3652 = vmul.f32 %v3608, %v2758
    %v3653 = vmul.f32 %v3612, %v2758
    %v3654 = vmul.f32 %v3616, %v2758
    %v3655 = vmul.f32 %v3620, %v2758
    %v3656 = vmul.f32 %v3624, %v2758
    %v3657 = vmul.f32 %v3628, %v2758
    %v3658 = vmul.f32 %v3632, %v2758
    %v3659 = vmul.f32 %v3636, %v2758
    %v3660 = vmul.f32 %v3640, %v2758
    %v3661 = vmul.f32 %v3644, %v2758
    %v3662 = vadd.f32 %v3566, %v3646
    %v3663 = vadd.f32 %v3567, %v3647
    %v3664 = vadd.f32 %v3568, %v3648
    %v3665 = vadd.f32 %v3569, %v3649
    %v3666 = vadd.f32 %v3570, %v3650
    %v3667 = vadd.f32 %v3571, %v3651
    %v3668 = vadd.f32 %v3572, %v3652
    %v3669 = vadd.f32 %v3573, %v3653
    %v3670 = vadd.f32 %v3574, %v3654
    %v3671 = vadd.f32 %v3575, %v3655
    %v3672 = vadd.f32 %v3576, %v3656
    %v3673 = vadd.f32 %v3577, %v3657
    %v3674 = vadd.f32 %v3578, %v3658
    %v3675 = vadd.f32 %v3579, %v3659
    %v3676 = vadd.f32 %v3580, %v3660
    %v3677 = vadd.f32 %v3581, %v3661
    %v3678 = vld [vmem:[%s13] sm:$0x1]
    %v3679 = vld [vmem:[%s13 + $0x1] sm:$0x1]
    %v3680 = vld [vmem:[%s13 + $0x2] sm:$0x1]
    %v3681 = vld [vmem:[%s13 + $0x3] sm:$0x1]
    %v3682 = vld [vmem:[%s13 + $0x4] sm:$0x1]
    %v3683 = vld [vmem:[%s13 + $0x5] sm:$0x1]
    %v3684 = vld [vmem:[%s13 + $0x6] sm:$0x1]
    %v3685 = vld [vmem:[%s13 + $0x7] sm:$0x1]
    %v3686 = vld [vmem:[%s13 + $0x8] sm:$0x1]
    %v3687 = vld [vmem:[%s13 + $0x9] sm:$0x1]
    %v3688 = vld [vmem:[%s13 + $0xa] sm:$0x1]
    %v3689 = vld [vmem:[%s13 + $0xb] sm:$0x1]
    %v3690 = vld [vmem:[%s13 + $0xc] sm:$0x1]
    %v3691 = vld [vmem:[%s13 + $0xd] sm:$0x1]
    %v3692 = vld [vmem:[%s13 + $0xe] sm:$0x1]
    %v3693 = vld [vmem:[%s13 + $0xf] sm:$0x1]
    %v3710 = vlaneseq
    %v3711 = vshrl.u32 %v3710, 7
    %v3712 = vsub.s32 0, %v3711
    %v3713 = vrot.slane %v3678, %v3712
    %v3714 = vlaneseq
    %v3715 = vshrl.u32 %v3714, 7
    %v3716 = vsub.s32 0, %v3715
    %v3717 = vrot.slane %v3679, %v3716
    %v3718 = vlaneseq
    %v3719 = vshrl.u32 %v3718, 7
    %v3720 = vsub.s32 0, %v3719
    %v3721 = vrot.slane %v3680, %v3720
    %v3722 = vlaneseq
    %v3723 = vshrl.u32 %v3722, 7
    %v3724 = vsub.s32 0, %v3723
    %v3725 = vrot.slane %v3681, %v3724
    %v3726 = vlaneseq
    %v3727 = vshrl.u32 %v3726, 7
    %v3728 = vsub.s32 0, %v3727
    %v3729 = vrot.slane %v3682, %v3728
    %v3730 = vlaneseq
    %v3731 = vshrl.u32 %v3730, 7
    %v3732 = vsub.s32 0, %v3731
    %v3733 = vrot.slane %v3683, %v3732
    %v3734 = vlaneseq
    %v3735 = vshrl.u32 %v3734, 7
    %v3736 = vsub.s32 0, %v3735
    %v3737 = vrot.slane %v3684, %v3736
    %v3738 = vlaneseq
    %v3739 = vshrl.u32 %v3738, 7
    %v3740 = vsub.s32 0, %v3739
    %v3741 = vrot.slane %v3685, %v3740
    %v3742 = vlaneseq
    %v3743 = vshrl.u32 %v3742, 7
    %v3744 = vsub.s32 0, %v3743
    %v3745 = vrot.slane %v3686, %v3744
    %v3746 = vlaneseq
    %v3747 = vshrl.u32 %v3746, 7
    %v3748 = vsub.s32 0, %v3747
    %v3749 = vrot.slane %v3687, %v3748
    %v3750 = vlaneseq
    %v3751 = vshrl.u32 %v3750, 7
    %v3752 = vsub.s32 0, %v3751
    %v3753 = vrot.slane %v3688, %v3752
    %v3754 = vlaneseq
    %v3755 = vshrl.u32 %v3754, 7
    %v3756 = vsub.s32 0, %v3755
    %v3757 = vrot.slane %v3689, %v3756
    %v3758 = vlaneseq
    %v3759 = vshrl.u32 %v3758, 7
    %v3760 = vsub.s32 0, %v3759
    %v3761 = vrot.slane %v3690, %v3760
    %v3762 = vlaneseq
    %v3763 = vshrl.u32 %v3762, 7
    %v3764 = vsub.s32 0, %v3763
    %v3765 = vrot.slane %v3691, %v3764
    %v3766 = vlaneseq
    %v3767 = vshrl.u32 %v3766, 7
    %v3768 = vsub.s32 0, %v3767
    %v3769 = vrot.slane %v3692, %v3768
    %v3770 = vlaneseq
    %v3771 = vshrl.u32 %v3770, 7
    %v3772 = vsub.s32 0, %v3771
    %v3773 = vrot.slane %v3693, %v3772
    %3774 = vset.pattern.permute.xlu0 0
    %3775 = vperm.xlu0 %3774, %v3713
    %v3776 = vpop.permute.xlu0 %3775
    %3778 = vset.pattern.permute.xlu0 0
    %3779 = vperm.xlu0 %3778, %v3717
    %v3780 = vpop.permute.xlu0 %3779
    %3782 = vset.pattern.permute.xlu0 0
    %3783 = vperm.xlu0 %3782, %v3721
    %v3784 = vpop.permute.xlu0 %3783
    %3786 = vset.pattern.permute.xlu0 0
    %3787 = vperm.xlu0 %3786, %v3725
    %v3788 = vpop.permute.xlu0 %3787
    %3790 = vset.pattern.permute.xlu0 0
    %3791 = vperm.xlu0 %3790, %v3729
    %v3792 = vpop.permute.xlu0 %3791
    %3794 = vset.pattern.permute.xlu0 0
    %3795 = vperm.xlu0 %3794, %v3733
    %v3796 = vpop.permute.xlu0 %3795
    %3798 = vset.pattern.permute.xlu0 0
    %3799 = vperm.xlu0 %3798, %v3737
    %v3800 = vpop.permute.xlu0 %3799
    %3802 = vset.pattern.permute.xlu0 0
    %3803 = vperm.xlu0 %3802, %v3741
    %v3804 = vpop.permute.xlu0 %3803
    %3806 = vset.pattern.permute.xlu0 0
    %3807 = vperm.xlu0 %3806, %v3745
    %v3808 = vpop.permute.xlu0 %3807
    %3810 = vset.pattern.permute.xlu0 0
    %3811 = vperm.xlu0 %3810, %v3749
    %v3812 = vpop.permute.xlu0 %3811
    %3814 = vset.pattern.permute.xlu0 0
    %3815 = vperm.xlu0 %3814, %v3753
    %v3816 = vpop.permute.xlu0 %3815
    %3818 = vset.pattern.permute.xlu0 0
    %3819 = vperm.xlu0 %3818, %v3757
    %v3820 = vpop.permute.xlu0 %3819
    %3822 = vset.pattern.permute.xlu0 0
    %3823 = vperm.xlu0 %3822, %v3761
    %v3824 = vpop.permute.xlu0 %3823
    %3826 = vset.pattern.permute.xlu0 0
    %3827 = vperm.xlu0 %3826, %v3765
    %v3828 = vpop.permute.xlu0 %3827
    %3830 = vset.pattern.permute.xlu0 0
    %3831 = vperm.xlu0 %3830, %v3769
    %v3832 = vpop.permute.xlu0 %3831
    %3834 = vset.pattern.permute.xlu0 0
    %3835 = vperm.xlu0 %3834, %v3773
    %v3836 = vpop.permute.xlu0 %3835
    %v3838 = vadd.f32 %v3662, %v3776
    %v3839 = vadd.f32 %v3663, %v3780
    %v3840 = vadd.f32 %v3664, %v3784
    %v3841 = vadd.f32 %v3665, %v3788
    %v3842 = vadd.f32 %v3666, %v3792
    %v3843 = vadd.f32 %v3667, %v3796
    %v3844 = vadd.f32 %v3668, %v3800
    %v3845 = vadd.f32 %v3669, %v3804
    %v3846 = vadd.f32 %v3670, %v3808
    %v3847 = vadd.f32 %v3671, %v3812
    %v3848 = vadd.f32 %v3672, %v3816
    %v3849 = vadd.f32 %v3673, %v3820
    %v3850 = vadd.f32 %v3674, %v3824
    %v3851 = vadd.f32 %v3675, %v3828
    %v3852 = vadd.f32 %v3676, %v3832
    %v3853 = vadd.f32 %v3677, %v3836
    %v3854 = vmul.f32 %v3838, 0.5
    %v3855 = vmul.f32 %v3839, 0.5
    %v3856 = vmul.f32 %v3840, 0.5
    %v3857 = vmul.f32 %v3841, 0.5
    %v3858 = vmul.f32 %v3842, 0.5
    %v3859 = vmul.f32 %v3843, 0.5
    %v3860 = vmul.f32 %v3844, 0.5
    %v3861 = vmul.f32 %v3845, 0.5
    %v3862 = vmul.f32 %v3846, 0.5
    %v3863 = vmul.f32 %v3847, 0.5
    %v3864 = vmul.f32 %v3848, 0.5
    %v3865 = vmul.f32 %v3849, 0.5
    %v3866 = vmul.f32 %v3850, 0.5
    %v3867 = vmul.f32 %v3851, 0.5
    %v3868 = vmul.f32 %v3852, 0.5
    %v3869 = vmul.f32 %v3853, 0.5
    %v3870 = vmul.f32 %v3838, 0.70710677
    %v3871 = vmul.f32 %v3839, 0.70710677
    %v3872 = vmul.f32 %v3840, 0.70710677
    %v3873 = vmul.f32 %v3841, 0.70710677
    %v3874 = vmul.f32 %v3842, 0.70710677
    %v3875 = vmul.f32 %v3843, 0.70710677
    %v3876 = vmul.f32 %v3844, 0.70710677
    %v3877 = vmul.f32 %v3845, 0.70710677
    %v3878 = vmul.f32 %v3846, 0.70710677
    %v3879 = vmul.f32 %v3847, 0.70710677
    %v3880 = vmul.f32 %v3848, 0.70710677
    %v3881 = vmul.f32 %v3849, 0.70710677
    %v3882 = vmul.f32 %v3850, 0.70710677
    %v3883 = vmul.f32 %v3851, 0.70710677
    %v3884 = vmul.f32 %v3852, 0.70710677
    %v3885 = vmul.f32 %v3853, 0.70710677
    %v3886 = verf.f32.pop %v3870
    %v3887 = verf.f32.pop %v3871
    %v3888 = verf.f32.pop %v3872
    %v3889 = verf.f32.pop %v3873
    %v3890 = verf.f32.pop %v3874
    %v3891 = verf.f32.pop %v3875
    %v3892 = verf.f32.pop %v3876
    %v3893 = verf.f32.pop %v3877
    %v3894 = verf.f32.pop %v3878
    %v3895 = verf.f32.pop %v3879
    %v3896 = verf.f32.pop %v3880
    %v3897 = verf.f32.pop %v3881
    %v3898 = verf.f32.pop %v3882
    %v3899 = verf.f32.pop %v3883
    %v3900 = verf.f32.pop %v3884
    %v3901 = verf.f32.pop %v3885
    %v3902 = vadd.f32 %v3886, 1.0
    %v3903 = vadd.f32 %v3887, 1.0
    %v3904 = vadd.f32 %v3888, 1.0
    %v3905 = vadd.f32 %v3889, 1.0
    %v3906 = vadd.f32 %v3890, 1.0
    %v3907 = vadd.f32 %v3891, 1.0
    %v3908 = vadd.f32 %v3892, 1.0
    %v3909 = vadd.f32 %v3893, 1.0
    %v3910 = vadd.f32 %v3894, 1.0
    %v3911 = vadd.f32 %v3895, 1.0
    %v3912 = vadd.f32 %v3896, 1.0
    %v3913 = vadd.f32 %v3897, 1.0
    %v3914 = vadd.f32 %v3898, 1.0
    %v3915 = vadd.f32 %v3899, 1.0
    %v3916 = vadd.f32 %v3900, 1.0
    %v3917 = vadd.f32 %v3901, 1.0
    %v3918 = vmul.f32 %v3854, %v3902
    %v3919 = vmul.f32 %v3855, %v3903
    %v3920 = vmul.f32 %v3856, %v3904
    %v3921 = vmul.f32 %v3857, %v3905
    %v3922 = vmul.f32 %v3858, %v3906
    %v3923 = vmul.f32 %v3859, %v3907
    %v3924 = vmul.f32 %v3860, %v3908
    %v3925 = vmul.f32 %v3861, %v3909
    %v3926 = vmul.f32 %v3862, %v3910
    %v3927 = vmul.f32 %v3863, %v3911
    %v3928 = vmul.f32 %v3864, %v3912
    %v3929 = vmul.f32 %v3865, %v3913
    %v3930 = vmul.f32 %v3866, %v3914
    %v3931 = vmul.f32 %v3867, %v3915
    %v3932 = vmul.f32 %v3868, %v3916
    %v3933 = vmul.f32 %v3869, %v3917
    %v3935 = vcombine.high %v2761, %v2761
    %v3937 = vunpack.c.l.s4 1966171168
    %v3938 = vunpack.c.0.s8 %v3937
    %v3939 = vlaneseq
    %v3940 = vshrl.u32 %v3939, 7
    %v3941 = vsub.s32 %v3938, %v3940
    %v3942 = vrot.slane %v2761, %v3941
    %v3944 = vunpack.c.l.s4 1966171168
    %v3945 = vunpack.c.0.s8 %v3944
    %v3946 = vlaneseq
    %v3947 = vshrl.u32 %v3946, 7
    %v3948 = vsub.s32 %v3945, %v3947
    %v3949 = vrot.slane %v3935, %v3948
    %v3950 = vcombine.high %v3942, %v3942
    %v3951 = vcombine.high %v3949, %v3949
    %v3953 = vunpack.c.l.s4 1966171168
    %v3954 = vunpack.c.0.s8 %v3953
    %v3955 = vlaneseq
    %v3956 = vshrl.u32 %v3955, 7
    %v3957 = vsub.s32 %v3954, %v3956
    %v3958 = vrot.slane %v3942, %v3957
    %v3960 = vunpack.c.l.s4 1966171168
    %v3961 = vunpack.c.0.s8 %v3960
    %v3962 = vlaneseq
    %v3963 = vshrl.u32 %v3962, 7
    %v3964 = vsub.s32 %v3961, %v3963
    %v3965 = vrot.slane %v3949, %v3964
    %v3967 = vunpack.c.l.s4 1966171168
    %v3968 = vunpack.c.0.s8 %v3967
    %v3969 = vlaneseq
    %v3970 = vshrl.u32 %v3969, 7
    %v3971 = vsub.s32 %v3968, %v3970
    %v3972 = vrot.slane %v3950, %v3971
    %v3974 = vunpack.c.l.s4 1966171168
    %v3975 = vunpack.c.0.s8 %v3974
    %v3976 = vlaneseq
    %v3977 = vshrl.u32 %v3976, 7
    %v3978 = vsub.s32 %v3975, %v3977
    %v3979 = vrot.slane %v3951, %v3978
    %v3980 = vcombine.high %v3958, %v3958
    %v3981 = vcombine.high %v3965, %v3965
    %v3982 = vcombine.high %v3972, %v3972
    %v3983 = vcombine.high %v3979, %v3979
    %v3984 = vlaneseq
    %v3985 = vshrl.u32 %v3984, 7
    %v3986 = vsub.s32 0, %v3985
    %v3987 = vrot.slane %v3958, %v3986
    %v3988 = vlaneseq
    %v3989 = vshrl.u32 %v3988, 7
    %v3990 = vsub.s32 0, %v3989
    %v3991 = vrot.slane %v3972, %v3990
    %v3992 = vlaneseq
    %v3993 = vshrl.u32 %v3992, 7
    %v3994 = vsub.s32 0, %v3993
    %v3995 = vrot.slane %v3980, %v3994
    %v3996 = vlaneseq
    %v3997 = vshrl.u32 %v3996, 7
    %v3998 = vsub.s32 0, %v3997
    %v3999 = vrot.slane %v3982, %v3998
    %v4000 = vlaneseq
    %v4001 = vshrl.u32 %v4000, 7
    %v4002 = vsub.s32 0, %v4001
    %v4003 = vrot.slane %v3965, %v4002
    %v4004 = vlaneseq
    %v4005 = vshrl.u32 %v4004, 7
    %v4006 = vsub.s32 0, %v4005
    %v4007 = vrot.slane %v3979, %v4006
    %v4008 = vlaneseq
    %v4009 = vshrl.u32 %v4008, 7
    %v4010 = vsub.s32 0, %v4009
    %v4011 = vrot.slane %v3981, %v4010
    %v4012 = vlaneseq
    %v4013 = vshrl.u32 %v4012, 7
    %v4014 = vsub.s32 0, %v4013
    %v4015 = vrot.slane %v3983, %v4014
    %4016 = vset.pattern.permute.xlu0 0
    %4017 = vperm.xlu0 %4016, %v3987
    %v4018 = vpop.permute.xlu0 %4017
    %4020 = vset.pattern.permute.xlu0 0
    %4021 = vperm.xlu0 %4020, %v3991
    %v4022 = vpop.permute.xlu0 %4021
    %4024 = vset.pattern.permute.xlu0 0
    %4025 = vperm.xlu0 %4024, %v3995
    %v4026 = vpop.permute.xlu0 %4025
    %4028 = vset.pattern.permute.xlu0 0
    %4029 = vperm.xlu0 %4028, %v3999
    %v4030 = vpop.permute.xlu0 %4029
    %4032 = vset.pattern.permute.xlu0 0
    %4033 = vperm.xlu0 %4032, %v4003
    %v4034 = vpop.permute.xlu0 %4033
    %4036 = vset.pattern.permute.xlu0 0
    %4037 = vperm.xlu0 %4036, %v4007
    %v4038 = vpop.permute.xlu0 %4037
    %4040 = vset.pattern.permute.xlu0 0
    %4041 = vperm.xlu0 %4040, %v4011
    %v4042 = vpop.permute.xlu0 %4041
    %4044 = vset.pattern.permute.xlu0 0
    %4045 = vperm.xlu0 %4044, %v4015
    %v4046 = vpop.permute.xlu0 %4045
    %v4048 = vmul.f32 %v4018, %v3918
    %v4049 = vmul.f32 %v4022, %v3918
    %v4050 = vmul.f32 %v4026, %v3918
    %v4051 = vmul.f32 %v4030, %v3918
    %v4052 = vmul.f32 %v4034, %v3918
    %v4053 = vmul.f32 %v4038, %v3918
    %v4054 = vmul.f32 %v4042, %v3918
    %v4055 = vmul.f32 %v4046, %v3918
    %4056 = vset.pattern.permute.xlu0 1
    %4057 = vperm.xlu0 %4056, %v3987
    %v4058 = vpop.permute.xlu0 %4057
    %4060 = vset.pattern.permute.xlu0 1
    %4061 = vperm.xlu0 %4060, %v3991
    %v4062 = vpop.permute.xlu0 %4061
    %4064 = vset.pattern.permute.xlu0 1
    %4065 = vperm.xlu0 %4064, %v3995
    %v4066 = vpop.permute.xlu0 %4065
    %4068 = vset.pattern.permute.xlu0 1
    %4069 = vperm.xlu0 %4068, %v3999
    %v4070 = vpop.permute.xlu0 %4069
    %4072 = vset.pattern.permute.xlu0 1
    %4073 = vperm.xlu0 %4072, %v4003
    %v4074 = vpop.permute.xlu0 %4073
    %4076 = vset.pattern.permute.xlu0 1
    %4077 = vperm.xlu0 %4076, %v4007
    %v4078 = vpop.permute.xlu0 %4077
    %4080 = vset.pattern.permute.xlu0 1
    %4081 = vperm.xlu0 %4080, %v4011
    %v4082 = vpop.permute.xlu0 %4081
    %4084 = vset.pattern.permute.xlu0 1
    %4085 = vperm.xlu0 %4084, %v4015
    %v4086 = vpop.permute.xlu0 %4085
    %v4088 = vmul.f32 %v4058, %v3919
    %v4089 = vmul.f32 %v4062, %v3919
    %v4090 = vmul.f32 %v4066, %v3919
    %v4091 = vmul.f32 %v4070, %v3919
    %v4092 = vmul.f32 %v4074, %v3919
    %v4093 = vmul.f32 %v4078, %v3919
    %v4094 = vmul.f32 %v4082, %v3919
    %v4095 = vmul.f32 %v4086, %v3919
    %v4096 = vadd.f32 %v4048, %v4088
    %v4097 = vadd.f32 %v4049, %v4089
    %v4098 = vadd.f32 %v4050, %v4090
    %v4099 = vadd.f32 %v4051, %v4091
    %v4100 = vadd.f32 %v4052, %v4092
    %v4101 = vadd.f32 %v4053, %v4093
    %v4102 = vadd.f32 %v4054, %v4094
    %v4103 = vadd.f32 %v4055, %v4095
    %4104 = vset.pattern.permute.xlu0 2
    %4105 = vperm.xlu0 %4104, %v3987
    %v4106 = vpop.permute.xlu0 %4105
    %4108 = vset.pattern.permute.xlu0 2
    %4109 = vperm.xlu0 %4108, %v3991
    %v4110 = vpop.permute.xlu0 %4109
    %4112 = vset.pattern.permute.xlu0 2
    %4113 = vperm.xlu0 %4112, %v3995
    %v4114 = vpop.permute.xlu0 %4113
    %4116 = vset.pattern.permute.xlu0 2
    %4117 = vperm.xlu0 %4116, %v3999
    %v4118 = vpop.permute.xlu0 %4117
    %4120 = vset.pattern.permute.xlu0 2
    %4121 = vperm.xlu0 %4120, %v4003
    %v4122 = vpop.permute.xlu0 %4121
    %4124 = vset.pattern.permute.xlu0 2
    %4125 = vperm.xlu0 %4124, %v4007
    %v4126 = vpop.permute.xlu0 %4125
    %4128 = vset.pattern.permute.xlu0 2
    %4129 = vperm.xlu0 %4128, %v4011
    %v4130 = vpop.permute.xlu0 %4129
    %4132 = vset.pattern.permute.xlu0 2
    %4133 = vperm.xlu0 %4132, %v4015
    %v4134 = vpop.permute.xlu0 %4133
    %v4136 = vmul.f32 %v4106, %v3920
    %v4137 = vmul.f32 %v4110, %v3920
    %v4138 = vmul.f32 %v4114, %v3920
    %v4139 = vmul.f32 %v4118, %v3920
    %v4140 = vmul.f32 %v4122, %v3920
    %v4141 = vmul.f32 %v4126, %v3920
    %v4142 = vmul.f32 %v4130, %v3920
    %v4143 = vmul.f32 %v4134, %v3920
    %v4144 = vadd.f32 %v4096, %v4136
    %v4145 = vadd.f32 %v4097, %v4137
    %v4146 = vadd.f32 %v4098, %v4138
    %v4147 = vadd.f32 %v4099, %v4139
    %v4148 = vadd.f32 %v4100, %v4140
    %v4149 = vadd.f32 %v4101, %v4141
    %v4150 = vadd.f32 %v4102, %v4142
    %v4151 = vadd.f32 %v4103, %v4143
    %4152 = vset.pattern.permute.xlu0 3
    %4153 = vperm.xlu0 %4152, %v3987
    %v4154 = vpop.permute.xlu0 %4153
    %4156 = vset.pattern.permute.xlu0 3
    %4157 = vperm.xlu0 %4156, %v3991
    %v4158 = vpop.permute.xlu0 %4157
    %4160 = vset.pattern.permute.xlu0 3
    %4161 = vperm.xlu0 %4160, %v3995
    %v4162 = vpop.permute.xlu0 %4161
    %4164 = vset.pattern.permute.xlu0 3
    %4165 = vperm.xlu0 %4164, %v3999
    %v4166 = vpop.permute.xlu0 %4165
    %4168 = vset.pattern.permute.xlu0 3
    %4169 = vperm.xlu0 %4168, %v4003
    %v4170 = vpop.permute.xlu0 %4169
    %4172 = vset.pattern.permute.xlu0 3
    %4173 = vperm.xlu0 %4172, %v4007
    %v4174 = vpop.permute.xlu0 %4173
    %4176 = vset.pattern.permute.xlu0 3
    %4177 = vperm.xlu0 %4176, %v4011
    %v4178 = vpop.permute.xlu0 %4177
    %4180 = vset.pattern.permute.xlu0 3
    %4181 = vperm.xlu0 %4180, %v4015
    %v4182 = vpop.permute.xlu0 %4181
    %v4184 = vmul.f32 %v4154, %v3921
    %v4185 = vmul.f32 %v4158, %v3921
    %v4186 = vmul.f32 %v4162, %v3921
    %v4187 = vmul.f32 %v4166, %v3921
    %v4188 = vmul.f32 %v4170, %v3921
    %v4189 = vmul.f32 %v4174, %v3921
    %v4190 = vmul.f32 %v4178, %v3921
    %v4191 = vmul.f32 %v4182, %v3921
    %v4192 = vadd.f32 %v4144, %v4184
    %v4193 = vadd.f32 %v4145, %v4185
    %v4194 = vadd.f32 %v4146, %v4186
    %v4195 = vadd.f32 %v4147, %v4187
    %v4196 = vadd.f32 %v4148, %v4188
    %v4197 = vadd.f32 %v4149, %v4189
    %v4198 = vadd.f32 %v4150, %v4190
    %v4199 = vadd.f32 %v4151, %v4191
    %4200 = vset.pattern.permute.xlu0 4
    %4201 = vperm.xlu0 %4200, %v3987
    %v4202 = vpop.permute.xlu0 %4201
    %4204 = vset.pattern.permute.xlu0 4
    %4205 = vperm.xlu0 %4204, %v3991
    %v4206 = vpop.permute.xlu0 %4205
    %4208 = vset.pattern.permute.xlu0 4
    %4209 = vperm.xlu0 %4208, %v3995
    %v4210 = vpop.permute.xlu0 %4209
    %4212 = vset.pattern.permute.xlu0 4
    %4213 = vperm.xlu0 %4212, %v3999
    %v4214 = vpop.permute.xlu0 %4213
    %4216 = vset.pattern.permute.xlu0 4
    %4217 = vperm.xlu0 %4216, %v4003
    %v4218 = vpop.permute.xlu0 %4217
    %4220 = vset.pattern.permute.xlu0 4
    %4221 = vperm.xlu0 %4220, %v4007
    %v4222 = vpop.permute.xlu0 %4221
    %4224 = vset.pattern.permute.xlu0 4
    %4225 = vperm.xlu0 %4224, %v4011
    %v4226 = vpop.permute.xlu0 %4225
    %4228 = vset.pattern.permute.xlu0 4
    %4229 = vperm.xlu0 %4228, %v4015
    %v4230 = vpop.permute.xlu0 %4229
    %v4232 = vmul.f32 %v4202, %v3922
    %v4233 = vmul.f32 %v4206, %v3922
    %v4234 = vmul.f32 %v4210, %v3922
    %v4235 = vmul.f32 %v4214, %v3922
    %v4236 = vmul.f32 %v4218, %v3922
    %v4237 = vmul.f32 %v4222, %v3922
    %v4238 = vmul.f32 %v4226, %v3922
    %v4239 = vmul.f32 %v4230, %v3922
    %v4240 = vadd.f32 %v4192, %v4232
    %v4241 = vadd.f32 %v4193, %v4233
    %v4242 = vadd.f32 %v4194, %v4234
    %v4243 = vadd.f32 %v4195, %v4235
    %v4244 = vadd.f32 %v4196, %v4236
    %v4245 = vadd.f32 %v4197, %v4237
    %v4246 = vadd.f32 %v4198, %v4238
    %v4247 = vadd.f32 %v4199, %v4239
    %4248 = vset.pattern.permute.xlu0 5
    %4249 = vperm.xlu0 %4248, %v3987
    %v4250 = vpop.permute.xlu0 %4249
    %4252 = vset.pattern.permute.xlu0 5
    %4253 = vperm.xlu0 %4252, %v3991
    %v4254 = vpop.permute.xlu0 %4253
    %4256 = vset.pattern.permute.xlu0 5
    %4257 = vperm.xlu0 %4256, %v3995
    %v4258 = vpop.permute.xlu0 %4257
    %4260 = vset.pattern.permute.xlu0 5
    %4261 = vperm.xlu0 %4260, %v3999
    %v4262 = vpop.permute.xlu0 %4261
    %4264 = vset.pattern.permute.xlu0 5
    %4265 = vperm.xlu0 %4264, %v4003
    %v4266 = vpop.permute.xlu0 %4265
    %4268 = vset.pattern.permute.xlu0 5
    %4269 = vperm.xlu0 %4268, %v4007
    %v4270 = vpop.permute.xlu0 %4269
    %4272 = vset.pattern.permute.xlu0 5
    %4273 = vperm.xlu0 %4272, %v4011
    %v4274 = vpop.permute.xlu0 %4273
    %4276 = vset.pattern.permute.xlu0 5
    %4277 = vperm.xlu0 %4276, %v4015
    %v4278 = vpop.permute.xlu0 %4277
    %v4280 = vmul.f32 %v4250, %v3923
    %v4281 = vmul.f32 %v4254, %v3923
    %v4282 = vmul.f32 %v4258, %v3923
    %v4283 = vmul.f32 %v4262, %v3923
    %v4284 = vmul.f32 %v4266, %v3923
    %v4285 = vmul.f32 %v4270, %v3923
    %v4286 = vmul.f32 %v4274, %v3923
    %v4287 = vmul.f32 %v4278, %v3923
    %v4288 = vadd.f32 %v4240, %v4280
    %v4289 = vadd.f32 %v4241, %v4281
    %v4290 = vadd.f32 %v4242, %v4282
    %v4291 = vadd.f32 %v4243, %v4283
    %v4292 = vadd.f32 %v4244, %v4284
    %v4293 = vadd.f32 %v4245, %v4285
    %v4294 = vadd.f32 %v4246, %v4286
    %v4295 = vadd.f32 %v4247, %v4287
    %4296 = vset.pattern.permute.xlu0 6
    %4297 = vperm.xlu0 %4296, %v3987
    %v4298 = vpop.permute.xlu0 %4297
    %4300 = vset.pattern.permute.xlu0 6
    %4301 = vperm.xlu0 %4300, %v3991
    %v4302 = vpop.permute.xlu0 %4301
    %4304 = vset.pattern.permute.xlu0 6
    %4305 = vperm.xlu0 %4304, %v3995
    %v4306 = vpop.permute.xlu0 %4305
    %4308 = vset.pattern.permute.xlu0 6
    %4309 = vperm.xlu0 %4308, %v3999
    %v4310 = vpop.permute.xlu0 %4309
    %4312 = vset.pattern.permute.xlu0 6
    %4313 = vperm.xlu0 %4312, %v4003
    %v4314 = vpop.permute.xlu0 %4313
    %4316 = vset.pattern.permute.xlu0 6
    %4317 = vperm.xlu0 %4316, %v4007
    %v4318 = vpop.permute.xlu0 %4317
    %4320 = vset.pattern.permute.xlu0 6
    %4321 = vperm.xlu0 %4320, %v4011
    %v4322 = vpop.permute.xlu0 %4321
    %4324 = vset.pattern.permute.xlu0 6
    %4325 = vperm.xlu0 %4324, %v4015
    %v4326 = vpop.permute.xlu0 %4325
    %v4328 = vmul.f32 %v4298, %v3924
    %v4329 = vmul.f32 %v4302, %v3924
    %v4330 = vmul.f32 %v4306, %v3924
    %v4331 = vmul.f32 %v4310, %v3924
    %v4332 = vmul.f32 %v4314, %v3924
    %v4333 = vmul.f32 %v4318, %v3924
    %v4334 = vmul.f32 %v4322, %v3924
    %v4335 = vmul.f32 %v4326, %v3924
    %v4336 = vadd.f32 %v4288, %v4328
    %v4337 = vadd.f32 %v4289, %v4329
    %v4338 = vadd.f32 %v4290, %v4330
    %v4339 = vadd.f32 %v4291, %v4331
    %v4340 = vadd.f32 %v4292, %v4332
    %v4341 = vadd.f32 %v4293, %v4333
    %v4342 = vadd.f32 %v4294, %v4334
    %v4343 = vadd.f32 %v4295, %v4335
    %4344 = vset.pattern.permute.xlu0 7
    %4345 = vperm.xlu0 %4344, %v3987
    %v4346 = vpop.permute.xlu0 %4345
    %4348 = vset.pattern.permute.xlu0 7
    %4349 = vperm.xlu0 %4348, %v3991
    %v4350 = vpop.permute.xlu0 %4349
    %4352 = vset.pattern.permute.xlu0 7
    %4353 = vperm.xlu0 %4352, %v3995
    %v4354 = vpop.permute.xlu0 %4353
    %4356 = vset.pattern.permute.xlu0 7
    %4357 = vperm.xlu0 %4356, %v3999
    %v4358 = vpop.permute.xlu0 %4357
    %4360 = vset.pattern.permute.xlu0 7
    %4361 = vperm.xlu0 %4360, %v4003
    %v4362 = vpop.permute.xlu0 %4361
    %4364 = vset.pattern.permute.xlu0 7
    %4365 = vperm.xlu0 %4364, %v4007
    %v4366 = vpop.permute.xlu0 %4365
    %4368 = vset.pattern.permute.xlu0 7
    %4369 = vperm.xlu0 %4368, %v4011
    %v4370 = vpop.permute.xlu0 %4369
    %4372 = vset.pattern.permute.xlu0 7
    %4373 = vperm.xlu0 %4372, %v4015
    %v4374 = vpop.permute.xlu0 %4373
    %v4376 = vmul.f32 %v4346, %v3925
    %v4377 = vmul.f32 %v4350, %v3925
    %v4378 = vmul.f32 %v4354, %v3925
    %v4379 = vmul.f32 %v4358, %v3925
    %v4380 = vmul.f32 %v4362, %v3925
    %v4381 = vmul.f32 %v4366, %v3925
    %v4382 = vmul.f32 %v4370, %v3925
    %v4383 = vmul.f32 %v4374, %v3925
    %v4384 = vadd.f32 %v4336, %v4376
    %v4385 = vadd.f32 %v4337, %v4377
    %v4386 = vadd.f32 %v4338, %v4378
    %v4387 = vadd.f32 %v4339, %v4379
    %v4388 = vadd.f32 %v4340, %v4380
    %v4389 = vadd.f32 %v4341, %v4381
    %v4390 = vadd.f32 %v4342, %v4382
    %v4391 = vadd.f32 %v4343, %v4383
    %4392 = vset.pattern.permute.xlu0 8
    %4393 = vperm.xlu0 %4392, %v3987
    %v4394 = vpop.permute.xlu0 %4393
    %4396 = vset.pattern.permute.xlu0 8
    %4397 = vperm.xlu0 %4396, %v3991
    %v4398 = vpop.permute.xlu0 %4397
    %4400 = vset.pattern.permute.xlu0 8
    %4401 = vperm.xlu0 %4400, %v3995
    %v4402 = vpop.permute.xlu0 %4401
    %4404 = vset.pattern.permute.xlu0 8
    %4405 = vperm.xlu0 %4404, %v3999
    %v4406 = vpop.permute.xlu0 %4405
    %4408 = vset.pattern.permute.xlu0 8
    %4409 = vperm.xlu0 %4408, %v4003
    %v4410 = vpop.permute.xlu0 %4409
    %4412 = vset.pattern.permute.xlu0 8
    %4413 = vperm.xlu0 %4412, %v4007
    %v4414 = vpop.permute.xlu0 %4413
    %4416 = vset.pattern.permute.xlu0 8
    %4417 = vperm.xlu0 %4416, %v4011
    %v4418 = vpop.permute.xlu0 %4417
    %4420 = vset.pattern.permute.xlu0 8
    %4421 = vperm.xlu0 %4420, %v4015
    %v4422 = vpop.permute.xlu0 %4421
    %v4424 = vmul.f32 %v4394, %v3926
    %v4425 = vmul.f32 %v4398, %v3926
    %v4426 = vmul.f32 %v4402, %v3926
    %v4427 = vmul.f32 %v4406, %v3926
    %v4428 = vmul.f32 %v4410, %v3926
    %v4429 = vmul.f32 %v4414, %v3926
    %v4430 = vmul.f32 %v4418, %v3926
    %v4431 = vmul.f32 %v4422, %v3926
    %v4432 = vadd.f32 %v4384, %v4424
    %v4433 = vadd.f32 %v4385, %v4425
    %v4434 = vadd.f32 %v4386, %v4426
    %v4435 = vadd.f32 %v4387, %v4427
    %v4436 = vadd.f32 %v4388, %v4428
    %v4437 = vadd.f32 %v4389, %v4429
    %v4438 = vadd.f32 %v4390, %v4430
    %v4439 = vadd.f32 %v4391, %v4431
    %4440 = vset.pattern.permute.xlu0 9
    %4441 = vperm.xlu0 %4440, %v3987
    %v4442 = vpop.permute.xlu0 %4441
    %4444 = vset.pattern.permute.xlu0 9
    %4445 = vperm.xlu0 %4444, %v3991
    %v4446 = vpop.permute.xlu0 %4445
    %4448 = vset.pattern.permute.xlu0 9
    %4449 = vperm.xlu0 %4448, %v3995
    %v4450 = vpop.permute.xlu0 %4449
    %4452 = vset.pattern.permute.xlu0 9
    %4453 = vperm.xlu0 %4452, %v3999
    %v4454 = vpop.permute.xlu0 %4453
    %4456 = vset.pattern.permute.xlu0 9
    %4457 = vperm.xlu0 %4456, %v4003
    %v4458 = vpop.permute.xlu0 %4457
    %4460 = vset.pattern.permute.xlu0 9
    %4461 = vperm.xlu0 %4460, %v4007
    %v4462 = vpop.permute.xlu0 %4461
    %4464 = vset.pattern.permute.xlu0 9
    %4465 = vperm.xlu0 %4464, %v4011
    %v4466 = vpop.permute.xlu0 %4465
    %4468 = vset.pattern.permute.xlu0 9
    %4469 = vperm.xlu0 %4468, %v4015
    %v4470 = vpop.permute.xlu0 %4469
    %v4472 = vmul.f32 %v4442, %v3927
    %v4473 = vmul.f32 %v4446, %v3927
    %v4474 = vmul.f32 %v4450, %v3927
    %v4475 = vmul.f32 %v4454, %v3927
    %v4476 = vmul.f32 %v4458, %v3927
    %v4477 = vmul.f32 %v4462, %v3927
    %v4478 = vmul.f32 %v4466, %v3927
    %v4479 = vmul.f32 %v4470, %v3927
    %v4480 = vadd.f32 %v4432, %v4472
    %v4481 = vadd.f32 %v4433, %v4473
    %v4482 = vadd.f32 %v4434, %v4474
    %v4483 = vadd.f32 %v4435, %v4475
    %v4484 = vadd.f32 %v4436, %v4476
    %v4485 = vadd.f32 %v4437, %v4477
    %v4486 = vadd.f32 %v4438, %v4478
    %v4487 = vadd.f32 %v4439, %v4479
    %4488 = vset.pattern.permute.xlu0 10
    %4489 = vperm.xlu0 %4488, %v3987
    %v4490 = vpop.permute.xlu0 %4489
    %4492 = vset.pattern.permute.xlu0 10
    %4493 = vperm.xlu0 %4492, %v3991
    %v4494 = vpop.permute.xlu0 %4493
    %4496 = vset.pattern.permute.xlu0 10
    %4497 = vperm.xlu0 %4496, %v3995
    %v4498 = vpop.permute.xlu0 %4497
    %4500 = vset.pattern.permute.xlu0 10
    %4501 = vperm.xlu0 %4500, %v3999
    %v4502 = vpop.permute.xlu0 %4501
    %4504 = vset.pattern.permute.xlu0 10
    %4505 = vperm.xlu0 %4504, %v4003
    %v4506 = vpop.permute.xlu0 %4505
    %4508 = vset.pattern.permute.xlu0 10
    %4509 = vperm.xlu0 %4508, %v4007
    %v4510 = vpop.permute.xlu0 %4509
    %4512 = vset.pattern.permute.xlu0 10
    %4513 = vperm.xlu0 %4512, %v4011
    %v4514 = vpop.permute.xlu0 %4513
    %4516 = vset.pattern.permute.xlu0 10
    %4517 = vperm.xlu0 %4516, %v4015
    %v4518 = vpop.permute.xlu0 %4517
    %v4520 = vmul.f32 %v4490, %v3928
    %v4521 = vmul.f32 %v4494, %v3928
    %v4522 = vmul.f32 %v4498, %v3928
    %v4523 = vmul.f32 %v4502, %v3928
    %v4524 = vmul.f32 %v4506, %v3928
    %v4525 = vmul.f32 %v4510, %v3928
    %v4526 = vmul.f32 %v4514, %v3928
    %v4527 = vmul.f32 %v4518, %v3928
    %v4528 = vadd.f32 %v4480, %v4520
    %v4529 = vadd.f32 %v4481, %v4521
    %v4530 = vadd.f32 %v4482, %v4522
    %v4531 = vadd.f32 %v4483, %v4523
    %v4532 = vadd.f32 %v4484, %v4524
    %v4533 = vadd.f32 %v4485, %v4525
    %v4534 = vadd.f32 %v4486, %v4526
    %v4535 = vadd.f32 %v4487, %v4527
    %4536 = vset.pattern.permute.xlu0 11
    %4537 = vperm.xlu0 %4536, %v3987
    %v4538 = vpop.permute.xlu0 %4537
    %4540 = vset.pattern.permute.xlu0 11
    %4541 = vperm.xlu0 %4540, %v3991
    %v4542 = vpop.permute.xlu0 %4541
    %4544 = vset.pattern.permute.xlu0 11
    %4545 = vperm.xlu0 %4544, %v3995
    %v4546 = vpop.permute.xlu0 %4545
    %4548 = vset.pattern.permute.xlu0 11
    %4549 = vperm.xlu0 %4548, %v3999
    %v4550 = vpop.permute.xlu0 %4549
    %4552 = vset.pattern.permute.xlu0 11
    %4553 = vperm.xlu0 %4552, %v4003
    %v4554 = vpop.permute.xlu0 %4553
    %4556 = vset.pattern.permute.xlu0 11
    %4557 = vperm.xlu0 %4556, %v4007
    %v4558 = vpop.permute.xlu0 %4557
    %4560 = vset.pattern.permute.xlu0 11
    %4561 = vperm.xlu0 %4560, %v4011
    %v4562 = vpop.permute.xlu0 %4561
    %4564 = vset.pattern.permute.xlu0 11
    %4565 = vperm.xlu0 %4564, %v4015
    %v4566 = vpop.permute.xlu0 %4565
    %v4568 = vmul.f32 %v4538, %v3929
    %v4569 = vmul.f32 %v4542, %v3929
    %v4570 = vmul.f32 %v4546, %v3929
    %v4571 = vmul.f32 %v4550, %v3929
    %v4572 = vmul.f32 %v4554, %v3929
    %v4573 = vmul.f32 %v4558, %v3929
    %v4574 = vmul.f32 %v4562, %v3929
    %v4575 = vmul.f32 %v4566, %v3929
    %v4576 = vadd.f32 %v4528, %v4568
    %v4577 = vadd.f32 %v4529, %v4569
    %v4578 = vadd.f32 %v4530, %v4570
    %v4579 = vadd.f32 %v4531, %v4571
    %v4580 = vadd.f32 %v4532, %v4572
    %v4581 = vadd.f32 %v4533, %v4573
    %v4582 = vadd.f32 %v4534, %v4574
    %v4583 = vadd.f32 %v4535, %v4575
    %4584 = vset.pattern.permute.xlu0 12
    %4585 = vperm.xlu0 %4584, %v3987
    %v4586 = vpop.permute.xlu0 %4585
    %4588 = vset.pattern.permute.xlu0 12
    %4589 = vperm.xlu0 %4588, %v3991
    %v4590 = vpop.permute.xlu0 %4589
    %4592 = vset.pattern.permute.xlu0 12
    %4593 = vperm.xlu0 %4592, %v3995
    %v4594 = vpop.permute.xlu0 %4593
    %4596 = vset.pattern.permute.xlu0 12
    %4597 = vperm.xlu0 %4596, %v3999
    %v4598 = vpop.permute.xlu0 %4597
    %4600 = vset.pattern.permute.xlu0 12
    %4601 = vperm.xlu0 %4600, %v4003
    %v4602 = vpop.permute.xlu0 %4601
    %4604 = vset.pattern.permute.xlu0 12
    %4605 = vperm.xlu0 %4604, %v4007
    %v4606 = vpop.permute.xlu0 %4605
    %4608 = vset.pattern.permute.xlu0 12
    %4609 = vperm.xlu0 %4608, %v4011
    %v4610 = vpop.permute.xlu0 %4609
    %4612 = vset.pattern.permute.xlu0 12
    %4613 = vperm.xlu0 %4612, %v4015
    %v4614 = vpop.permute.xlu0 %4613
    %v4616 = vmul.f32 %v4586, %v3930
    %v4617 = vmul.f32 %v4590, %v3930
    %v4618 = vmul.f32 %v4594, %v3930
    %v4619 = vmul.f32 %v4598, %v3930
    %v4620 = vmul.f32 %v4602, %v3930
    %v4621 = vmul.f32 %v4606, %v3930
    %v4622 = vmul.f32 %v4610, %v3930
    %v4623 = vmul.f32 %v4614, %v3930
    %v4624 = vadd.f32 %v4576, %v4616
    %v4625 = vadd.f32 %v4577, %v4617
    %v4626 = vadd.f32 %v4578, %v4618
    %v4627 = vadd.f32 %v4579, %v4619
    %v4628 = vadd.f32 %v4580, %v4620
    %v4629 = vadd.f32 %v4581, %v4621
    %v4630 = vadd.f32 %v4582, %v4622
    %v4631 = vadd.f32 %v4583, %v4623
    %4632 = vset.pattern.permute.xlu0 13
    %4633 = vperm.xlu0 %4632, %v3987
    %v4634 = vpop.permute.xlu0 %4633
    %4636 = vset.pattern.permute.xlu0 13
    %4637 = vperm.xlu0 %4636, %v3991
    %v4638 = vpop.permute.xlu0 %4637
    %4640 = vset.pattern.permute.xlu0 13
    %4641 = vperm.xlu0 %4640, %v3995
    %v4642 = vpop.permute.xlu0 %4641
    %4644 = vset.pattern.permute.xlu0 13
    %4645 = vperm.xlu0 %4644, %v3999
    %v4646 = vpop.permute.xlu0 %4645
    %4648 = vset.pattern.permute.xlu0 13
    %4649 = vperm.xlu0 %4648, %v4003
    %v4650 = vpop.permute.xlu0 %4649
    %4652 = vset.pattern.permute.xlu0 13
    %4653 = vperm.xlu0 %4652, %v4007
    %v4654 = vpop.permute.xlu0 %4653
    %4656 = vset.pattern.permute.xlu0 13
    %4657 = vperm.xlu0 %4656, %v4011
    %v4658 = vpop.permute.xlu0 %4657
    %4660 = vset.pattern.permute.xlu0 13
    %4661 = vperm.xlu0 %4660, %v4015
    %v4662 = vpop.permute.xlu0 %4661
    %v4664 = vmul.f32 %v4634, %v3931
    %v4665 = vmul.f32 %v4638, %v3931
    %v4666 = vmul.f32 %v4642, %v3931
    %v4667 = vmul.f32 %v4646, %v3931
    %v4668 = vmul.f32 %v4650, %v3931
    %v4669 = vmul.f32 %v4654, %v3931
    %v4670 = vmul.f32 %v4658, %v3931
    %v4671 = vmul.f32 %v4662, %v3931
    %v4672 = vadd.f32 %v4624, %v4664
    %v4673 = vadd.f32 %v4625, %v4665
    %v4674 = vadd.f32 %v4626, %v4666
    %v4675 = vadd.f32 %v4627, %v4667
    %v4676 = vadd.f32 %v4628, %v4668
    %v4677 = vadd.f32 %v4629, %v4669
    %v4678 = vadd.f32 %v4630, %v4670
    %v4679 = vadd.f32 %v4631, %v4671
    %4680 = vset.pattern.permute.xlu0 14
    %4681 = vperm.xlu0 %4680, %v3987
    %v4682 = vpop.permute.xlu0 %4681
    %4684 = vset.pattern.permute.xlu0 14
    %4685 = vperm.xlu0 %4684, %v3991
    %v4686 = vpop.permute.xlu0 %4685
    %4688 = vset.pattern.permute.xlu0 14
    %4689 = vperm.xlu0 %4688, %v3995
    %v4690 = vpop.permute.xlu0 %4689
    %4692 = vset.pattern.permute.xlu0 14
    %4693 = vperm.xlu0 %4692, %v3999
    %v4694 = vpop.permute.xlu0 %4693
    %4696 = vset.pattern.permute.xlu0 14
    %4697 = vperm.xlu0 %4696, %v4003
    %v4698 = vpop.permute.xlu0 %4697
    %4700 = vset.pattern.permute.xlu0 14
    %4701 = vperm.xlu0 %4700, %v4007
    %v4702 = vpop.permute.xlu0 %4701
    %4704 = vset.pattern.permute.xlu0 14
    %4705 = vperm.xlu0 %4704, %v4011
    %v4706 = vpop.permute.xlu0 %4705
    %4708 = vset.pattern.permute.xlu0 14
    %4709 = vperm.xlu0 %4708, %v4015
    %v4710 = vpop.permute.xlu0 %4709
    %v4712 = vmul.f32 %v4682, %v3932
    %v4713 = vmul.f32 %v4686, %v3932
    %v4714 = vmul.f32 %v4690, %v3932
    %v4715 = vmul.f32 %v4694, %v3932
    %v4716 = vmul.f32 %v4698, %v3932
    %v4717 = vmul.f32 %v4702, %v3932
    %v4718 = vmul.f32 %v4706, %v3932
    %v4719 = vmul.f32 %v4710, %v3932
    %v4720 = vadd.f32 %v4672, %v4712
    %v4721 = vadd.f32 %v4673, %v4713
    %v4722 = vadd.f32 %v4674, %v4714
    %v4723 = vadd.f32 %v4675, %v4715
    %v4724 = vadd.f32 %v4676, %v4716
    %v4725 = vadd.f32 %v4677, %v4717
    %v4726 = vadd.f32 %v4678, %v4718
    %v4727 = vadd.f32 %v4679, %v4719
    %4728 = vset.pattern.permute.xlu0 15
    %4729 = vperm.xlu0 %4728, %v3987
    %v4730 = vpop.permute.xlu0 %4729
    %4732 = vset.pattern.permute.xlu0 15
    %4733 = vperm.xlu0 %4732, %v3991
    %v4734 = vpop.permute.xlu0 %4733
    %4736 = vset.pattern.permute.xlu0 15
    %4737 = vperm.xlu0 %4736, %v3995
    %v4738 = vpop.permute.xlu0 %4737
    %4740 = vset.pattern.permute.xlu0 15
    %4741 = vperm.xlu0 %4740, %v3999
    %v4742 = vpop.permute.xlu0 %4741
    %4744 = vset.pattern.permute.xlu0 15
    %4745 = vperm.xlu0 %4744, %v4003
    %v4746 = vpop.permute.xlu0 %4745
    %4748 = vset.pattern.permute.xlu0 15
    %4749 = vperm.xlu0 %4748, %v4007
    %v4750 = vpop.permute.xlu0 %4749
    %4752 = vset.pattern.permute.xlu0 15
    %4753 = vperm.xlu0 %4752, %v4011
    %v4754 = vpop.permute.xlu0 %4753
    %4756 = vset.pattern.permute.xlu0 15
    %4757 = vperm.xlu0 %4756, %v4015
    %v4758 = vpop.permute.xlu0 %4757
    %v4760 = vmul.f32 %v4730, %v3933
    %v4761 = vmul.f32 %v4734, %v3933
    %v4762 = vmul.f32 %v4738, %v3933
    %v4763 = vmul.f32 %v4742, %v3933
    %v4764 = vmul.f32 %v4746, %v3933
    %v4765 = vmul.f32 %v4750, %v3933
    %v4766 = vmul.f32 %v4754, %v3933
    %v4767 = vmul.f32 %v4758, %v3933
    %v4768 = vadd.f32 %v4720, %v4760
    %v4769 = vadd.f32 %v4721, %v4761
    %v4770 = vadd.f32 %v4722, %v4762
    %v4771 = vadd.f32 %v4723, %v4763
    %v4772 = vadd.f32 %v4724, %v4764
    %v4773 = vadd.f32 %v4725, %v4765
    %v4774 = vadd.f32 %v4726, %v4766
    %v4775 = vadd.f32 %v4727, %v4767
    %v4776 = vld [vmem:[%s15] sm:$0x1]
    %v4777 = vld [vmem:[%s15 + $0x1] sm:$0x1]
    %v4778 = vld [vmem:[%s15 + $0x2] sm:$0x1]
    %v4779 = vld [vmem:[%s15 + $0x3] sm:$0x1]
    %v4780 = vld [vmem:[%s15 + $0x4] sm:$0x1]
    %v4781 = vld [vmem:[%s15 + $0x5] sm:$0x1]
    %v4782 = vld [vmem:[%s15 + $0x6] sm:$0x1]
    %v4783 = vld [vmem:[%s15 + $0x7] sm:$0x1]
    %v4792 = vlaneseq
    %v4793 = vshrl.u32 %v4792, 7
    %v4794 = vsub.s32 0, %v4793
    %v4795 = vrot.slane %v4776, %v4794
    %v4796 = vlaneseq
    %v4797 = vshrl.u32 %v4796, 7
    %v4798 = vsub.s32 0, %v4797
    %v4799 = vrot.slane %v4777, %v4798
    %v4800 = vlaneseq
    %v4801 = vshrl.u32 %v4800, 7
    %v4802 = vsub.s32 0, %v4801
    %v4803 = vrot.slane %v4778, %v4802
    %v4804 = vlaneseq
    %v4805 = vshrl.u32 %v4804, 7
    %v4806 = vsub.s32 0, %v4805
    %v4807 = vrot.slane %v4779, %v4806
    %v4808 = vlaneseq
    %v4809 = vshrl.u32 %v4808, 7
    %v4810 = vsub.s32 0, %v4809
    %v4811 = vrot.slane %v4780, %v4810
    %v4812 = vlaneseq
    %v4813 = vshrl.u32 %v4812, 7
    %v4814 = vsub.s32 0, %v4813
    %v4815 = vrot.slane %v4781, %v4814
    %v4816 = vlaneseq
    %v4817 = vshrl.u32 %v4816, 7
    %v4818 = vsub.s32 0, %v4817
    %v4819 = vrot.slane %v4782, %v4818
    %v4820 = vlaneseq
    %v4821 = vshrl.u32 %v4820, 7
    %v4822 = vsub.s32 0, %v4821
    %v4823 = vrot.slane %v4783, %v4822
    %4824 = vset.pattern.permute.xlu0 0
    %4825 = vperm.xlu0 %4824, %v4795
    %v4826 = vpop.permute.xlu0 %4825
    %4828 = vset.pattern.permute.xlu0 0
    %4829 = vperm.xlu0 %4828, %v4799
    %v4830 = vpop.permute.xlu0 %4829
    %4832 = vset.pattern.permute.xlu0 0
    %4833 = vperm.xlu0 %4832, %v4803
    %v4834 = vpop.permute.xlu0 %4833
    %4836 = vset.pattern.permute.xlu0 0
    %4837 = vperm.xlu0 %4836, %v4807
    %v4838 = vpop.permute.xlu0 %4837
    %4840 = vset.pattern.permute.xlu0 0
    %4841 = vperm.xlu0 %4840, %v4811
    %v4842 = vpop.permute.xlu0 %4841
    %4844 = vset.pattern.permute.xlu0 0
    %4845 = vperm.xlu0 %4844, %v4815
    %v4846 = vpop.permute.xlu0 %4845
    %4848 = vset.pattern.permute.xlu0 0
    %4849 = vperm.xlu0 %4848, %v4819
    %v4850 = vpop.permute.xlu0 %4849
    %4852 = vset.pattern.permute.xlu0 0
    %4853 = vperm.xlu0 %4852, %v4823
    %v4854 = vpop.permute.xlu0 %4853
    %v4856 = vadd.f32 %v4768, %v4826
    %v4857 = vadd.f32 %v4769, %v4830
    %v4858 = vadd.f32 %v4770, %v4834
    %v4859 = vadd.f32 %v4771, %v4838
    %v4860 = vadd.f32 %v4772, %v4842
    %v4861 = vadd.f32 %v4773, %v4846
    %v4862 = vadd.f32 %v4774, %v4850
    %v4863 = vadd.f32 %v4775, %v4854
    %4864 = vset.pattern.permute.xlu0 8
    %4865 = vperm.xlu0 %4864, %v72
    %v4866 = vpop.permute.xlu0 %4865
    %v4868 = vmul.f32 %v4856, %v4866
    %v4869 = vmul.f32 %v4857, %v4866
    %v4870 = vmul.f32 %v4858, %v4866
    %v4871 = vmul.f32 %v4859, %v4866
    %v4872 = vmul.f32 %v4860, %v4866
    %v4873 = vmul.f32 %v4861, %v4866
    %v4874 = vmul.f32 %v4862, %v4866
    %v4875 = vmul.f32 %v4863, %v4866
    %4876 = vset.pattern.permute.xlu0 9
    %4877 = vperm.xlu0 %4876, %v72
    %v4878 = vpop.permute.xlu0 %4877
    %v4880 = vadd.f32 %v4868, %v4878
    %v4881 = vadd.f32 %v4869, %v4878
    %v4882 = vadd.f32 %v4870, %v4878
    %v4883 = vadd.f32 %v4871, %v4878
    %v4884 = vadd.f32 %v4872, %v4878
    %v4885 = vadd.f32 %v4873, %v4878
    %v4886 = vadd.f32 %v4874, %v4878
    %v4887 = vadd.f32 %v4875, %v4878
    %v4888 = vld [vmem:[%s16] sm:$0xff]
    %v4889 = vld [vmem:[%s16 + $0x8] sm:$0xff]
    %v4890 = vld [vmem:[%s16 + $0x10] sm:$0xff]
    %v4891 = vld [vmem:[%s16 + $0x18] sm:$0xff]
    %v4892 = vld [vmem:[%s17] sm:$0x1]
    %v4894 = vlaneseq
    %v4895 = vshrl.u32 %v4894, 7
    %v4896 = vsub.s32 0, %v4895
    %v4897 = vrot.slane %v4892, %v4896
    %v4900 = vsel %vm2412, %v4880, 0
    %v4903 = vsel %vm2412, %v4881, 0
    %v4906 = vsel %vm2412, %v4882, 0
    %v4909 = vsel %vm2412, %v4883, 0
    %v4912 = vsel %vm2412, %v4884, 0
    %v4915 = vsel %vm2412, %v4885, 0
    %v4918 = vsel %vm2412, %v4886, 0
    %v4921 = vsel %vm2412, %v4887, 0
    %4923 = vmatprep.subr.mxu0 0.0
    %4924 = vmatpush1.msra.mxu0 %v4888
    %4925 = vmatprep.subr.mxu0 0.0
    %4926 = vmatpush1.msra.mxu0 %v4889
    %4927 = vmatprep.subr.mxu0 0.0
    %4928 = vmatpush1.msra.mxu0 %v4890
    %4929 = vmatprep.subr.mxu0 0.0
    %4930 = vmatpush1.msra.mxu0 %v4891
    %4931 = vmatprep.subr.mxu0 0.0
    %4932 = vmatpush1.msra.mxu0 0.0
    %4933 = vmatprep.subr.mxu0 0.0
    %4934 = vmatpush1.msra.mxu0 0.0
    %4935 = vmatprep.subr.mxu0 0.0
    %4936 = vmatpush1.msra.mxu0 0.0
    %4937 = vmatprep.subr.mxu0 0.0
    %4938 = vmatpush1.msra.mxu0 0.0
    %4939 = vmatprep.subr.mxu0 0.0
    %4940 = vmatpush1.msra.mxu0 0.0
    %4941 = vmatprep.subr.mxu0 0.0
    %4942 = vmatpush1.msra.mxu0 0.0
    %4943 = vmatprep.subr.mxu0 0.0
    %4944 = vmatpush1.msra.mxu0 0.0
    %4945 = vmatprep.subr.mxu0 0.0
    %4946 = vmatpush1.msra.mxu0 0.0
    %4947 = vmatprep.subr.mxu0 0.0
    %4948 = vmatpush1.msra.mxu0 0.0
    %4949 = vmatprep.subr.mxu0 0.0
    %4950 = vmatpush1.msra.mxu0 0.0
    %4951 = vmatprep.subr.mxu0 0.0
    %4952 = vmatpush1.msra.mxu0 0.0
    %4953 = vmatprep.subr.mxu0 0.0
    %4954 = vmatpush1.msra.mxu0 0.0
    %4955 = vmatprep.subr.mxu0 0.0
    %4956 = vmatpush1.msra.mxu0 0.0
    %4957 = vmatprep.subr.mxu0 0.0
    %4958 = vmatpush1.msra.mxu0 0.0
    %4959 = vmatprep.subr.mxu0 0.0
    %4960 = vmatpush1.msra.mxu0 0.0
    %4961 = vmatprep.subr.mxu0 0.0
    %4962 = vmatpush1.msra.mxu0 0.0
    %4963 = vmatprep.subr.mxu0 0.0
    %4964 = vmatpush1.msra.mxu0 0.0
    %4965 = vmatprep.subr.mxu0 0.0
    %4966 = vmatpush1.msra.mxu0 0.0
    %4967 = vmatprep.subr.mxu0 0.0
    %4968 = vmatpush1.msra.mxu0 0.0
    %4969 = vmatprep.subr.mxu0 0.0
    %4970 = vmatpush1.msra.mxu0 0.0
    %4971 = vmatprep.subr.mxu0 0.0
    %4972 = vmatpush1.msra.mxu0 0.0
    %4973 = vmatprep.subr.mxu0 0.0
    %4974 = vmatpush1.msra.mxu0 0.0
    %4975 = vmatprep.subr.mxu0 0.0
    %4976 = vmatpush1.msra.mxu0 0.0
    %4977 = vmatprep.subr.mxu0 0.0
    %4978 = vmatpush1.msra.mxu0 0.0
    %4979 = vmatprep.subr.mxu0 0.0
    %4980 = vmatpush1.msra.mxu0 0.0
    %4981 = vmatprep.subr.mxu0 0.0
    %4982 = vmatpush1.msra.mxu0 0.0
    %4983 = vmatprep.subr.mxu0 0.0
    %4984 = vmatpush1.msra.mxu0 0.0
    %4985 = vmatprep.subr.mxu0 0.0
    %4986 = vmatpush1.msra.mxu0 0.0
    %4987 = vmatprep.mubr.f32.mxu0 0.0
    %4988 = vmatmul.mubr.f32.gmra.mrb[0].mxu0 %v4900
    %v4989 = vpop.f32.mrb[0].mxu0
    %v4990 = vadd.f32 %v4897, %v4989
    %v4991 = vpop.f32.mrb[0].mxu0
    %4992 = vmatprep.mubr.f32.mxu0 0.0
    %4993 = vmatmul.mubr.f32.gmra.mrb[0].mxu0 %v4903
    %v4994 = vpop.f32.mrb[0].mxu0
    %v4995 = vadd.f32 %v4897, %v4994
    %v4996 = vpop.f32.mrb[0].mxu0
    %4997 = vmatprep.mubr.f32.mxu0 0.0
    %4998 = vmatmul.mubr.f32.gmra.mrb[0].mxu0 %v4906
    %v4999 = vpop.f32.mrb[0].mxu0
    %v5000 = vadd.f32 %v4897, %v4999
    %v5001 = vpop.f32.mrb[0].mxu0
    %5002 = vmatprep.mubr.f32.mxu0 0.0
    %5003 = vmatmul.mubr.f32.gmra.mrb[0].mxu0 %v4909
    %v5004 = vpop.f32.mrb[0].mxu0
    %v5005 = vadd.f32 %v4897, %v5004
    %v5006 = vpop.f32.mrb[0].mxu0
    %5007 = vmatprep.mubr.f32.mxu0 0.0
    %5008 = vmatmul.mubr.f32.gmra.mrb[0].mxu0 %v4912
    %v5009 = vpop.f32.mrb[0].mxu0
    %v5010 = vadd.f32 %v4897, %v5009
    %v5011 = vpop.f32.mrb[0].mxu0
    %5012 = vmatprep.mubr.f32.mxu0 0.0
    %5013 = vmatmul.mubr.f32.gmra.mrb[0].mxu0 %v4915
    %v5014 = vpop.f32.mrb[0].mxu0
    %v5015 = vadd.f32 %v4897, %v5014
    %v5016 = vpop.f32.mrb[0].mxu0
    %5017 = vmatprep.mubr.f32.mxu0 0.0
    %5018 = vmatmul.mubr.f32.gmra.mrb[0].mxu0 %v4918
    %v5019 = vpop.f32.mrb[0].mxu0
    %v5020 = vadd.f32 %v4897, %v5019
    %v5021 = vpop.f32.mrb[0].mxu0
    %5022 = vmatprep.mubr.f32.mxu0 0.0
    %5023 = vmatmul.mubr.f32.gmra.mrb[0].mxu0 %v4921
    %v5024 = vpop.f32.mrb[0].mxu0
    %v5025 = vadd.f32 %v4897, %v5024
    %v5026 = vpop.f32.mrb[0].mxu0
    %5027 = vdwg.mxu0
    %v5028 = vmul.f32 %v4990, 0.5
    %v5029 = vmul.f32 %v4995, 0.5
    %v5030 = vmul.f32 %v5000, 0.5
    %v5031 = vmul.f32 %v5005, 0.5
    %v5032 = vmul.f32 %v5010, 0.5
    %v5033 = vmul.f32 %v5015, 0.5
    %v5034 = vmul.f32 %v5020, 0.5
    %v5035 = vmul.f32 %v5025, 0.5
    %v5036 = vmul.f32 %v4990, 0.70710677
    %v5037 = vmul.f32 %v4995, 0.70710677
    %v5038 = vmul.f32 %v5000, 0.70710677
    %v5039 = vmul.f32 %v5005, 0.70710677
    %v5040 = vmul.f32 %v5010, 0.70710677
    %v5041 = vmul.f32 %v5015, 0.70710677
    %v5042 = vmul.f32 %v5020, 0.70710677
    %v5043 = vmul.f32 %v5025, 0.70710677
    %v5044 = verf.f32.pop %v5036
    %v5045 = verf.f32.pop %v5037
    %v5046 = verf.f32.pop %v5038
    %v5047 = verf.f32.pop %v5039
    %v5048 = verf.f32.pop %v5040
    %v5049 = verf.f32.pop %v5041
    %v5050 = verf.f32.pop %v5042
    %v5051 = verf.f32.pop %v5043
    %v5052 = vadd.f32 %v5044, 1.0
    %v5053 = vadd.f32 %v5045, 1.0
    %v5054 = vadd.f32 %v5046, 1.0
    %v5055 = vadd.f32 %v5047, 1.0
    %v5056 = vadd.f32 %v5048, 1.0
    %v5057 = vadd.f32 %v5049, 1.0
    %v5058 = vadd.f32 %v5050, 1.0
    %v5059 = vadd.f32 %v5051, 1.0
    %v5060 = vmul.f32 %v5028, %v5052
    %v5061 = vmul.f32 %v5029, %v5053
    %v5062 = vmul.f32 %v5030, %v5054
    %v5063 = vmul.f32 %v5031, %v5055
    %v5064 = vmul.f32 %v5032, %v5056
    %v5065 = vmul.f32 %v5033, %v5057
    %v5066 = vmul.f32 %v5034, %v5058
    %v5067 = vmul.f32 %v5035, %v5059
    %v5068 = vld [vmem:[%s18] sm:$0xff]
    %v5069 = vld [vmem:[%s18 + $0x8] sm:$0xff]
    %v5070 = vld [vmem:[%s18 + $0x10] sm:$0xff]
    %v5071 = vld [vmem:[%s18 + $0x18] sm:$0xff]
    %v5072 = vld [vmem:[%s18 + $0x20] sm:$0xff]
    %v5073 = vld [vmem:[%s18 + $0x28] sm:$0xff]
    %v5074 = vld [vmem:[%s18 + $0x30] sm:$0xff]
    %v5075 = vld [vmem:[%s18 + $0x38] sm:$0xff]
    %v5076 = vld [vmem:[%s19] sm:$0x1]
    %v5078 = vlaneseq
    %v5079 = vshrl.u32 %v5078, 7
    %v5080 = vsub.s32 0, %v5079
    %v5081 = vrot.slane %v5076, %v5080
    %v5084 = vsel %vm2597, %v5060, 0
    %v5087 = vsel %vm2597, %v5061, 0
    %v5090 = vsel %vm2597, %v5062, 0
    %v5093 = vsel %vm2597, %v5063, 0
    %v5096 = vsel %vm2597, %v5064, 0
    %v5099 = vsel %vm2597, %v5065, 0
    %v5102 = vsel %vm2597, %v5066, 0
    %v5105 = vsel %vm2597, %v5067, 0
    %5107 = vmatprep.subr.mxu0 0.0
    %5108 = vmatpush1.msra.mxu0 %v5068
    %5109 = vmatprep.subr.mxu0 0.0
    %5110 = vmatpush1.msra.mxu0 %v5069
    %5111 = vmatprep.subr.mxu0 0.0
    %5112 = vmatpush1.msra.mxu0 %v5070
    %5113 = vmatprep.subr.mxu0 0.0
    %5114 = vmatpush1.msra.mxu0 %v5071
    %5115 = vmatprep.subr.mxu0 0.0
    %5116 = vmatpush1.msra.mxu0 %v5072
    %5117 = vmatprep.subr.mxu0 0.0
    %5118 = vmatpush1.msra.mxu0 %v5073
    %5119 = vmatprep.subr.mxu0 0.0
    %5120 = vmatpush1.msra.mxu0 %v5074
    %5121 = vmatprep.subr.mxu0 0.0
    %5122 = vmatpush1.msra.mxu0 %v5075
    %5123 = vmatprep.subr.mxu0 0.0
    %5124 = vmatpush1.msra.mxu0 0.0
    %5125 = vmatprep.subr.mxu0 0.0
    %5126 = vmatpush1.msra.mxu0 0.0
    %5127 = vmatprep.subr.mxu0 0.0
    %5128 = vmatpush1.msra.mxu0 0.0
    %5129 = vmatprep.subr.mxu0 0.0
    %5130 = vmatpush1.msra.mxu0 0.0
    %5131 = vmatprep.subr.mxu0 0.0
    %5132 = vmatpush1.msra.mxu0 0.0
    %5133 = vmatprep.subr.mxu0 0.0
    %5134 = vmatpush1.msra.mxu0 0.0
    %5135 = vmatprep.subr.mxu0 0.0
    %5136 = vmatpush1.msra.mxu0 0.0
    %5137 = vmatprep.subr.mxu0 0.0
    %5138 = vmatpush1.msra.mxu0 0.0
    %5139 = vmatprep.subr.mxu0 0.0
    %5140 = vmatpush1.msra.mxu0 0.0
    %5141 = vmatprep.subr.mxu0 0.0
    %5142 = vmatpush1.msra.mxu0 0.0
    %5143 = vmatprep.subr.mxu0 0.0
    %5144 = vmatpush1.msra.mxu0 0.0
    %5145 = vmatprep.subr.mxu0 0.0
    %5146 = vmatpush1.msra.mxu0 0.0
    %5147 = vmatprep.subr.mxu0 0.0
    %5148 = vmatpush1.msra.mxu0 0.0
    %5149 = vmatprep.subr.mxu0 0.0
    %5150 = vmatpush1.msra.mxu0 0.0
    %5151 = vmatprep.subr.mxu0 0.0
    %5152 = vmatpush1.msra.mxu0 0.0
    %5153 = vmatprep.subr.mxu0 0.0
    %5154 = vmatpush1.msra.mxu0 0.0
    %5155 = vmatprep.subr.mxu0 0.0
    %5156 = vmatpush1.msra.mxu0 0.0
    %5157 = vmatprep.subr.mxu0 0.0
    %5158 = vmatpush1.msra.mxu0 0.0
    %5159 = vmatprep.subr.mxu0 0.0
    %5160 = vmatpush1.msra.mxu0 0.0
    %5161 = vmatprep.subr.mxu0 0.0
    %5162 = vmatpush1.msra.mxu0 0.0
    %5163 = vmatprep.subr.mxu0 0.0
    %5164 = vmatpush1.msra.mxu0 0.0
    %5165 = vmatprep.subr.mxu0 0.0
    %5166 = vmatpush1.msra.mxu0 0.0
    %5167 = vmatprep.subr.mxu0 0.0
    %5168 = vmatpush1.msra.mxu0 0.0
    %5169 = vmatprep.subr.mxu0 0.0
    %5170 = vmatpush1.msra.mxu0 0.0
    %5171 = vmatprep.mubr.f32.mxu0 0.0
    %5172 = vmatmul.mubr.f32.gmra.mrb[0].mxu0 %v5084
    %v5173 = vpop.f32.mrb[0].mxu0
    %v5174 = vadd.f32 %v5081, %v5173
    %v5175 = vpop.f32.mrb[0].mxu0
    %5176 = vmatprep.mubr.f32.mxu0 0.0
    %5177 = vmatmul.mubr.f32.gmra.mrb[0].mxu0 %v5087
    %v5178 = vpop.f32.mrb[0].mxu0
    %v5179 = vadd.f32 %v5081, %v5178
    %v5180 = vpop.f32.mrb[0].mxu0
    %5181 = vmatprep.mubr.f32.mxu0 0.0
    %5182 = vmatmul.mubr.f32.gmra.mrb[0].mxu0 %v5090
    %v5183 = vpop.f32.mrb[0].mxu0
    %v5184 = vadd.f32 %v5081, %v5183
    %v5185 = vpop.f32.mrb[0].mxu0
    %5186 = vmatprep.mubr.f32.mxu0 0.0
    %5187 = vmatmul.mubr.f32.gmra.mrb[0].mxu0 %v5093
    %v5188 = vpop.f32.mrb[0].mxu0
    %v5189 = vadd.f32 %v5081, %v5188
    %v5190 = vpop.f32.mrb[0].mxu0
    %5191 = vmatprep.mubr.f32.mxu0 0.0
    %5192 = vmatmul.mubr.f32.gmra.mrb[0].mxu0 %v5096
    %v5193 = vpop.f32.mrb[0].mxu0
    %v5194 = vadd.f32 %v5081, %v5193
    %v5195 = vpop.f32.mrb[0].mxu0
    %5196 = vmatprep.mubr.f32.mxu0 0.0
    %5197 = vmatmul.mubr.f32.gmra.mrb[0].mxu0 %v5099
    %v5198 = vpop.f32.mrb[0].mxu0
    %v5199 = vadd.f32 %v5081, %v5198
    %v5200 = vpop.f32.mrb[0].mxu0
    %5201 = vmatprep.mubr.f32.mxu0 0.0
    %5202 = vmatmul.mubr.f32.gmra.mrb[0].mxu0 %v5102
    %v5203 = vpop.f32.mrb[0].mxu0
    %v5204 = vadd.f32 %v5081, %v5203
    %v5205 = vpop.f32.mrb[0].mxu0
    %5206 = vmatprep.mubr.f32.mxu0 0.0
    %5207 = vmatmul.mubr.f32.gmra.mrb[0].mxu0 %v5105
    %v5208 = vpop.f32.mrb[0].mxu0
    %v5209 = vadd.f32 %v5081, %v5208
    %v5210 = vpop.f32.mrb[0].mxu0
    %5211 = vdwg.mxu0
    %v5212 = vadd.f32 %v4880, %v5174
    %v5213 = vadd.f32 %v4881, %v5179
    %v5214 = vadd.f32 %v4882, %v5184
    %v5215 = vadd.f32 %v4883, %v5189
    %v5216 = vadd.f32 %v4884, %v5194
    %v5217 = vadd.f32 %v4885, %v5199
    %v5218 = vadd.f32 %v4886, %v5204
    %v5219 = vadd.f32 %v4887, %v5209
    %v5220 = vadd.f32 %v2727, %v5212
    %v5221 = vadd.f32 %v2728, %v5213
    %v5222 = vadd.f32 %v2729, %v5214
    %v5223 = vadd.f32 %v2730, %v5215
    %v5224 = vadd.f32 %v2731, %v5216
    %v5225 = vadd.f32 %v2732, %v5217
    %v5226 = vadd.f32 %v2733, %v5218
    %v5227 = vadd.f32 %v2734, %v5219
    %5228 = vset.pattern.permute.xlu0 10
    %5229 = vperm.xlu0 %5228, %v72
    %v5230 = vpop.permute.xlu0 %5229
    %v5232 = vmul.f32 %v5220, %v5230
    %v5233 = vmul.f32 %v5221, %v5230
    %v5234 = vmul.f32 %v5222, %v5230
    %v5235 = vmul.f32 %v5223, %v5230
    %v5236 = vmul.f32 %v5224, %v5230
    %v5237 = vmul.f32 %v5225, %v5230
    %v5238 = vmul.f32 %v5226, %v5230
    %v5239 = vmul.f32 %v5227, %v5230
    %5240 = vset.pattern.permute.xlu0 11
    %5241 = vperm.xlu0 %5240, %v72
    %v5242 = vpop.permute.xlu0 %5241
    %v5244 = vadd.f32 %v5232, %v5242
    %v5245 = vadd.f32 %v5233, %v5242
    %v5246 = vadd.f32 %v5234, %v5242
    %v5247 = vadd.f32 %v5235, %v5242
    %v5248 = vadd.f32 %v5236, %v5242
    %v5249 = vadd.f32 %v5237, %v5242
    %v5250 = vadd.f32 %v5238, %v5242
    %v5251 = vadd.f32 %v5239, %v5242
    %v5252 = vld [vmem:[%s20] sm:$0xff]
    %v5253 = vld [vmem:[%s20 + $0x8] sm:$0xff]
    %v5254 = vld [vmem:[%s20 + $0x10] sm:$0xff]
    %v5255 = vld [vmem:[%s20 + $0x18] sm:$0xff]
    %v5256 = vld [vmem:[%s20 + $0x20] sm:$0xff]
    %v5257 = vld [vmem:[%s20 + $0x28] sm:$0xff]
    %v5258 = vld [vmem:[%s20 + $0x30] sm:$0xff]
    %v5259 = vld [vmem:[%s20 + $0x38] sm:$0xff]
    %v5260 = vld [vmem:[%s20 + $0x40] sm:$0xff]
    %v5261 = vld [vmem:[%s20 + $0x48] sm:$0xff]
    %v5262 = vld [vmem:[%s20 + $0x50] sm:$0xff]
    %v5263 = vld [vmem:[%s20 + $0x58] sm:$0xff]
    %v5264 = vld [vmem:[%s20 + $0x60] sm:$0xff]
    %v5265 = vld [vmem:[%s20 + $0x68] sm:$0xff]
    %v5266 = vld [vmem:[%s20 + $0x70] sm:$0xff]
    %v5267 = vld [vmem:[%s20 + $0x78] sm:$0xff]
    %v5268 = vld [vmem:[%s20 + $0x80] sm:$0xff]
    %v5269 = vld [vmem:[%s20 + $0x88] sm:$0xff]
    %v5270 = vld [vmem:[%s20 + $0x90] sm:$0xff]
    %v5271 = vld [vmem:[%s20 + $0x98] sm:$0xff]
    %v5272 = vld [vmem:[%s20 + $0xa0] sm:$0xff]
    %v5273 = vld [vmem:[%s20 + $0xa8] sm:$0xff]
    %v5274 = vld [vmem:[%s20 + $0xb0] sm:$0xff]
    %v5275 = vld [vmem:[%s20 + $0xb8] sm:$0xff]
    %v5276 = vld [vmem:[%s20 + $0xc0] sm:$0xff]
    %v5277 = vld [vmem:[%s20 + $0xc8] sm:$0xff]
    %v5278 = vld [vmem:[%s20 + $0xd0] sm:$0xff]
    %v5279 = vld [vmem:[%s20 + $0xd8] sm:$0xff]
    %v5280 = vld [vmem:[%s20 + $0xe0] sm:$0xff]
    %v5281 = vld [vmem:[%s20 + $0xe8] sm:$0xff]
    %v5282 = vld [vmem:[%s20 + $0xf0] sm:$0xff]
    %v5283 = vld [vmem:[%s20 + $0xf8] sm:$0xff]
    %v5285 = vsel %vm2412, %v5245, 0
    %5287 = vmatprep.subr.mxu0 0.0
    %5288 = vmatpush1.msra.mxu0 %v5256
    %5289 = vmatprep.subr.mxu0 0.0
    %5290 = vmatpush1.msra.mxu0 %v5257
    %5291 = vmatprep.subr.mxu0 0.0
    %5292 = vmatpush1.msra.mxu0 %v5258
    %5293 = vmatprep.subr.mxu0 0.0
    %5294 = vmatpush1.msra.mxu0 %v5259
    %5295 = vmatprep.subr.mxu0 0.0
    %5296 = vmatpush1.msra.mxu0 0.0
    %5297 = vmatprep.subr.mxu0 0.0
    %5298 = vmatpush1.msra.mxu0 0.0
    %5299 = vmatprep.subr.mxu0 0.0
    %5300 = vmatpush1.msra.mxu0 0.0
    %5301 = vmatprep.subr.mxu0 0.0
    %5302 = vmatpush1.msra.mxu0 0.0
    %5303 = vmatprep.subr.mxu0 0.0
    %5304 = vmatpush1.msra.mxu0 0.0
    %5305 = vmatprep.subr.mxu0 0.0
    %5306 = vmatpush1.msra.mxu0 0.0
    %5307 = vmatprep.subr.mxu0 0.0
    %5308 = vmatpush1.msra.mxu0 0.0
    %5309 = vmatprep.subr.mxu0 0.0
    %5310 = vmatpush1.msra.mxu0 0.0
    %5311 = vmatprep.subr.mxu0 0.0
    %5312 = vmatpush1.msra.mxu0 0.0
    %5313 = vmatprep.subr.mxu0 0.0
    %5314 = vmatpush1.msra.mxu0 0.0
    %5315 = vmatprep.subr.mxu0 0.0
    %5316 = vmatpush1.msra.mxu0 0.0
    %5317 = vmatprep.subr.mxu0 0.0
    %5318 = vmatpush1.msra.mxu0 0.0
    %5319 = vmatprep.subr.mxu0 0.0
    %5320 = vmatpush1.msra.mxu0 0.0
    %5321 = vmatprep.subr.mxu0 0.0
    %5322 = vmatpush1.msra.mxu0 0.0
    %5323 = vmatprep.subr.mxu0 0.0
    %5324 = vmatpush1.msra.mxu0 0.0
    %5325 = vmatprep.subr.mxu0 0.0
    %5326 = vmatpush1.msra.mxu0 0.0
    %5327 = vmatprep.subr.mxu0 0.0
    %5328 = vmatpush1.msra.mxu0 0.0
    %5329 = vmatprep.subr.mxu0 0.0
    %5330 = vmatpush1.msra.mxu0 0.0
    %5331 = vmatprep.subr.mxu0 0.0
    %5332 = vmatpush1.msra.mxu0 0.0
    %5333 = vmatprep.subr.mxu0 0.0
    %5334 = vmatpush1.msra.mxu0 0.0
    %5335 = vmatprep.subr.mxu0 0.0
    %5336 = vmatpush1.msra.mxu0 0.0
    %5337 = vmatprep.subr.mxu0 0.0
    %5338 = vmatpush1.msra.mxu0 0.0
    %5339 = vmatprep.subr.mxu0 0.0
    %5340 = vmatpush1.msra.mxu0 0.0
    %5341 = vmatprep.subr.mxu0 0.0
    %5342 = vmatpush1.msra.mxu0 0.0
    %5343 = vmatprep.subr.mxu0 0.0
    %5344 = vmatpush1.msra.mxu0 0.0
    %5345 = vmatprep.subr.mxu0 0.0
    %5346 = vmatpush1.msra.mxu0 0.0
    %5347 = vmatprep.subr.mxu0 0.0
    %5348 = vmatpush1.msra.mxu0 0.0
    %5349 = vmatprep.subr.mxu0 0.0
    %5350 = vmatpush1.msra.mxu0 0.0
    %5351 = vmatprep.mubr.f32.mxu0 0.0
    %5352 = vmatmul.mubr.f32.gmra.mrb[0].mxu0 %v5285
    %v5353 = vpop.f32.mrb[0].mxu0
    %v5354 = vadd.f32 0.0, %v5353
    %v5355 = vpop.f32.mrb[0].mxu0
    %5356 = vdwg.mxu0
    %v5358 = vsel %vm2412, %v5247, 0
    %5360 = vmatprep.subr.mxu0 0.0
    %5361 = vmatpush1.msra.mxu0 %v5264
    %5362 = vmatprep.subr.mxu0 0.0
    %5363 = vmatpush1.msra.mxu0 %v5265
    %5364 = vmatprep.subr.mxu0 0.0
    %5365 = vmatpush1.msra.mxu0 %v5266
    %5366 = vmatprep.subr.mxu0 0.0
    %5367 = vmatpush1.msra.mxu0 %v5267
    %5368 = vmatprep.subr.mxu0 0.0
    %5369 = vmatpush1.msra.mxu0 0.0
    %5370 = vmatprep.subr.mxu0 0.0
    %5371 = vmatpush1.msra.mxu0 0.0
    %5372 = vmatprep.subr.mxu0 0.0
    %5373 = vmatpush1.msra.mxu0 0.0
    %5374 = vmatprep.subr.mxu0 0.0
    %5375 = vmatpush1.msra.mxu0 0.0
    %5376 = vmatprep.subr.mxu0 0.0
    %5377 = vmatpush1.msra.mxu0 0.0
    %5378 = vmatprep.subr.mxu0 0.0
    %5379 = vmatpush1.msra.mxu0 0.0
    %5380 = vmatprep.subr.mxu0 0.0
    %5381 = vmatpush1.msra.mxu0 0.0
    %5382 = vmatprep.subr.mxu0 0.0
    %5383 = vmatpush1.msra.mxu0 0.0
    %5384 = vmatprep.subr.mxu0 0.0
    %5385 = vmatpush1.msra.mxu0 0.0
    %5386 = vmatprep.subr.mxu0 0.0
    %5387 = vmatpush1.msra.mxu0 0.0
    %5388 = vmatprep.subr.mxu0 0.0
    %5389 = vmatpush1.msra.mxu0 0.0
    %5390 = vmatprep.subr.mxu0 0.0
    %5391 = vmatpush1.msra.mxu0 0.0
    %5392 = vmatprep.subr.mxu0 0.0
    %5393 = vmatpush1.msra.mxu0 0.0
    %5394 = vmatprep.subr.mxu0 0.0
    %5395 = vmatpush1.msra.mxu0 0.0
    %5396 = vmatprep.subr.mxu0 0.0
    %5397 = vmatpush1.msra.mxu0 0.0
    %5398 = vmatprep.subr.mxu0 0.0
    %5399 = vmatpush1.msra.mxu0 0.0
    %5400 = vmatprep.subr.mxu0 0.0
    %5401 = vmatpush1.msra.mxu0 0.0
    %5402 = vmatprep.subr.mxu0 0.0
    %5403 = vmatpush1.msra.mxu0 0.0
    %5404 = vmatprep.subr.mxu0 0.0
    %5405 = vmatpush1.msra.mxu0 0.0
    %5406 = vmatprep.subr.mxu0 0.0
    %5407 = vmatpush1.msra.mxu0 0.0
    %5408 = vmatprep.subr.mxu0 0.0
    %5409 = vmatpush1.msra.mxu0 0.0
    %5410 = vmatprep.subr.mxu0 0.0
    %5411 = vmatpush1.msra.mxu0 0.0
    %5412 = vmatprep.subr.mxu0 0.0
    %5413 = vmatpush1.msra.mxu0 0.0
    %5414 = vmatprep.subr.mxu0 0.0
    %5415 = vmatpush1.msra.mxu0 0.0
    %5416 = vmatprep.subr.mxu0 0.0
    %5417 = vmatpush1.msra.mxu0 0.0
    %5418 = vmatprep.subr.mxu0 0.0
    %5419 = vmatpush1.msra.mxu0 0.0
    %5420 = vmatprep.subr.mxu0 0.0
    %5421 = vmatpush1.msra.mxu0 0.0
    %5422 = vmatprep.subr.mxu0 0.0
    %5423 = vmatpush1.msra.mxu0 0.0
    %5424 = vmatprep.mubr.f32.mxu0 0.0
    %5425 = vmatmul.mubr.f32.gmra.mrb[0].mxu0 %v5358
    %v5426 = vpop.f32.mrb[0].mxu0
    %v5427 = vadd.f32 0.0, %v5426
    %v5428 = vpop.f32.mrb[0].mxu0
    %5429 = vdwg.mxu0
    %v5431 = vsel %vm2412, %v5249, 0
    %5433 = vmatprep.subr.mxu0 0.0
    %5434 = vmatpush1.msra.mxu0 %v5272
    %5435 = vmatprep.subr.mxu0 0.0
    %5436 = vmatpush1.msra.mxu0 %v5273
    %5437 = vmatprep.subr.mxu0 0.0
    %5438 = vmatpush1.msra.mxu0 %v5274
    %5439 = vmatprep.subr.mxu0 0.0
    %5440 = vmatpush1.msra.mxu0 %v5275
    %5441 = vmatprep.subr.mxu0 0.0
    %5442 = vmatpush1.msra.mxu0 0.0
    %5443 = vmatprep.subr.mxu0 0.0
    %5444 = vmatpush1.msra.mxu0 0.0
    %5445 = vmatprep.subr.mxu0 0.0
    %5446 = vmatpush1.msra.mxu0 0.0
    %5447 = vmatprep.subr.mxu0 0.0
    %5448 = vmatpush1.msra.mxu0 0.0
    %5449 = vmatprep.subr.mxu0 0.0
    %5450 = vmatpush1.msra.mxu0 0.0
    %5451 = vmatprep.subr.mxu0 0.0
    %5452 = vmatpush1.msra.mxu0 0.0
    %5453 = vmatprep.subr.mxu0 0.0
    %5454 = vmatpush1.msra.mxu0 0.0
    %5455 = vmatprep.subr.mxu0 0.0
    %5456 = vmatpush1.msra.mxu0 0.0
    %5457 = vmatprep.subr.mxu0 0.0
    %5458 = vmatpush1.msra.mxu0 0.0
    %5459 = vmatprep.subr.mxu0 0.0
    %5460 = vmatpush1.msra.mxu0 0.0
    %5461 = vmatprep.subr.mxu0 0.0
    %5462 = vmatpush1.msra.mxu0 0.0
    %5463 = vmatprep.subr.mxu0 0.0
    %5464 = vmatpush1.msra.mxu0 0.0
    %5465 = vmatprep.subr.mxu0 0.0
    %5466 = vmatpush1.msra.mxu0 0.0
    %5467 = vmatprep.subr.mxu0 0.0
    %5468 = vmatpush1.msra.mxu0 0.0
    %5469 = vmatprep.subr.mxu0 0.0
    %5470 = vmatpush1.msra.mxu0 0.0
    %5471 = vmatprep.subr.mxu0 0.0
    %5472 = vmatpush1.msra.mxu0 0.0
    %5473 = vmatprep.subr.mxu0 0.0
    %5474 = vmatpush1.msra.mxu0 0.0
    %5475 = vmatprep.subr.mxu0 0.0
    %5476 = vmatpush1.msra.mxu0 0.0
    %5477 = vmatprep.subr.mxu0 0.0
    %5478 = vmatpush1.msra.mxu0 0.0
    %5479 = vmatprep.subr.mxu0 0.0
    %5480 = vmatpush1.msra.mxu0 0.0
    %5481 = vmatprep.subr.mxu0 0.0
    %5482 = vmatpush1.msra.mxu0 0.0
    %5483 = vmatprep.subr.mxu0 0.0
    %5484 = vmatpush1.msra.mxu0 0.0
    %5485 = vmatprep.subr.mxu0 0.0
    %5486 = vmatpush1.msra.mxu0 0.0
    %5487 = vmatprep.subr.mxu0 0.0
    %5488 = vmatpush1.msra.mxu0 0.0
    %5489 = vmatprep.subr.mxu0 0.0
    %5490 = vmatpush1.msra.mxu0 0.0
    %5491 = vmatprep.subr.mxu0 0.0
    %5492 = vmatpush1.msra.mxu0 0.0
    %5493 = vmatprep.subr.mxu0 0.0
    %5494 = vmatpush1.msra.mxu0 0.0
    %5495 = vmatprep.subr.mxu0 0.0
    %5496 = vmatpush1.msra.mxu0 0.0
    %5497 = vmatprep.mubr.f32.mxu0 0.0
    %5498 = vmatmul.mubr.f32.gmra.mrb[0].mxu0 %v5431
    %v5499 = vpop.f32.mrb[0].mxu0
    %v5500 = vadd.f32 0.0, %v5499
    %v5501 = vpop.f32.mrb[0].mxu0
    %5502 = vdwg.mxu0
    %v5504 = vsel %vm2412, %v5251, 0
    %5506 = vmatprep.subr.mxu0 0.0
    %5507 = vmatpush1.msra.mxu0 %v5280
    %5508 = vmatprep.subr.mxu0 0.0
    %5509 = vmatpush1.msra.mxu0 %v5281
    %5510 = vmatprep.subr.mxu0 0.0
    %5511 = vmatpush1.msra.mxu0 %v5282
    %5512 = vmatprep.subr.mxu0 0.0
    %5513 = vmatpush1.msra.mxu0 %v5283
    %5514 = vmatprep.subr.mxu0 0.0
    %5515 = vmatpush1.msra.mxu0 0.0
    %5516 = vmatprep.subr.mxu0 0.0
    %5517 = vmatpush1.msra.mxu0 0.0
    %5518 = vmatprep.subr.mxu0 0.0
    %5519 = vmatpush1.msra.mxu0 0.0
    %5520 = vmatprep.subr.mxu0 0.0
    %5521 = vmatpush1.msra.mxu0 0.0
    %5522 = vmatprep.subr.mxu0 0.0
    %5523 = vmatpush1.msra.mxu0 0.0
    %5524 = vmatprep.subr.mxu0 0.0
    %5525 = vmatpush1.msra.mxu0 0.0
    %5526 = vmatprep.subr.mxu0 0.0
    %5527 = vmatpush1.msra.mxu0 0.0
    %5528 = vmatprep.subr.mxu0 0.0
    %5529 = vmatpush1.msra.mxu0 0.0
    %5530 = vmatprep.subr.mxu0 0.0
    %5531 = vmatpush1.msra.mxu0 0.0
    %5532 = vmatprep.subr.mxu0 0.0
    %5533 = vmatpush1.msra.mxu0 0.0
    %5534 = vmatprep.subr.mxu0 0.0
    %5535 = vmatpush1.msra.mxu0 0.0
    %5536 = vmatprep.subr.mxu0 0.0
    %5537 = vmatpush1.msra.mxu0 0.0
    %5538 = vmatprep.subr.mxu0 0.0
    %5539 = vmatpush1.msra.mxu0 0.0
    %5540 = vmatprep.subr.mxu0 0.0
    %5541 = vmatpush1.msra.mxu0 0.0
    %5542 = vmatprep.subr.mxu0 0.0
    %5543 = vmatpush1.msra.mxu0 0.0
    %5544 = vmatprep.subr.mxu0 0.0
    %5545 = vmatpush1.msra.mxu0 0.0
    %5546 = vmatprep.subr.mxu0 0.0
    %5547 = vmatpush1.msra.mxu0 0.0
    %5548 = vmatprep.subr.mxu0 0.0
    %5549 = vmatpush1.msra.mxu0 0.0
    %5550 = vmatprep.subr.mxu0 0.0
    %5551 = vmatpush1.msra.mxu0 0.0
    %5552 = vmatprep.subr.mxu0 0.0
    %5553 = vmatpush1.msra.mxu0 0.0
    %5554 = vmatprep.subr.mxu0 0.0
    %5555 = vmatpush1.msra.mxu0 0.0
    %5556 = vmatprep.subr.mxu0 0.0
    %5557 = vmatpush1.msra.mxu0 0.0
    %5558 = vmatprep.subr.mxu0 0.0
    %5559 = vmatpush1.msra.mxu0 0.0
    %5560 = vmatprep.subr.mxu0 0.0
    %5561 = vmatpush1.msra.mxu0 0.0
    %5562 = vmatprep.subr.mxu0 0.0
    %5563 = vmatpush1.msra.mxu0 0.0
    %5564 = vmatprep.subr.mxu0 0.0
    %5565 = vmatpush1.msra.mxu0 0.0
    %5566 = vmatprep.subr.mxu0 0.0
    %5567 = vmatpush1.msra.mxu0 0.0
    %5568 = vmatprep.subr.mxu0 0.0
    %5569 = vmatpush1.msra.mxu0 0.0
    %5570 = vmatprep.mubr.f32.mxu0 0.0
    %5571 = vmatmul.mubr.f32.gmra.mrb[0].mxu0 %v5504
    %v5572 = vpop.f32.mrb[0].mxu0
    %v5573 = vadd.f32 0.0, %v5572
    %v5574 = vpop.f32.mrb[0].mxu0
    %5575 = vdwg.mxu0
    %v5577 = vsel %vm2412, %v5244, 0
    %5579 = vmatprep.subr.mxu0 0.0
    %5580 = vmatpush1.msra.mxu0 %v5252
    %5581 = vmatprep.subr.mxu0 0.0
    %5582 = vmatpush1.msra.mxu0 %v5253
    %5583 = vmatprep.subr.mxu0 0.0
    %5584 = vmatpush1.msra.mxu0 %v5254
    %5585 = vmatprep.subr.mxu0 0.0
    %5586 = vmatpush1.msra.mxu0 %v5255
    %5587 = vmatprep.subr.mxu0 0.0
    %5588 = vmatpush1.msra.mxu0 0.0
    %5589 = vmatprep.subr.mxu0 0.0
    %5590 = vmatpush1.msra.mxu0 0.0
    %5591 = vmatprep.subr.mxu0 0.0
    %5592 = vmatpush1.msra.mxu0 0.0
    %5593 = vmatprep.subr.mxu0 0.0
    %5594 = vmatpush1.msra.mxu0 0.0
    %5595 = vmatprep.subr.mxu0 0.0
    %5596 = vmatpush1.msra.mxu0 0.0
    %5597 = vmatprep.subr.mxu0 0.0
    %5598 = vmatpush1.msra.mxu0 0.0
    %5599 = vmatprep.subr.mxu0 0.0
    %5600 = vmatpush1.msra.mxu0 0.0
    %5601 = vmatprep.subr.mxu0 0.0
    %5602 = vmatpush1.msra.mxu0 0.0
    %5603 = vmatprep.subr.mxu0 0.0
    %5604 = vmatpush1.msra.mxu0 0.0
    %5605 = vmatprep.subr.mxu0 0.0
    %5606 = vmatpush1.msra.mxu0 0.0
    %5607 = vmatprep.subr.mxu0 0.0
    %5608 = vmatpush1.msra.mxu0 0.0
    %5609 = vmatprep.subr.mxu0 0.0
    %5610 = vmatpush1.msra.mxu0 0.0
    %5611 = vmatprep.subr.mxu0 0.0
    %5612 = vmatpush1.msra.mxu0 0.0
    %5613 = vmatprep.subr.mxu0 0.0
    %5614 = vmatpush1.msra.mxu0 0.0
    %5615 = vmatprep.subr.mxu0 0.0
    %5616 = vmatpush1.msra.mxu0 0.0
    %5617 = vmatprep.subr.mxu0 0.0
    %5618 = vmatpush1.msra.mxu0 0.0
    %5619 = vmatprep.subr.mxu0 0.0
    %5620 = vmatpush1.msra.mxu0 0.0
    %5621 = vmatprep.subr.mxu0 0.0
    %5622 = vmatpush1.msra.mxu0 0.0
    %5623 = vmatprep.subr.mxu0 0.0
    %5624 = vmatpush1.msra.mxu0 0.0
    %5625 = vmatprep.subr.mxu0 0.0
    %5626 = vmatpush1.msra.mxu0 0.0
    %5627 = vmatprep.subr.mxu0 0.0
    %5628 = vmatpush1.msra.mxu0 0.0
    %5629 = vmatprep.subr.mxu0 0.0
    %5630 = vmatpush1.msra.mxu0 0.0
    %5631 = vmatprep.subr.mxu0 0.0
    %5632 = vmatpush1.msra.mxu0 0.0
    %5633 = vmatprep.subr.mxu0 0.0
    %5634 = vmatpush1.msra.mxu0 0.0
    %5635 = vmatprep.subr.mxu0 0.0
    %5636 = vmatpush1.msra.mxu0 0.0
    %5637 = vmatprep.subr.mxu0 0.0
    %5638 = vmatpush1.msra.mxu0 0.0
    %5639 = vmatprep.subr.mxu0 0.0
    %5640 = vmatpush1.msra.mxu0 0.0
    %5641 = vmatprep.subr.mxu0 0.0
    %5642 = vmatpush1.msra.mxu0 0.0
    %5643 = vmatprep.mubr.f32.mxu0 0.0
    %5644 = vmatmul.mubr.f32.gmra.mrb[0].mxu0 %v5577
    %v5645 = vpop.f32.mrb[0].mxu0
    %v5646 = vadd.f32 %v5354, %v5645
    %v5647 = vpop.f32.mrb[0].mxu0
    %5648 = vdwg.mxu0
    %v5650 = vsel %vm2412, %v5246, 0
    %5652 = vmatprep.subr.mxu0 0.0
    %5653 = vmatpush1.msra.mxu0 %v5260
    %5654 = vmatprep.subr.mxu0 0.0
    %5655 = vmatpush1.msra.mxu0 %v5261
    %5656 = vmatprep.subr.mxu0 0.0
    %5657 = vmatpush1.msra.mxu0 %v5262
    %5658 = vmatprep.subr.mxu0 0.0
    %5659 = vmatpush1.msra.mxu0 %v5263
    %5660 = vmatprep.subr.mxu0 0.0
    %5661 = vmatpush1.msra.mxu0 0.0
    %5662 = vmatprep.subr.mxu0 0.0
    %5663 = vmatpush1.msra.mxu0 0.0
    %5664 = vmatprep.subr.mxu0 0.0
    %5665 = vmatpush1.msra.mxu0 0.0
    %5666 = vmatprep.subr.mxu0 0.0
    %5667 = vmatpush1.msra.mxu0 0.0
    %5668 = vmatprep.subr.mxu0 0.0
    %5669 = vmatpush1.msra.mxu0 0.0
    %5670 = vmatprep.subr.mxu0 0.0
    %5671 = vmatpush1.msra.mxu0 0.0
    %5672 = vmatprep.subr.mxu0 0.0
    %5673 = vmatpush1.msra.mxu0 0.0
    %5674 = vmatprep.subr.mxu0 0.0
    %5675 = vmatpush1.msra.mxu0 0.0
    %5676 = vmatprep.subr.mxu0 0.0
    %5677 = vmatpush1.msra.mxu0 0.0
    %5678 = vmatprep.subr.mxu0 0.0
    %5679 = vmatpush1.msra.mxu0 0.0
    %5680 = vmatprep.subr.mxu0 0.0
    %5681 = vmatpush1.msra.mxu0 0.0
    %5682 = vmatprep.subr.mxu0 0.0
    %5683 = vmatpush1.msra.mxu0 0.0
    %5684 = vmatprep.subr.mxu0 0.0
    %5685 = vmatpush1.msra.mxu0 0.0
    %5686 = vmatprep.subr.mxu0 0.0
    %5687 = vmatpush1.msra.mxu0 0.0
    %5688 = vmatprep.subr.mxu0 0.0
    %5689 = vmatpush1.msra.mxu0 0.0
    %5690 = vmatprep.subr.mxu0 0.0
    %5691 = vmatpush1.msra.mxu0 0.0
    %5692 = vmatprep.subr.mxu0 0.0
    %5693 = vmatpush1.msra.mxu0 0.0
    %5694 = vmatprep.subr.mxu0 0.0
    %5695 = vmatpush1.msra.mxu0 0.0
    %5696 = vmatprep.subr.mxu0 0.0
    %5697 = vmatpush1.msra.mxu0 0.0
    %5698 = vmatprep.subr.mxu0 0.0
    %5699 = vmatpush1.msra.mxu0 0.0
    %5700 = vmatprep.subr.mxu0 0.0
    %5701 = vmatpush1.msra.mxu0 0.0
    %5702 = vmatprep.subr.mxu0 0.0
    %5703 = vmatpush1.msra.mxu0 0.0
    %5704 = vmatprep.subr.mxu0 0.0
    %5705 = vmatpush1.msra.mxu0 0.0
    %5706 = vmatprep.subr.mxu0 0.0
    %5707 = vmatpush1.msra.mxu0 0.0
    %5708 = vmatprep.subr.mxu0 0.0
    %5709 = vmatpush1.msra.mxu0 0.0
    %5710 = vmatprep.subr.mxu0 0.0
    %5711 = vmatpush1.msra.mxu0 0.0
    %5712 = vmatprep.subr.mxu0 0.0
    %5713 = vmatpush1.msra.mxu0 0.0
    %5714 = vmatprep.subr.mxu0 0.0
    %5715 = vmatpush1.msra.mxu0 0.0
    %5716 = vmatprep.mubr.f32.mxu0 0.0
    %5717 = vmatmul.mubr.f32.gmra.mrb[0].mxu0 %v5650
    %v5718 = vpop.f32.mrb[0].mxu0
    %v5719 = vadd.f32 %v5427, %v5718
    %v5720 = vpop.f32.mrb[0].mxu0
    %5721 = vdwg.mxu0
    %v5723 = vsel %vm2412, %v5248, 0
    %5725 = vmatprep.subr.mxu0 0.0
    %5726 = vmatpush1.msra.mxu0 %v5268
    %5727 = vmatprep.subr.mxu0 0.0
    %5728 = vmatpush1.msra.mxu0 %v5269
    %5729 = vmatprep.subr.mxu0 0.0
    %5730 = vmatpush1.msra.mxu0 %v5270
    %5731 = vmatprep.subr.mxu0 0.0
    %5732 = vmatpush1.msra.mxu0 %v5271
    %5733 = vmatprep.subr.mxu0 0.0
    %5734 = vmatpush1.msra.mxu0 0.0
    %5735 = vmatprep.subr.mxu0 0.0
    %5736 = vmatpush1.msra.mxu0 0.0
    %5737 = vmatprep.subr.mxu0 0.0
    %5738 = vmatpush1.msra.mxu0 0.0
    %5739 = vmatprep.subr.mxu0 0.0
    %5740 = vmatpush1.msra.mxu0 0.0
    %5741 = vmatprep.subr.mxu0 0.0
    %5742 = vmatpush1.msra.mxu0 0.0
    %5743 = vmatprep.subr.mxu0 0.0
    %5744 = vmatpush1.msra.mxu0 0.0
    %5745 = vmatprep.subr.mxu0 0.0
    %5746 = vmatpush1.msra.mxu0 0.0
    %5747 = vmatprep.subr.mxu0 0.0
    %5748 = vmatpush1.msra.mxu0 0.0
    %5749 = vmatprep.subr.mxu0 0.0
    %5750 = vmatpush1.msra.mxu0 0.0
    %5751 = vmatprep.subr.mxu0 0.0
    %5752 = vmatpush1.msra.mxu0 0.0
    %5753 = vmatprep.subr.mxu0 0.0
    %5754 = vmatpush1.msra.mxu0 0.0
    %5755 = vmatprep.subr.mxu0 0.0
    %5756 = vmatpush1.msra.mxu0 0.0
    %5757 = vmatprep.subr.mxu0 0.0
    %5758 = vmatpush1.msra.mxu0 0.0
    %5759 = vmatprep.subr.mxu0 0.0
    %5760 = vmatpush1.msra.mxu0 0.0
    %5761 = vmatprep.subr.mxu0 0.0
    %5762 = vmatpush1.msra.mxu0 0.0
    %5763 = vmatprep.subr.mxu0 0.0
    %5764 = vmatpush1.msra.mxu0 0.0
    %5765 = vmatprep.subr.mxu0 0.0
    %5766 = vmatpush1.msra.mxu0 0.0
    %5767 = vmatprep.subr.mxu0 0.0
    %5768 = vmatpush1.msra.mxu0 0.0
    %5769 = vmatprep.subr.mxu0 0.0
    %5770 = vmatpush1.msra.mxu0 0.0
    %5771 = vmatprep.subr.mxu0 0.0
    %5772 = vmatpush1.msra.mxu0 0.0
    %5773 = vmatprep.subr.mxu0 0.0
    %5774 = vmatpush1.msra.mxu0 0.0
    %5775 = vmatprep.subr.mxu0 0.0
    %5776 = vmatpush1.msra.mxu0 0.0
    %5777 = vmatprep.subr.mxu0 0.0
    %5778 = vmatpush1.msra.mxu0 0.0
    %5779 = vmatprep.subr.mxu0 0.0
    %5780 = vmatpush1.msra.mxu0 0.0
    %5781 = vmatprep.subr.mxu0 0.0
    %5782 = vmatpush1.msra.mxu0 0.0
    %5783 = vmatprep.subr.mxu0 0.0
    %5784 = vmatpush1.msra.mxu0 0.0
    %5785 = vmatprep.subr.mxu0 0.0
    %5786 = vmatpush1.msra.mxu0 0.0
    %5787 = vmatprep.subr.mxu0 0.0
    %5788 = vmatpush1.msra.mxu0 0.0
    %5789 = vmatprep.mubr.f32.mxu0 0.0
    %5790 = vmatmul.mubr.f32.gmra.mrb[0].mxu0 %v5723
    %v5791 = vpop.f32.mrb[0].mxu0
    %v5792 = vadd.f32 %v5500, %v5791
    %v5793 = vpop.f32.mrb[0].mxu0
    %5794 = vdwg.mxu0
    %v5796 = vsel %vm2412, %v5250, 0
    %5798 = vmatprep.subr.mxu0 0.0
    %5799 = vmatpush1.msra.mxu0 %v5276
    %5800 = vmatprep.subr.mxu0 0.0
    %5801 = vmatpush1.msra.mxu0 %v5277
    %5802 = vmatprep.subr.mxu0 0.0
    %5803 = vmatpush1.msra.mxu0 %v5278
    %5804 = vmatprep.subr.mxu0 0.0
    %5805 = vmatpush1.msra.mxu0 %v5279
    %5806 = vmatprep.subr.mxu0 0.0
    %5807 = vmatpush1.msra.mxu0 0.0
    %5808 = vmatprep.subr.mxu0 0.0
    %5809 = vmatpush1.msra.mxu0 0.0
    %5810 = vmatprep.subr.mxu0 0.0
    %5811 = vmatpush1.msra.mxu0 0.0
    %5812 = vmatprep.subr.mxu0 0.0
    %5813 = vmatpush1.msra.mxu0 0.0
    %5814 = vmatprep.subr.mxu0 0.0
    %5815 = vmatpush1.msra.mxu0 0.0
    %5816 = vmatprep.subr.mxu0 0.0
    %5817 = vmatpush1.msra.mxu0 0.0
    %5818 = vmatprep.subr.mxu0 0.0
    %5819 = vmatpush1.msra.mxu0 0.0
    %5820 = vmatprep.subr.mxu0 0.0
    %5821 = vmatpush1.msra.mxu0 0.0
    %5822 = vmatprep.subr.mxu0 0.0
    %5823 = vmatpush1.msra.mxu0 0.0
    %5824 = vmatprep.subr.mxu0 0.0
    %5825 = vmatpush1.msra.mxu0 0.0
    %5826 = vmatprep.subr.mxu0 0.0
    %5827 = vmatpush1.msra.mxu0 0.0
    %5828 = vmatprep.subr.mxu0 0.0
    %5829 = vmatpush1.msra.mxu0 0.0
    %5830 = vmatprep.subr.mxu0 0.0
    %5831 = vmatpush1.msra.mxu0 0.0
    %5832 = vmatprep.subr.mxu0 0.0
    %5833 = vmatpush1.msra.mxu0 0.0
    %5834 = vmatprep.subr.mxu0 0.0
    %5835 = vmatpush1.msra.mxu0 0.0
    %5836 = vmatprep.subr.mxu0 0.0
    %5837 = vmatpush1.msra.mxu0 0.0
    %5838 = vmatprep.subr.mxu0 0.0
    %5839 = vmatpush1.msra.mxu0 0.0
    %5840 = vmatprep.subr.mxu0 0.0
    %5841 = vmatpush1.msra.mxu0 0.0
    %5842 = vmatprep.subr.mxu0 0.0
    %5843 = vmatpush1.msra.mxu0 0.0
    %5844 = vmatprep.subr.mxu0 0.0
    %5845 = vmatpush1.msra.mxu0 0.0
    %5846 = vmatprep.subr.mxu0 0.0
    %5847 = vmatpush1.msra.mxu0 0.0
    %5848 = vmatprep.subr.mxu0 0.0
    %5849 = vmatpush1.msra.mxu0 0.0
    %5850 = vmatprep.subr.mxu0 0.0
    %5851 = vmatpush1.msra.mxu0 0.0
    %5852 = vmatprep.subr.mxu0 0.0
    %5853 = vmatpush1.msra.mxu0 0.0
    %5854 = vmatprep.subr.mxu0 0.0
    %5855 = vmatpush1.msra.mxu0 0.0
    %5856 = vmatprep.subr.mxu0 0.0
    %5857 = vmatpush1.msra.mxu0 0.0
    %5858 = vmatprep.subr.mxu0 0.0
    %5859 = vmatpush1.msra.mxu0 0.0
    %5860 = vmatprep.subr.mxu0 0.0
    %5861 = vmatpush1.msra.mxu0 0.0
    %5862 = vmatprep.mubr.f32.mxu0 0.0
    %5863 = vmatmul.mubr.f32.gmra.mrb[0].mxu0 %v5796
    %v5864 = vpop.f32.mrb[0].mxu0
    %v5865 = vadd.f32 %v5573, %v5864
    %v5866 = vpop.f32.mrb[0].mxu0
    %5867 = vdwg.mxu0
    %v5868 = vadd.f32 %v5646, %v5719
    %v5869 = vadd.f32 %v5792, %v5865
    %v5870 = vadd.f32 %v5868, %v5869
    %v5871 = vld [vmem:[%s21] sm:$0x1]
    %v5873 = vlaneseq
    %v5874 = vshrl.u32 %v5873, 7
    %v5875 = vsub.s32 0, %v5874
    %v5876 = vrot.slane %v5871, %v5875
    %v5878 = vadd.f32 %v5870, %v5876
    %5879 = vst [vmem:[#allocation2] sm:$0xff] %v5878
    // Predicated region
    $region90: #{wpmixer_core_forward.1} parent=1 // pred_check
      _
    $region91: #{wpmixer_core_forward.1} parent=1 // pred_check_branch
      %5881 = sbr.rel (0) target = $region93
    $region92: #{wpmixer_core_forward.1} parent=1 // pred_region
      %s5883 = ssub.s32 128, 128
      %5884 = vsyncadd [#allocation3], %s5883
      %s5886 = sshll.u32 [#allocation2], 4
      %s5887 = int_to_ptr.vmem [resolvable:$true] %s5886
      %5889 = dma.vmem_to_hbm [thread:$0]  %s5887, 128, %s22, [#allocation3]
    $region93: #{wpmixer_core_forward.1} parent=1 // pred_fallthru
      _
    // Predicated region
    $region94: #{wpmixer_core_forward.1} parent=1 // pred_check
      _
    $region95: #{wpmixer_core_forward.1} parent=1 // pred_check_branch
      %5891 = sbr.rel (0) target = $region97
    $region96: #{wpmixer_core_forward.1} parent=1 // pred_region
      %5892 = dma.done [#allocation3], 128
    $region97: #{wpmixer_core_forward.1} parent=1 // pred_fallthru
      _
    %5893 = vsyncpa [#allocation3], 1

</llo_original>
